<compile_context>
chip_gen: v7x
topology: tpu7x:2x2x1
jax: 0.10.0
libtpu: 0.0.40
codegen_flags: <defaults>
</compile_context>

<pallas_src>
import jax
import jax.numpy as jnp
from jax.experimental import pallas as pl
from jax.experimental.pallas import tpu as pltpu


TB_MAX = 64  # max batch tile (sublane dim of every on-chip activation); mult of 16


def _round_up(n, m):
    return ((n + m - 1) // m) * m


# ---------------------------------------------------------------------------
# The fused kernel: one grid step processes `tb` images end-to-end in VMEM.
# ---------------------------------------------------------------------------
def _lenet5_kernel(x_ref, t1_ref, cb1_ref, p1_ref, t2_ref, cb2_ref, p2_ref,
                   fw1_ref, fb1_ref, fw2_ref, fb2_ref, fw3_ref, fb3_ref,
                   out_ref):
    f32 = jnp.float32
    tb = x_ref.shape[1]

    def conv5(x3d, t_ref):
        # x3d: (Hin, tb, Fin) ref or value; t_ref: (5, Fin, Fout) banded weights.
        # Returns (Hout*tb, Fout) f32 with rows ordered (h, b).
        kh, fin, fout = t_ref.shape
        hout = x3d.shape[0] - kh + 1
        acc = jnp.zeros((hout * tb, fout), f32)
        for dh in range(kh):
            xs = x3d[dh:dh + hout, :, :].reshape(hout * tb, fin)  # free reshape
            acc = acc + jnp.dot(xs.astype(t_ref.dtype), t_ref[dh],
                                preferred_element_type=f32)
        return acc

    def pool2x2(y2d, p_ref):
        # y2d: (2*Hout*tb, Fin) f32 rows ordered (h, b); p_ref: (Fin, Fout)
        # constant averaging W pairs per channel (carries the 0.25 factor).
        fin, fout = p_ref.shape
        hout = y2d.shape[0] // (2 * tb)
        y = y2d.reshape(hout, 2, tb, fin)          # leading-dim split (free)
        s = y[:, 0] + y[:, 1]                      # H-direction pair sum
        p = jnp.dot(s.reshape(hout * tb, fin).astype(p_ref.dtype), p_ref[...],
                    preferred_element_type=f32)    # W-direction pair average
        return p.reshape(hout, tb, fout)

    # conv_unit (no activation between conv and pool, matching the module)
    y1 = conv5(x_ref, t1_ref) + cb1_ref[...]       # (28*tb, 168) f32
    q1 = pool2x2(y1, p1_ref)                       # (14, tb, 88)   (84 padded)
    y2 = conv5(q1, t2_ref) + cb2_ref[...]          # (10*tb, 160)
    q2 = pool2x2(y2, p2_ref)                       # (5,  tb, 80)

    # fc_unit: fc1 consumes the 5 spatial rows with per-row weight slabs so the
    # PyTorch (C,H,W) flatten order is reproduced without any relayout.
    acc = jnp.zeros((tb, fb1_ref.shape[1]), f32) + fb1_ref[...]
    for h in range(q2.shape[0]):
        acc = acc + jnp.dot(q2[h].astype(fw1_ref.dtype), fw1_ref[h],
                            preferred_element_type=f32)
    h1 = jnp.maximum(acc, 0.0)                                           # (tb, 120)
    h2 = jnp.maximum(
        jnp.dot(h1.astype(fw2_ref.dtype), fw2_ref[...],
                preferred_element_type=f32) + fb2_ref[...], 0.0)         # (tb, 88)
    logits = jnp.dot(h2.astype(fw3_ref.dtype), fw3_ref[...],
                     preferred_element_type=f32) + fb3_ref[...]
    out_ref[...] = logits.astype(out_ref.dtype)                          # (tb, 128)


# ---------------------------------------------------------------------------
# One-time weight repacking (PyTorch layout -> kernel constants).
# Matmul operands go to bf16 (MXU dtype); biases stay f32 (added post-acc).
# ---------------------------------------------------------------------------
def prepare_params(params, compute_dtype=jnp.bfloat16):
    f32 = jnp.float32
    cd = compute_dtype

    def conv_band(w, win):
        # w: (Co, Ci, 5, 5) -> T: (5, Ci*Win, Co*Wout), T[dh][ci*Win+wi, co*Wout+wo]
        #   = w[co, ci, dh, wi-wo] on the 5 diagonals, 0 elsewhere.
        co, ci, kh, kw = w.shape
        wout = win - kw + 1
        d = jnp.stack([jnp.eye(win, wout, k=-dw, dtype=f32) for dw in range(kw)])
        t = jnp.einsum("vab,oiuv->uiaob", d, w.astype(f32))
        return t.reshape(kh, ci * win, co * wout)

    def pool_mat(c, win):
        # (c*win, c*(win//2)) constant: averages W pairs per channel (0.25 factor
        # also covers the H pair-sum done in-kernel).  Exact in bf16.
        half = jnp.kron(jnp.eye(win // 2, dtype=f32), jnp.full((2, 1), 0.25, f32))
        return jnp.kron(jnp.eye(c, dtype=f32), half)

    def pad_last(a, n):
        return jnp.pad(a, [(0, 0)] * (a.ndim - 1) + [(0, n - a.shape[-1])])

    F2 = 88     # conv2 input features 6*14=84 -> multiple of 8 (aligned K)
    H2 = 88     # fc2 output 84 -> multiple of 8 (aligned K for fc3)
    NOUT = 128  # fc3 outputs 10 -> full lane tile for a dense HBM store

    t1 = conv_band(params["conv1_w"], 32)                         # (5, 96, 168)
    cb1 = jnp.repeat(params["conv1_b"].astype(f32), 28)[None, :]  # (1, 168)
    p1 = pad_last(pool_mat(6, 28), F2)                            # (168, 88)
    t2 = jnp.pad(conv_band(params["conv2_w"], 14),
                 ((0, 0), (0, F2 - 84), (0, 0)))                  # (5, 88, 160)
    cb2 = jnp.repeat(params["conv2_b"].astype(f32), 10)[None, :]  # (1, 160)
    p2 = pool_mat(16, 10)                                         # (160, 80)

    # fc1 weights reordered to (h, (c,w), n) so the on-chip layout reproduces
    # torch's .view(B, 16*5*5) flatten order exactly.
    fw1 = jnp.transpose(params["fc1_w"].astype(f32).reshape(120, 16, 5, 5),
                        (2, 1, 3, 0)).reshape(5, 80, 120)         # (5, 80, 120)
    fb1 = params["fc1_b"].astype(f32)[None, :]                    # (1, 120)
    fw2 = pad_last(params["fc2_w"].astype(f32).T, H2)             # (120, 88)
    fb2 = pad_last(params["fc2_b"].astype(f32)[None, :], H2)      # (1, 88)
    fw3 = jnp.zeros((H2, NOUT), f32).at[:84, :10].set(params["fc3_w"].astype(f32).T)
    fb3 = jnp.zeros((1, NOUT), f32).at[:, :10].set(params["fc3_b"].astype(f32)[None, :])

    return {"t1": t1.astype(cd), "cb1": cb1, "p1": p1.astype(cd),
            "t2": t2.astype(cd), "cb2": cb2, "p2": p2.astype(cd),
            "fw1": fw1.astype(cd), "fb1": fb1,
            "fw2": fw2.astype(cd), "fb2": fb2,
            "fw3": fw3.astype(cd), "fb3": fb3}


# ---------------------------------------------------------------------------
# Forward pass: one pallas_call, grid over batch tiles of `tb` images.
# ---------------------------------------------------------------------------
@jax.jit
def lenet5_forward(prepped, x):
    """x: (B, 3, 32, 32) float32 NCHW -> logits (B, 10) float32."""
    B = x.shape[0]
    tb = min(TB_MAX, _round_up(max(B, 1), 16))   # batch tile (static per shape)
    bp = _round_up(B, tb)
    cd = prepped["t1"].dtype

    # Cast + relayout NCHW -> (H, B, C*W) in one fused XLA pass (the cast is
    # mandatory anyway; transpose/reshape ride along).
    # TODO(synk): produce this layout upstream to drop the extra input pass.
    xp = jnp.pad(x.astype(cd), ((0, bp - B), (0, 0), (0, 0), (0, 0)))
    x_lay = jnp.transpose(xp, (2, 0, 1, 3)).reshape(32, bp, 3 * 32)

    w = prepped
    order = ("t1", "cb1", "p1", "t2", "cb2", "p2",
             "fw1", "fb1", "fw2", "fb2", "fw3", "fb3")

    def full_spec(shape):
        n = len(shape)
        return pl.BlockSpec(tuple(shape), lambda i, _n=n: (0,) * _n)

    out = pl.pallas_call(
        _lenet5_kernel,
        out_shape=jax.ShapeDtypeStruct((bp, 128), jnp.float32),
        grid=(bp // tb,),
        in_specs=[pl.BlockSpec((32, tb, 96), lambda i: (0, i, 0))]
                 + [full_spec(w[k].shape) for k in order],
        out_specs=pl.BlockSpec((tb, 128), lambda i: (i, 0)),
        compiler_params=pltpu.CompilerParams(
            # TODO(synk): on v7x, if "parallel" does not split batch tiles
            # across the 2 TensorCores, switch to pltpu.CORE_PARALLEL.
            dimension_semantics=("parallel",),
            vmem_limit_bytes=32 * 1024 * 1024),
    )(x_lay, *[w[k] for k in order])
    return out[:B, :10]


# ---------------------------------------------------------------------------
# Deterministic params + plain-JAX reference (for a numerical self-check).
# ---------------------------------------------------------------------------
def init_params(key, scale=0.1):
    ks = jax.random.split(key, 10)
    n = jax.random.normal
    return {
        "conv1_w": scale * n(ks[0], (6, 3, 5, 5), jnp.float32),
        "conv1_b": scale * n(ks[1], (6,), jnp.float32),
        "conv2_w": scale * n(ks[2], (16, 6, 5, 5), jnp.float32),
        "conv2_b": scale * n(ks[3], (16,), jnp.float32),
        "fc1_w": scale * n(ks[4], (120, 400), jnp.float32),
        "fc1_b": scale * n(ks[5], (120,), jnp.float32),
        "fc2_w": scale * n(ks[6], (84, 120), jnp.float32),
        "fc2_b": scale * n(ks[7], (84,), jnp.float32),
        "fc3_w": scale * n(ks[8], (10, 84), jnp.float32),
        "fc3_b": scale * n(ks[9], (10,), jnp.float32),
    }


def reference_forward(params, x):
    hi = jax.lax.Precision.HIGHEST

    def conv(y, w, b):
        dn = jax.lax.conv_dimension_numbers(y.shape, w.shape,
                                            ("NCHW", "OIHW", "NCHW"))
        y = jax.lax.conv_general_dilated(y, w, (1, 1), "VALID",
                                         dimension_numbers=dn, precision=hi)
        return y + b[None, :, None, None]

    def avgpool(y):
        return 0.25 * (y[:, :, 0::2, 0::2] + y[:, :, 0::2, 1::2]
                       + y[:, :, 1::2, 0::2] + y[:, :, 1::2, 1::2])

    y = avgpool(conv(x, params["conv1_w"], params["conv1_b"]))
    y = avgpool(conv(y, params["conv2_w"], params["conv2_b"]))
    y = y.reshape(x.shape[0], 400)
    y = jnp.maximum(jnp.dot(y, params["fc1_w"].T, precision=hi) + params["fc1_b"], 0.0)
    y = jnp.maximum(jnp.dot(y, params["fc2_w"].T, precision=hi) + params["fc2_b"], 0.0)
    return jnp.dot(y, params["fc3_w"].T, precision=hi) + params["fc3_b"]


if __name__ == "__main__":
    kp, kx = jax.random.split(jax.random.PRNGKey(0))
    params = init_params(kp)
    prepped = prepare_params(params)                 # one-time weight repacking
    x = jax.random.normal(kx, (2, 3, 32, 32), jnp.float32)

    logits = jax.block_until_ready(lenet5_forward(prepped, x))
    assert logits.shape == (2, 10) and logits.dtype == jnp.float32

    ref = reference_forward(params, x)
    scale = float(jnp.max(jnp.abs(ref))) + 1e-6
    err = float(jnp.max(jnp.abs(logits - ref)))
    # Tolerance covers bf16 MXU operands (accumulation is f32 throughout).
    assert err <= 3e-2 * scale + 3e-3, f"mismatch vs reference: {err} (scale {scale})"
    print("KERNEL_OK")
</pallas_src>

<mosaic_0001>
module attributes {stable_mosaic.version = 11 : i64} {
  func.func @_lenet5_kernel(%arg0: i32, %arg1: memref<32x16x96xbf16, #tpu.memory_space<vmem>>, %arg2: memref<5x96x168xbf16, #tpu.memory_space<vmem>>, %arg3: memref<1x168xf32, #tpu.memory_space<vmem>>, %arg4: memref<168x88xbf16, #tpu.memory_space<vmem>>, %arg5: memref<5x88x160xbf16, #tpu.memory_space<vmem>>, %arg6: memref<1x160xf32, #tpu.memory_space<vmem>>, %arg7: memref<160x80xbf16, #tpu.memory_space<vmem>>, %arg8: memref<5x80x120xbf16, #tpu.memory_space<vmem>>, %arg9: memref<1x120xf32, #tpu.memory_space<vmem>>, %arg10: memref<120x88xbf16, #tpu.memory_space<vmem>>, %arg11: memref<1x88xf32, #tpu.memory_space<vmem>>, %arg12: memref<88x128xbf16, #tpu.memory_space<vmem>>, %arg13: memref<1x128xf32, #tpu.memory_space<vmem>>, %arg14: memref<16x128xf32, #tpu.memory_space<vmem>>) attributes {dimension_semantics = [#tpu.dimension_semantics<parallel>], iteration_bounds = array<i64: 1>, scalar_prefetch = 0 : i64, scratch_operands = 0 : i64, tpu.core_type = #tpu.core_type<tc>, window_params = [{transform_indices = @transform_0, window_bounds = array<i64: 32, 16, 96>}, {pipeline_mode = #tpu.pipeline_mode<synchronous>, transform_indices = @transform_1, window_bounds = array<i64: 5, 96, 168>}, {pipeline_mode = #tpu.pipeline_mode<synchronous>, transform_indices = @transform_2, window_bounds = array<i64: 1, 168>}, {pipeline_mode = #tpu.pipeline_mode<synchronous>, transform_indices = @transform_3, window_bounds = array<i64: 168, 88>}, {pipeline_mode = #tpu.pipeline_mode<synchronous>, transform_indices = @transform_4, window_bounds = array<i64: 5, 88, 160>}, {pipeline_mode = #tpu.pipeline_mode<synchronous>, transform_indices = @transform_5, window_bounds = array<i64: 1, 160>}, {pipeline_mode = #tpu.pipeline_mode<synchronous>, transform_indices = @transform_6, window_bounds = array<i64: 160, 80>}, {pipeline_mode = #tpu.pipeline_mode<synchronous>, transform_indices = @transform_7, window_bounds = array<i64: 5, 80, 120>}, {pipeline_mode = #tpu.pipeline_mode<synchronous>, transform_indices = @transform_8, window_bounds = array<i64: 1, 120>}, {pipeline_mode = #tpu.pipeline_mode<synchronous>, transform_indices = @transform_9, window_bounds = array<i64: 120, 88>}, {pipeline_mode = #tpu.pipeline_mode<synchronous>, transform_indices = @transform_10, window_bounds = array<i64: 1, 88>}, {pipeline_mode = #tpu.pipeline_mode<synchronous>, transform_indices = @transform_11, window_bounds = array<i64: 88, 128>}, {pipeline_mode = #tpu.pipeline_mode<synchronous>, transform_indices = @transform_12, window_bounds = array<i64: 1, 128>}, {transform_indices = @transform_13, window_bounds = array<i64: 16, 128>}]} {
    %cst = arith.constant 0.000000e+00 : f32
    %0 = vector.broadcast %cst : f32 to vector<448x168xf32>
    %c0 = arith.constant 0 : index
    %c0_0 = arith.constant 0 : index
    %c0_1 = arith.constant 0 : index
    %1 = vector.load %arg1[%c0, %c0_0, %c0_1] : memref<32x16x96xbf16, #tpu.memory_space<vmem>>, vector<28x16x96xbf16>
    %2 = vector.shape_cast %1 : vector<28x16x96xbf16> to vector<448x96xbf16>
    %c0_2 = arith.constant 0 : index
    %c0_3 = arith.constant 0 : index
    %c0_4 = arith.constant 0 : index
    %3 = vector.load %arg2[%c0_2, %c0_3, %c0_4] : memref<5x96x168xbf16, #tpu.memory_space<vmem>>, vector<1x96x168xbf16>
    %4 = vector.shape_cast %3 : vector<1x96x168xbf16> to vector<96x168xbf16>
    %cst_5 = arith.constant dense<0.000000e+00> : vector<448x168xf32>
    %5 = tpu.matmul %2, %4, %cst_5 {dimension_numbers = #tpu.dot_dimension_numbers<[1], [0], [0], [1], [0, 0, 1, 1], [], []>} : vector<448x96xbf16>, vector<96x168xbf16>, vector<448x168xf32> -> vector<448x168xf32>
    %6 = arith.addf %0, %5 : vector<448x168xf32>
    %c1 = arith.constant 1 : index
    %c0_6 = arith.constant 0 : index
    %c0_7 = arith.constant 0 : index
    %7 = vector.load %arg1[%c1, %c0_6, %c0_7] : memref<32x16x96xbf16, #tpu.memory_space<vmem>>, vector<28x16x96xbf16>
    %8 = vector.shape_cast %7 : vector<28x16x96xbf16> to vector<448x96xbf16>
    %c1_8 = arith.constant 1 : index
    %c0_9 = arith.constant 0 : index
    %c0_10 = arith.constant 0 : index
    %9 = vector.load %arg2[%c1_8, %c0_9, %c0_10] : memref<5x96x168xbf16, #tpu.memory_space<vmem>>, vector<1x96x168xbf16>
    %10 = vector.shape_cast %9 : vector<1x96x168xbf16> to vector<96x168xbf16>
    %cst_11 = arith.constant dense<0.000000e+00> : vector<448x168xf32>
    %11 = tpu.matmul %8, %10, %cst_11 {dimension_numbers = #tpu.dot_dimension_numbers<[1], [0], [0], [1], [0, 0, 1, 1], [], []>} : vector<448x96xbf16>, vector<96x168xbf16>, vector<448x168xf32> -> vector<448x168xf32>
    %12 = arith.addf %6, %11 : vector<448x168xf32>
    %c2 = arith.constant 2 : index
    %c0_12 = arith.constant 0 : index
    %c0_13 = arith.constant 0 : index
    %13 = vector.load %arg1[%c2, %c0_12, %c0_13] : memref<32x16x96xbf16, #tpu.memory_space<vmem>>, vector<28x16x96xbf16>
    %14 = vector.shape_cast %13 : vector<28x16x96xbf16> to vector<448x96xbf16>
    %c2_14 = arith.constant 2 : index
    %c0_15 = arith.constant 0 : index
    %c0_16 = arith.constant 0 : index
    %15 = vector.load %arg2[%c2_14, %c0_15, %c0_16] : memref<5x96x168xbf16, #tpu.memory_space<vmem>>, vector<1x96x168xbf16>
    %16 = vector.shape_cast %15 : vector<1x96x168xbf16> to vector<96x168xbf16>
    %cst_17 = arith.constant dense<0.000000e+00> : vector<448x168xf32>
    %17 = tpu.matmul %14, %16, %cst_17 {dimension_numbers = #tpu.dot_dimension_numbers<[1], [0], [0], [1], [0, 0, 1, 1], [], []>} : vector<448x96xbf16>, vector<96x168xbf16>, vector<448x168xf32> -> vector<448x168xf32>
    %18 = arith.addf %12, %17 : vector<448x168xf32>
    %c3 = arith.constant 3 : index
    %c0_18 = arith.constant 0 : index
    %c0_19 = arith.constant 0 : index
    %19 = vector.load %arg1[%c3, %c0_18, %c0_19] : memref<32x16x96xbf16, #tpu.memory_space<vmem>>, vector<28x16x96xbf16>
    %20 = vector.shape_cast %19 : vector<28x16x96xbf16> to vector<448x96xbf16>
    %c3_20 = arith.constant 3 : index
    %c0_21 = arith.constant 0 : index
    %c0_22 = arith.constant 0 : index
    %21 = vector.load %arg2[%c3_20, %c0_21, %c0_22] : memref<5x96x168xbf16, #tpu.memory_space<vmem>>, vector<1x96x168xbf16>
    %22 = vector.shape_cast %21 : vector<1x96x168xbf16> to vector<96x168xbf16>
    %cst_23 = arith.constant dense<0.000000e+00> : vector<448x168xf32>
    %23 = tpu.matmul %20, %22, %cst_23 {dimension_numbers = #tpu.dot_dimension_numbers<[1], [0], [0], [1], [0, 0, 1, 1], [], []>} : vector<448x96xbf16>, vector<96x168xbf16>, vector<448x168xf32> -> vector<448x168xf32>
    %24 = arith.addf %18, %23 : vector<448x168xf32>
    %c4 = arith.constant 4 : index
    %c0_24 = arith.constant 0 : index
    %c0_25 = arith.constant 0 : index
    %25 = vector.load %arg1[%c4, %c0_24, %c0_25] : memref<32x16x96xbf16, #tpu.memory_space<vmem>>, vector<28x16x96xbf16>
    %26 = vector.shape_cast %25 : vector<28x16x96xbf16> to vector<448x96xbf16>
    %c4_26 = arith.constant 4 : index
    %c0_27 = arith.constant 0 : index
    %c0_28 = arith.constant 0 : index
    %27 = vector.load %arg2[%c4_26, %c0_27, %c0_28] : memref<5x96x168xbf16, #tpu.memory_space<vmem>>, vector<1x96x168xbf16>
    %28 = vector.shape_cast %27 : vector<1x96x168xbf16> to vector<96x168xbf16>
    %cst_29 = arith.constant dense<0.000000e+00> : vector<448x168xf32>
    %29 = tpu.matmul %26, %28, %cst_29 {dimension_numbers = #tpu.dot_dimension_numbers<[1], [0], [0], [1], [0, 0, 1, 1], [], []>} : vector<448x96xbf16>, vector<96x168xbf16>, vector<448x168xf32> -> vector<448x168xf32>
    %30 = arith.addf %24, %29 : vector<448x168xf32>
    %c0_30 = arith.constant 0 : index
    %c0_31 = arith.constant 0 : index
    %31 = vector.load %arg3[%c0_30, %c0_31] : memref<1x168xf32, #tpu.memory_space<vmem>>, vector<1x168xf32>
    %32 = vector.broadcast %31 : vector<1x168xf32> to vector<448x168xf32>
    %33 = arith.addf %30, %32 : vector<448x168xf32>
    %34 = vector.shape_cast %33 : vector<448x168xf32> to vector<14x2x16x168xf32>
    %35 = vector.extract_strided_slice %34 {offsets = [0, 0, 0, 0], sizes = [14, 1, 16, 168], strides = [1, 1, 1, 1]} : vector<14x2x16x168xf32> to vector<14x1x16x168xf32>
    %36 = vector.shape_cast %35 : vector<14x1x16x168xf32> to vector<14x16x168xf32>
    %37 = vector.extract_strided_slice %34 {offsets = [0, 1, 0, 0], sizes = [14, 1, 16, 168], strides = [1, 1, 1, 1]} : vector<14x2x16x168xf32> to vector<14x1x16x168xf32>
    %38 = vector.shape_cast %37 : vector<14x1x16x168xf32> to vector<14x16x168xf32>
    %39 = arith.addf %36, %38 : vector<14x16x168xf32>
    %40 = vector.shape_cast %39 : vector<14x16x168xf32> to vector<224x168xf32>
    %41 = arith.truncf %40 : vector<224x168xf32> to vector<224x168xbf16>
    %c0_32 = arith.constant 0 : index
    %c0_33 = arith.constant 0 : index
    %42 = vector.load %arg4[%c0_32, %c0_33] : memref<168x88xbf16, #tpu.memory_space<vmem>>, vector<168x88xbf16>
    %cst_34 = arith.constant dense<0.000000e+00> : vector<224x88xf32>
    %43 = tpu.matmul %41, %42, %cst_34 {dimension_numbers = #tpu.dot_dimension_numbers<[1], [0], [0], [1], [0, 0, 1, 1], [], []>} : vector<224x168xbf16>, vector<168x88xbf16>, vector<224x88xf32> -> vector<224x88xf32>
    %44 = vector.shape_cast %43 : vector<224x88xf32> to vector<14x16x88xf32>
    %cst_35 = arith.constant 0.000000e+00 : f32
    %45 = vector.broadcast %cst_35 : f32 to vector<160x160xf32>
    %46 = vector.extract_strided_slice %44 {offsets = [0, 0, 0], sizes = [10, 16, 88], strides = [1, 1, 1]} : vector<14x16x88xf32> to vector<10x16x88xf32>
    %47 = vector.shape_cast %46 : vector<10x16x88xf32> to vector<160x88xf32>
    %48 = arith.truncf %47 : vector<160x88xf32> to vector<160x88xbf16>
    %c0_36 = arith.constant 0 : index
    %c0_37 = arith.constant 0 : index
    %c0_38 = arith.constant 0 : index
    %49 = vector.load %arg5[%c0_36, %c0_37, %c0_38] : memref<5x88x160xbf16, #tpu.memory_space<vmem>>, vector<1x88x160xbf16>
    %50 = vector.shape_cast %49 : vector<1x88x160xbf16> to vector<88x160xbf16>
    %cst_39 = arith.constant dense<0.000000e+00> : vector<160x160xf32>
    %51 = tpu.matmul %48, %50, %cst_39 {dimension_numbers = #tpu.dot_dimension_numbers<[1], [0], [0], [1], [0, 0, 1, 1], [], []>} : vector<160x88xbf16>, vector<88x160xbf16>, vector<160x160xf32> -> vector<160x160xf32>
    %52 = arith.addf %45, %51 : vector<160x160xf32>
    %53 = vector.extract_strided_slice %44 {offsets = [1, 0, 0], sizes = [10, 16, 88], strides = [1, 1, 1]} : vector<14x16x88xf32> to vector<10x16x88xf32>
    %54 = vector.shape_cast %53 : vector<10x16x88xf32> to vector<160x88xf32>
    %55 = arith.truncf %54 : vector<160x88xf32> to vector<160x88xbf16>
    %c1_40 = arith.constant 1 : index
    %c0_41 = arith.constant 0 : index
    %c0_42 = arith.constant 0 : index
    %56 = vector.load %arg5[%c1_40, %c0_41, %c0_42] : memref<5x88x160xbf16, #tpu.memory_space<vmem>>, vector<1x88x160xbf16>
    %57 = vector.shape_cast %56 : vector<1x88x160xbf16> to vector<88x160xbf16>
    %cst_43 = arith.constant dense<0.000000e+00> : vector<160x160xf32>
    %58 = tpu.matmul %55, %57, %cst_43 {dimension_numbers = #tpu.dot_dimension_numbers<[1], [0], [0], [1], [0, 0, 1, 1], [], []>} : vector<160x88xbf16>, vector<88x160xbf16>, vector<160x160xf32> -> vector<160x160xf32>
    %59 = arith.addf %52, %58 : vector<160x160xf32>
    %60 = vector.extract_strided_slice %44 {offsets = [2, 0, 0], sizes = [10, 16, 88], strides = [1, 1, 1]} : vector<14x16x88xf32> to vector<10x16x88xf32>
    %61 = vector.shape_cast %60 : vector<10x16x88xf32> to vector<160x88xf32>
    %62 = arith.truncf %61 : vector<160x88xf32> to vector<160x88xbf16>
    %c2_44 = arith.constant 2 : index
    %c0_45 = arith.constant 0 : index
    %c0_46 = arith.constant 0 : index
    %63 = vector.load %arg5[%c2_44, %c0_45, %c0_46] : memref<5x88x160xbf16, #tpu.memory_space<vmem>>, vector<1x88x160xbf16>
    %64 = vector.shape_cast %63 : vector<1x88x160xbf16> to vector<88x160xbf16>
    %cst_47 = arith.constant dense<0.000000e+00> : vector<160x160xf32>
    %65 = tpu.matmul %62, %64, %cst_47 {dimension_numbers = #tpu.dot_dimension_numbers<[1], [0], [0], [1], [0, 0, 1, 1], [], []>} : vector<160x88xbf16>, vector<88x160xbf16>, vector<160x160xf32> -> vector<160x160xf32>
    %66 = arith.addf %59, %65 : vector<160x160xf32>
    %67 = vector.extract_strided_slice %44 {offsets = [3, 0, 0], sizes = [10, 16, 88], strides = [1, 1, 1]} : vector<14x16x88xf32> to vector<10x16x88xf32>
    %68 = vector.shape_cast %67 : vector<10x16x88xf32> to vector<160x88xf32>
    %69 = arith.truncf %68 : vector<160x88xf32> to vector<160x88xbf16>
    %c3_48 = arith.constant 3 : index
    %c0_49 = arith.constant 0 : index
    %c0_50 = arith.constant 0 : index
    %70 = vector.load %arg5[%c3_48, %c0_49, %c0_50] : memref<5x88x160xbf16, #tpu.memory_space<vmem>>, vector<1x88x160xbf16>
    %71 = vector.shape_cast %70 : vector<1x88x160xbf16> to vector<88x160xbf16>
    %cst_51 = arith.constant dense<0.000000e+00> : vector<160x160xf32>
    %72 = tpu.matmul %69, %71, %cst_51 {dimension_numbers = #tpu.dot_dimension_numbers<[1], [0], [0], [1], [0, 0, 1, 1], [], []>} : vector<160x88xbf16>, vector<88x160xbf16>, vector<160x160xf32> -> vector<160x160xf32>
    %73 = arith.addf %66, %72 : vector<160x160xf32>
    %74 = vector.extract_strided_slice %44 {offsets = [4, 0, 0], sizes = [10, 16, 88], strides = [1, 1, 1]} : vector<14x16x88xf32> to vector<10x16x88xf32>
    %75 = vector.shape_cast %74 : vector<10x16x88xf32> to vector<160x88xf32>
    %76 = arith.truncf %75 : vector<160x88xf32> to vector<160x88xbf16>
    %c4_52 = arith.constant 4 : index
    %c0_53 = arith.constant 0 : index
    %c0_54 = arith.constant 0 : index
    %77 = vector.load %arg5[%c4_52, %c0_53, %c0_54] : memref<5x88x160xbf16, #tpu.memory_space<vmem>>, vector<1x88x160xbf16>
    %78 = vector.shape_cast %77 : vector<1x88x160xbf16> to vector<88x160xbf16>
    %cst_55 = arith.constant dense<0.000000e+00> : vector<160x160xf32>
    %79 = tpu.matmul %76, %78, %cst_55 {dimension_numbers = #tpu.dot_dimension_numbers<[1], [0], [0], [1], [0, 0, 1, 1], [], []>} : vector<160x88xbf16>, vector<88x160xbf16>, vector<160x160xf32> -> vector<160x160xf32>
    %80 = arith.addf %73, %79 : vector<160x160xf32>
    %c0_56 = arith.constant 0 : index
    %c0_57 = arith.constant 0 : index
    %81 = vector.load %arg6[%c0_56, %c0_57] : memref<1x160xf32, #tpu.memory_space<vmem>>, vector<1x160xf32>
    %82 = vector.broadcast %81 : vector<1x160xf32> to vector<160x160xf32>
    %83 = arith.addf %80, %82 : vector<160x160xf32>
    %84 = vector.shape_cast %83 : vector<160x160xf32> to vector<5x2x16x160xf32>
    %85 = vector.extract_strided_slice %84 {offsets = [0, 0, 0, 0], sizes = [5, 1, 16, 160], strides = [1, 1, 1, 1]} : vector<5x2x16x160xf32> to vector<5x1x16x160xf32>
    %86 = vector.shape_cast %85 : vector<5x1x16x160xf32> to vector<5x16x160xf32>
    %87 = vector.extract_strided_slice %84 {offsets = [0, 1, 0, 0], sizes = [5, 1, 16, 160], strides = [1, 1, 1, 1]} : vector<5x2x16x160xf32> to vector<5x1x16x160xf32>
    %88 = vector.shape_cast %87 : vector<5x1x16x160xf32> to vector<5x16x160xf32>
    %89 = arith.addf %86, %88 : vector<5x16x160xf32>
    %90 = vector.shape_cast %89 : vector<5x16x160xf32> to vector<80x160xf32>
    %91 = arith.truncf %90 : vector<80x160xf32> to vector<80x160xbf16>
    %c0_58 = arith.constant 0 : index
    %c0_59 = arith.constant 0 : index
    %92 = vector.load %arg7[%c0_58, %c0_59] : memref<160x80xbf16, #tpu.memory_space<vmem>>, vector<160x80xbf16>
    %cst_60 = arith.constant dense<0.000000e+00> : vector<80x80xf32>
    %93 = tpu.matmul %91, %92, %cst_60 {dimension_numbers = #tpu.dot_dimension_numbers<[1], [0], [0], [1], [0, 0, 1, 1], [], []>} : vector<80x160xbf16>, vector<160x80xbf16>, vector<80x80xf32> -> vector<80x80xf32>
    %94 = vector.shape_cast %93 : vector<80x80xf32> to vector<5x16x80xf32>
    %cst_61 = arith.constant 0.000000e+00 : f32
    %95 = vector.broadcast %cst_61 : f32 to vector<16x120xf32>
    %c0_62 = arith.constant 0 : index
    %c0_63 = arith.constant 0 : index
    %96 = vector.load %arg9[%c0_62, %c0_63] : memref<1x120xf32, #tpu.memory_space<vmem>>, vector<1x120xf32>
    %97 = vector.broadcast %96 : vector<1x120xf32> to vector<16x120xf32>
    %98 = arith.addf %95, %97 : vector<16x120xf32>
    %99 = vector.extract_strided_slice %94 {offsets = [0, 0, 0], sizes = [1, 16, 80], strides = [1, 1, 1]} : vector<5x16x80xf32> to vector<1x16x80xf32>
    %100 = vector.shape_cast %99 : vector<1x16x80xf32> to vector<16x80xf32>
    %101 = arith.truncf %100 : vector<16x80xf32> to vector<16x80xbf16>
    %c0_64 = arith.constant 0 : index
    %c0_65 = arith.constant 0 : index
    %c0_66 = arith.constant 0 : index
    %102 = vector.load %arg8[%c0_64, %c0_65, %c0_66] : memref<5x80x120xbf16, #tpu.memory_space<vmem>>, vector<1x80x120xbf16>
    %103 = vector.shape_cast %102 : vector<1x80x120xbf16> to vector<80x120xbf16>
    %cst_67 = arith.constant dense<0.000000e+00> : vector<16x120xf32>
    %104 = tpu.matmul %101, %103, %cst_67 {dimension_numbers = #tpu.dot_dimension_numbers<[1], [0], [0], [1], [0, 0, 1, 1], [], []>} : vector<16x80xbf16>, vector<80x120xbf16>, vector<16x120xf32> -> vector<16x120xf32>
    %105 = arith.addf %98, %104 : vector<16x120xf32>
    %106 = vector.extract_strided_slice %94 {offsets = [1, 0, 0], sizes = [1, 16, 80], strides = [1, 1, 1]} : vector<5x16x80xf32> to vector<1x16x80xf32>
    %107 = vector.shape_cast %106 : vector<1x16x80xf32> to vector<16x80xf32>
    %108 = arith.truncf %107 : vector<16x80xf32> to vector<16x80xbf16>
    %c1_68 = arith.constant 1 : index
    %c0_69 = arith.constant 0 : index
    %c0_70 = arith.constant 0 : index
    %109 = vector.load %arg8[%c1_68, %c0_69, %c0_70] : memref<5x80x120xbf16, #tpu.memory_space<vmem>>, vector<1x80x120xbf16>
    %110 = vector.shape_cast %109 : vector<1x80x120xbf16> to vector<80x120xbf16>
    %cst_71 = arith.constant dense<0.000000e+00> : vector<16x120xf32>
    %111 = tpu.matmul %108, %110, %cst_71 {dimension_numbers = #tpu.dot_dimension_numbers<[1], [0], [0], [1], [0, 0, 1, 1], [], []>} : vector<16x80xbf16>, vector<80x120xbf16>, vector<16x120xf32> -> vector<16x120xf32>
    %112 = arith.addf %105, %111 : vector<16x120xf32>
    %113 = vector.extract_strided_slice %94 {offsets = [2, 0, 0], sizes = [1, 16, 80], strides = [1, 1, 1]} : vector<5x16x80xf32> to vector<1x16x80xf32>
    %114 = vector.shape_cast %113 : vector<1x16x80xf32> to vector<16x80xf32>
    %115 = arith.truncf %114 : vector<16x80xf32> to vector<16x80xbf16>
    %c2_72 = arith.constant 2 : index
    %c0_73 = arith.constant 0 : index
    %c0_74 = arith.constant 0 : index
    %116 = vector.load %arg8[%c2_72, %c0_73, %c0_74] : memref<5x80x120xbf16, #tpu.memory_space<vmem>>, vector<1x80x120xbf16>
    %117 = vector.shape_cast %116 : vector<1x80x120xbf16> to vector<80x120xbf16>
    %cst_75 = arith.constant dense<0.000000e+00> : vector<16x120xf32>
    %118 = tpu.matmul %115, %117, %cst_75 {dimension_numbers = #tpu.dot_dimension_numbers<[1], [0], [0], [1], [0, 0, 1, 1], [], []>} : vector<16x80xbf16>, vector<80x120xbf16>, vector<16x120xf32> -> vector<16x120xf32>
    %119 = arith.addf %112, %118 : vector<16x120xf32>
    %120 = vector.extract_strided_slice %94 {offsets = [3, 0, 0], sizes = [1, 16, 80], strides = [1, 1, 1]} : vector<5x16x80xf32> to vector<1x16x80xf32>
    %121 = vector.shape_cast %120 : vector<1x16x80xf32> to vector<16x80xf32>
    %122 = arith.truncf %121 : vector<16x80xf32> to vector<16x80xbf16>
    %c3_76 = arith.constant 3 : index
    %c0_77 = arith.constant 0 : index
    %c0_78 = arith.constant 0 : index
    %123 = vector.load %arg8[%c3_76, %c0_77, %c0_78] : memref<5x80x120xbf16, #tpu.memory_space<vmem>>, vector<1x80x120xbf16>
    %124 = vector.shape_cast %123 : vector<1x80x120xbf16> to vector<80x120xbf16>
    %cst_79 = arith.constant dense<0.000000e+00> : vector<16x120xf32>
    %125 = tpu.matmul %122, %124, %cst_79 {dimension_numbers = #tpu.dot_dimension_numbers<[1], [0], [0], [1], [0, 0, 1, 1], [], []>} : vector<16x80xbf16>, vector<80x120xbf16>, vector<16x120xf32> -> vector<16x120xf32>
    %126 = arith.addf %119, %125 : vector<16x120xf32>
    %127 = vector.extract_strided_slice %94 {offsets = [4, 0, 0], sizes = [1, 16, 80], strides = [1, 1, 1]} : vector<5x16x80xf32> to vector<1x16x80xf32>
    %128 = vector.shape_cast %127 : vector<1x16x80xf32> to vector<16x80xf32>
    %129 = arith.truncf %128 : vector<16x80xf32> to vector<16x80xbf16>
    %c4_80 = arith.constant 4 : index
    %c0_81 = arith.constant 0 : index
    %c0_82 = arith.constant 0 : index
    %130 = vector.load %arg8[%c4_80, %c0_81, %c0_82] : memref<5x80x120xbf16, #tpu.memory_space<vmem>>, vector<1x80x120xbf16>
    %131 = vector.shape_cast %130 : vector<1x80x120xbf16> to vector<80x120xbf16>
    %cst_83 = arith.constant dense<0.000000e+00> : vector<16x120xf32>
    %132 = tpu.matmul %129, %131, %cst_83 {dimension_numbers = #tpu.dot_dimension_numbers<[1], [0], [0], [1], [0, 0, 1, 1], [], []>} : vector<16x80xbf16>, vector<80x120xbf16>, vector<16x120xf32> -> vector<16x120xf32>
    %133 = arith.addf %126, %132 : vector<16x120xf32>
    %cst_84 = arith.constant 0.000000e+00 : f32
    %134 = vector.broadcast %cst_84 : f32 to vector<16x120xf32>
    %135 = arith.maximumf %133, %134 : vector<16x120xf32>
    %136 = arith.truncf %135 : vector<16x120xf32> to vector<16x120xbf16>
    %c0_85 = arith.constant 0 : index
    %c0_86 = arith.constant 0 : index
    %137 = vector.load %arg10[%c0_85, %c0_86] : memref<120x88xbf16, #tpu.memory_space<vmem>>, vector<120x88xbf16>
    %cst_87 = arith.constant dense<0.000000e+00> : vector<16x88xf32>
    %138 = tpu.matmul %136, %137, %cst_87 {dimension_numbers = #tpu.dot_dimension_numbers<[1], [0], [0], [1], [0, 0, 1, 1], [], []>} : vector<16x120xbf16>, vector<120x88xbf16>, vector<16x88xf32> -> vector<16x88xf32>
    %c0_88 = arith.constant 0 : index
    %c0_89 = arith.constant 0 : index
    %139 = vector.load %arg11[%c0_88, %c0_89] : memref<1x88xf32, #tpu.memory_space<vmem>>, vector<1x88xf32>
    %140 = vector.broadcast %139 : vector<1x88xf32> to vector<16x88xf32>
    %141 = arith.addf %138, %140 : vector<16x88xf32>
    %cst_90 = arith.constant 0.000000e+00 : f32
    %142 = vector.broadcast %cst_90 : f32 to vector<16x88xf32>
    %143 = arith.maximumf %141, %142 : vector<16x88xf32>
    %144 = arith.truncf %143 : vector<16x88xf32> to vector<16x88xbf16>
    %c0_91 = arith.constant 0 : index
    %c0_92 = arith.constant 0 : index
    %145 = vector.load %arg12[%c0_91, %c0_92] : memref<88x128xbf16, #tpu.memory_space<vmem>>, vector<88x128xbf16>
    %cst_93 = arith.constant dense<0.000000e+00> : vector<16x128xf32>
    %146 = tpu.matmul %144, %145, %cst_93 {dimension_numbers = #tpu.dot_dimension_numbers<[1], [0], [0], [1], [0, 0, 1, 1], [], []>} : vector<16x88xbf16>, vector<88x128xbf16>, vector<16x128xf32> -> vector<16x128xf32>
    %c0_94 = arith.constant 0 : index
    %c0_95 = arith.constant 0 : index
    %147 = vector.load %arg13[%c0_94, %c0_95] : memref<1x128xf32, #tpu.memory_space<vmem>>, vector<1x128xf32>
    %148 = vector.broadcast %147 : vector<1x128xf32> to vector<16x128xf32>
    %149 = arith.addf %146, %148 : vector<16x128xf32>
    %c0_96 = arith.constant 0 : index
    %c0_97 = arith.constant 0 : index
    %150 = vector.load %arg14[%c0_96, %c0_97] : memref<16x128xf32, #tpu.memory_space<vmem>>, vector<16x128xf32>
    tpu.vector_store %arg14[%c0_96, %c0_97], %149 {strides = array<i32>} : memref<16x128xf32, #tpu.memory_space<vmem>>, vector<16x128xf32>,
    return
  }
  func.func @transform_0(%arg0: i32) -> (i32, i32, i32) {
    %c0_i32 = arith.constant 0 : i32
    %c0_i32_0 = arith.constant 0 : i32
    %c0_i32_1 = arith.constant 0 : i32
    return %c0_i32, %arg0, %c0_i32_0 : i32, i32, i32
  }
  func.func @transform_1(%arg0: i32) -> (i32, i32, i32) {
    %c0_i32 = arith.constant 0 : i32
    %c0_i32_0 = arith.constant 0 : i32
    %c0_i32_1 = arith.constant 0 : i32
    %c0_i32_2 = arith.constant 0 : i32
    return %c0_i32, %c0_i32_0, %c0_i32_1 : i32, i32, i32
  }
  func.func @transform_2(%arg0: i32) -> (i32, i32) {
    %c0_i32 = arith.constant 0 : i32
    %c0_i32_0 = arith.constant 0 : i32
    %c0_i32_1 = arith.constant 0 : i32
    return %c0_i32, %c0_i32_0 : i32, i32
  }
  func.func @transform_3(%arg0: i32) -> (i32, i32) {
    %c0_i32 = arith.constant 0 : i32
    %c0_i32_0 = arith.constant 0 : i32
    %c0_i32_1 = arith.constant 0 : i32
    return %c0_i32, %c0_i32_0 : i32, i32
  }
  func.func @transform_4(%arg0: i32) -> (i32, i32, i32) {
    %c0_i32 = arith.constant 0 : i32
    %c0_i32_0 = arith.constant 0 : i32
    %c0_i32_1 = arith.constant 0 : i32
    %c0_i32_2 = arith.constant 0 : i32
    return %c0_i32, %c0_i32_0, %c0_i32_1 : i32, i32, i32
  }
  func.func @transform_5(%arg0: i32) -> (i32, i32) {
    %c0_i32 = arith.constant 0 : i32
    %c0_i32_0 = arith.constant 0 : i32
    %c0_i32_1 = arith.constant 0 : i32
    return %c0_i32, %c0_i32_0 : i32, i32
  }
  func.func @transform_6(%arg0: i32) -> (i32, i32) {
    %c0_i32 = arith.constant 0 : i32
    %c0_i32_0 = arith.constant 0 : i32
    %c0_i32_1 = arith.constant 0 : i32
    return %c0_i32, %c0_i32_0 : i32, i32
  }
  func.func @transform_7(%arg0: i32) -> (i32, i32, i32) {
    %c0_i32 = arith.constant 0 : i32
    %c0_i32_0 = arith.constant 0 : i32
    %c0_i32_1 = arith.constant 0 : i32
    %c0_i32_2 = arith.constant 0 : i32
    return %c0_i32, %c0_i32_0, %c0_i32_1 : i32, i32, i32
  }
  func.func @transform_8(%arg0: i32) -> (i32, i32) {
    %c0_i32 = arith.constant 0 : i32
    %c0_i32_0 = arith.constant 0 : i32
    %c0_i32_1 = arith.constant 0 : i32
    return %c0_i32, %c0_i32_0 : i32, i32
  }
  func.func @transform_9(%arg0: i32) -> (i32, i32) {
    %c0_i32 = arith.constant 0 : i32
    %c0_i32_0 = arith.constant 0 : i32
    %c0_i32_1 = arith.constant 0 : i32
    return %c0_i32, %c0_i32_0 : i32, i32
  }
  func.func @transform_10(%arg0: i32) -> (i32, i32) {
    %c0_i32 = arith.constant 0 : i32
    %c0_i32_0 = arith.constant 0 : i32
    %c0_i32_1 = arith.constant 0 : i32
    return %c0_i32, %c0_i32_0 : i32, i32
  }
  func.func @transform_11(%arg0: i32) -> (i32, i32) {
    %c0_i32 = arith.constant 0 : i32
    %c0_i32_0 = arith.constant 0 : i32
    %c0_i32_1 = arith.constant 0 : i32
    return %c0_i32, %c0_i32_0 : i32, i32
  }
  func.func @transform_12(%arg0: i32) -> (i32, i32) {
    %c0_i32 = arith.constant 0 : i32
    %c0_i32_0 = arith.constant 0 : i32
    %c0_i32_1 = arith.constant 0 : i32
    return %c0_i32, %c0_i32_0 : i32, i32
  }
  func.func @transform_13(%arg0: i32) -> (i32, i32) {
    %c0_i32 = arith.constant 0 : i32
    %c0_i32_0 = arith.constant 0 : i32
    return %arg0, %c0_i32 : i32, i32
  }
}

</mosaic_0001>

<llo_original>
// kernel: lenet5_forward.1
$region0: #{lenet5_forward.1}
  #allocation0 [shape = 'u32[]', space=smem, size = 0x4, offset = 0x4, fixed_abs, tag = 'smem constant byte address 0x4 - core index']
  #allocation1 [shape = 'u32[144,128]{1,0:T(1,128)}', space=vmem, size = 0x12000, scoped, tag = 'internal scratch']
  %s0 = inlined_call_operand.vmem [shape: bf16[32,16,96], index: 0, kind: input, shape index: {}]
  %s1 = inlined_call_operand.vmem [shape: bf16[5,96,168], index: 1, kind: input, shape index: {}]
  %s2 = inlined_call_operand.vmem [shape: f32[1,168], index: 2, kind: input, shape index: {}]
  %s3 = inlined_call_operand.vmem [shape: bf16[168,88], index: 3, kind: input, shape index: {}]
  %s4 = inlined_call_operand.vmem [shape: bf16[5,88,160], index: 4, kind: input, shape index: {}]
  %s5 = inlined_call_operand.vmem [shape: f32[1,160], index: 5, kind: input, shape index: {}]
  %s6 = inlined_call_operand.vmem [shape: bf16[160,80], index: 6, kind: input, shape index: {}]
  %s7 = inlined_call_operand.vmem [shape: bf16[5,80,120], index: 7, kind: input, shape index: {}]
  %s8 = inlined_call_operand.vmem [shape: f32[1,120], index: 8, kind: input, shape index: {}]
  %s9 = inlined_call_operand.vmem [shape: bf16[120,88], index: 9, kind: input, shape index: {}]
  %s10 = inlined_call_operand.vmem [shape: f32[1,88], index: 10, kind: input, shape index: {}]
  %s11 = inlined_call_operand.vmem [shape: bf16[88,128], index: 11, kind: input, shape index: {}]
  %s12 = inlined_call_operand.vmem [shape: f32[1,128], index: 12, kind: input, shape index: {}]
  %s13 = inlined_call_operand.vmem [shape: f32[16,128], index: 13, kind: output, shape index: {}]
  %s14 = sld [smem:[#allocation0]]
  $region62: #{lenet5_forward.1} parent=0
    _
  %s16 = ssub.s32 1, %s14
  %s17 = scalar_select 0, %s16, %s14
  // Predicated region
  $region2: #{lenet5_forward.1} parent=0 // pred_check
    _
  $region3: #{lenet5_forward.1} parent=0 // pred_check_branch
    %19 = sbr.rel (0) target = $region5
  $region4: #{lenet5_forward.1} parent=0 // pred_region
    _
  $region5: #{lenet5_forward.1} parent=0 // pred_fallthru
    _
  // Predicated region
  $region6: #{lenet5_forward.1} parent=0 // pred_check
    _
  $region7: #{lenet5_forward.1} parent=0 // pred_check_branch
    %21 = sbr.rel (0) target = $region9
  $region8: #{lenet5_forward.1} parent=0 // pred_region
    _
  $region9: #{lenet5_forward.1} parent=0 // pred_fallthru
    _
  // Predicated region
  $region10: #{lenet5_forward.1} parent=0 // pred_check
    _
  $region11: #{lenet5_forward.1} parent=0 // pred_check_branch
    %23 = sbr.rel (0) target = $region13
  $region12: #{lenet5_forward.1} parent=0 // pred_region
    _
  $region13: #{lenet5_forward.1} parent=0 // pred_fallthru
    _
  // Predicated region
  $region14: #{lenet5_forward.1} parent=0 // pred_check
    _
  $region15: #{lenet5_forward.1} parent=0 // pred_check_branch
    %25 = sbr.rel (0) target = $region17
  $region16: #{lenet5_forward.1} parent=0 // pred_region
    _
  $region17: #{lenet5_forward.1} parent=0 // pred_fallthru
    _
  // Predicated region
  $region18: #{lenet5_forward.1} parent=0 // pred_check
    _
  $region19: #{lenet5_forward.1} parent=0 // pred_check_branch
    %27 = sbr.rel (0) target = $region21
  $region20: #{lenet5_forward.1} parent=0 // pred_region
    _
  $region21: #{lenet5_forward.1} parent=0 // pred_fallthru
    _
  // Predicated region
  $region22: #{lenet5_forward.1} parent=0 // pred_check
    _
  $region23: #{lenet5_forward.1} parent=0 // pred_check_branch
    %29 = sbr.rel (0) target = $region25
  $region24: #{lenet5_forward.1} parent=0 // pred_region
    _
  $region25: #{lenet5_forward.1} parent=0 // pred_fallthru
    _
  // Predicated region
  $region26: #{lenet5_forward.1} parent=0 // pred_check
    _
  $region27: #{lenet5_forward.1} parent=0 // pred_check_branch
    %31 = sbr.rel (0) target = $region29
  $region28: #{lenet5_forward.1} parent=0 // pred_region
    _
  $region29: #{lenet5_forward.1} parent=0 // pred_fallthru
    _
  // Predicated region
  $region30: #{lenet5_forward.1} parent=0 // pred_check
    _
  $region31: #{lenet5_forward.1} parent=0 // pred_check_branch
    %33 = sbr.rel (0) target = $region33
  $region32: #{lenet5_forward.1} parent=0 // pred_region
    _
  $region33: #{lenet5_forward.1} parent=0 // pred_fallthru
    _
  // Predicated region
  $region34: #{lenet5_forward.1} parent=0 // pred_check
    _
  $region35: #{lenet5_forward.1} parent=0 // pred_check_branch
    %35 = sbr.rel (0) target = $region37
  $region36: #{lenet5_forward.1} parent=0 // pred_region
    _
  $region37: #{lenet5_forward.1} parent=0 // pred_fallthru
    _
  // Predicated region
  $region38: #{lenet5_forward.1} parent=0 // pred_check
    _
  $region39: #{lenet5_forward.1} parent=0 // pred_check_branch
    %37 = sbr.rel (0) target = $region41
  $region40: #{lenet5_forward.1} parent=0 // pred_region
    _
  $region41: #{lenet5_forward.1} parent=0 // pred_fallthru
    _
  // Predicated region
  $region42: #{lenet5_forward.1} parent=0 // pred_check
    _
  $region43: #{lenet5_forward.1} parent=0 // pred_check_branch
    %39 = sbr.rel (0) target = $region45
  $region44: #{lenet5_forward.1} parent=0 // pred_region
    _
  $region45: #{lenet5_forward.1} parent=0 // pred_fallthru
    _
  // Predicated region
  $region46: #{lenet5_forward.1} parent=0 // pred_check
    _
  $region47: #{lenet5_forward.1} parent=0 // pred_check_branch
    %41 = sbr.rel (0) target = $region49
  $region48: #{lenet5_forward.1} parent=0 // pred_region
    _
  $region49: #{lenet5_forward.1} parent=0 // pred_fallthru
    _
  // Predicated region
  $region50: #{lenet5_forward.1} parent=0 // pred_check
    _
  $region51: #{lenet5_forward.1} parent=0 // pred_check_branch
    %43 = sbr.rel (0) target = $region53
  $region52: #{lenet5_forward.1} parent=0 // pred_region
    _
  $region53: #{lenet5_forward.1} parent=0 // pred_fallthru
    _
  %v45 = vld [vmem:[%s0] sm:$0xf]
  %v46 = vld [vmem:[%s0 + $0x4] sm:$0xf]
  %v47 = vld [vmem:[%s0 + $0x8] sm:$0xf]
  %v48 = vld [vmem:[%s0 + $0xc] sm:$0xf]
  %v49 = vld [vmem:[%s0 + $0x10] sm:$0xf]
  %v50 = vld [vmem:[%s0 + $0x14] sm:$0xf]
  %v51 = vld [vmem:[%s0 + $0x18] sm:$0xf]
  %v52 = vld [vmem:[%s0 + $0x1c] sm:$0xf]
  %v53 = vld [vmem:[%s0 + $0x20] sm:$0xf]
  %v54 = vld [vmem:[%s0 + $0x24] sm:$0xf]
  %v55 = vld [vmem:[%s0 + $0x28] sm:$0xf]
  %v56 = vld [vmem:[%s0 + $0x2c] sm:$0xf]
  %v57 = vld [vmem:[%s0 + $0x30] sm:$0xf]
  %v58 = vld [vmem:[%s0 + $0x34] sm:$0xf]
  %v59 = vld [vmem:[%s0 + $0x38] sm:$0xf]
  %v60 = vld [vmem:[%s0 + $0x3c] sm:$0xf]
  %v61 = vld [vmem:[%s0 + $0x40] sm:$0xf]
  %v62 = vld [vmem:[%s0 + $0x44] sm:$0xf]
  %v63 = vld [vmem:[%s0 + $0x48] sm:$0xf]
  %v64 = vld [vmem:[%s0 + $0x4c] sm:$0xf]
  %v65 = vld [vmem:[%s0 + $0x50] sm:$0xf]
  %v66 = vld [vmem:[%s0 + $0x54] sm:$0xf]
  %v67 = vld [vmem:[%s0 + $0x58] sm:$0xf]
  %v68 = vld [vmem:[%s0 + $0x5c] sm:$0xf]
  %v69 = vld [vmem:[%s0 + $0x60] sm:$0xf]
  %v70 = vld [vmem:[%s0 + $0x64] sm:$0xf]
  %v71 = vld [vmem:[%s0 + $0x68] sm:$0xf]
  %v72 = vld [vmem:[%s0 + $0x6c] sm:$0xf]
  %v73 = vld [vmem:[%s0 + $0x70] sm:$0xf]
  %v74 = vld [vmem:[%s0 + $0x74] sm:$0xf]
  %v75 = vld [vmem:[%s0 + $0x78] sm:$0xf]
  %v76 = vld [vmem:[%s0 + $0x7c] sm:$0xf]
  %v77 = vld [vmem:[%s0 + $0x80] sm:$0xf]
  %v78 = vld [vmem:[%s0 + $0x84] sm:$0xf]
  %v79 = vld [vmem:[%s0 + $0x88] sm:$0xf]
  %v80 = vld [vmem:[%s0 + $0x8c] sm:$0xf]
  %v81 = vld [vmem:[%s0 + $0x90] sm:$0xf]
  %v82 = vld [vmem:[%s0 + $0x94] sm:$0xf]
  %v83 = vld [vmem:[%s0 + $0x98] sm:$0xf]
  %v84 = vld [vmem:[%s0 + $0x9c] sm:$0xf]
  %v85 = vld [vmem:[%s0 + $0xa0] sm:$0xf]
  %v86 = vld [vmem:[%s0 + $0xa4] sm:$0xf]
  %v87 = vld [vmem:[%s0 + $0xa8] sm:$0xf]
  %v88 = vld [vmem:[%s0 + $0xac] sm:$0xf]
  %v89 = vld [vmem:[%s0 + $0xb0] sm:$0xf]
  %v90 = vld [vmem:[%s0 + $0xb4] sm:$0xf]
  %v91 = vld [vmem:[%s0 + $0xb8] sm:$0xf]
  %v92 = vld [vmem:[%s0 + $0xbc] sm:$0xf]
  %v93 = vld [vmem:[%s0 + $0xc0] sm:$0xf]
  %v94 = vld [vmem:[%s0 + $0xc4] sm:$0xf]
  %v95 = vld [vmem:[%s0 + $0xc8] sm:$0xf]
  %v96 = vld [vmem:[%s0 + $0xcc] sm:$0xf]
  %v97 = vld [vmem:[%s0 + $0xd0] sm:$0xf]
  %v98 = vld [vmem:[%s0 + $0xd4] sm:$0xf]
  %v99 = vld [vmem:[%s0 + $0xd8] sm:$0xf]
  %v100 = vld [vmem:[%s0 + $0xdc] sm:$0xf]
  %v101 = vld [vmem:[%s1] sm:$0xff]
  %v102 = vld [vmem:[%s1 + $0x8] sm:$0xff]
  %v103 = vld [vmem:[%s1 + $0x10] sm:$0xff]
  %v104 = vld [vmem:[%s1 + $0x18] sm:$0xff]
  %v105 = vld [vmem:[%s1 + $0x20] sm:$0xff]
  %v106 = vld [vmem:[%s1 + $0x28] sm:$0xff]
  %v107 = vld [vmem:[%s1 + $0x30] sm:$0xff]
  %v108 = vld [vmem:[%s1 + $0x38] sm:$0xff]
  %v109 = vld [vmem:[%s1 + $0x40] sm:$0xff]
  %v110 = vld [vmem:[%s1 + $0x48] sm:$0xff]
  %v111 = vld [vmem:[%s1 + $0x50] sm:$0xff]
  %v112 = vld [vmem:[%s1 + $0x58] sm:$0xff]
  %s113 = scalar_lea.vmem %s0, 8
  %v114 = vld [vmem:[%s113] sm:$0xf]
  %v115 = vld [vmem:[%s113 + $0x4] sm:$0xf]
  %v116 = vld [vmem:[%s113 + $0x8] sm:$0xf]
  %v117 = vld [vmem:[%s113 + $0xc] sm:$0xf]
  %v118 = vld [vmem:[%s113 + $0x10] sm:$0xf]
  %v119 = vld [vmem:[%s113 + $0x14] sm:$0xf]
  %v120 = vld [vmem:[%s113 + $0x18] sm:$0xf]
  %v121 = vld [vmem:[%s113 + $0x1c] sm:$0xf]
  %v122 = vld [vmem:[%s113 + $0x20] sm:$0xf]
  %v123 = vld [vmem:[%s113 + $0x24] sm:$0xf]
  %v124 = vld [vmem:[%s113 + $0x28] sm:$0xf]
  %v125 = vld [vmem:[%s113 + $0x2c] sm:$0xf]
  %v126 = vld [vmem:[%s113 + $0x30] sm:$0xf]
  %v127 = vld [vmem:[%s113 + $0x34] sm:$0xf]
  %v128 = vld [vmem:[%s113 + $0x38] sm:$0xf]
  %v129 = vld [vmem:[%s113 + $0x3c] sm:$0xf]
  %v130 = vld [vmem:[%s113 + $0x40] sm:$0xf]
  %v131 = vld [vmem:[%s113 + $0x44] sm:$0xf]
  %v132 = vld [vmem:[%s113 + $0x48] sm:$0xf]
  %v133 = vld [vmem:[%s113 + $0x4c] sm:$0xf]
  %v134 = vld [vmem:[%s113 + $0x50] sm:$0xf]
  %v135 = vld [vmem:[%s113 + $0x54] sm:$0xf]
  %v136 = vld [vmem:[%s113 + $0x58] sm:$0xf]
  %v137 = vld [vmem:[%s113 + $0x5c] sm:$0xf]
  %v138 = vld [vmem:[%s113 + $0x60] sm:$0xf]
  %v139 = vld [vmem:[%s113 + $0x64] sm:$0xf]
  %v140 = vld [vmem:[%s113 + $0x68] sm:$0xf]
  %v141 = vld [vmem:[%s113 + $0x6c] sm:$0xf]
  %v142 = vld [vmem:[%s113 + $0x70] sm:$0xf]
  %v143 = vld [vmem:[%s113 + $0x74] sm:$0xf]
  %v144 = vld [vmem:[%s113 + $0x78] sm:$0xf]
  %v145 = vld [vmem:[%s113 + $0x7c] sm:$0xf]
  %v146 = vld [vmem:[%s113 + $0x80] sm:$0xf]
  %v147 = vld [vmem:[%s113 + $0x84] sm:$0xf]
  %v148 = vld [vmem:[%s113 + $0x88] sm:$0xf]
  %v149 = vld [vmem:[%s113 + $0x8c] sm:$0xf]
  %v150 = vld [vmem:[%s113 + $0x90] sm:$0xf]
  %v151 = vld [vmem:[%s113 + $0x94] sm:$0xf]
  %v152 = vld [vmem:[%s113 + $0x98] sm:$0xf]
  %v153 = vld [vmem:[%s113 + $0x9c] sm:$0xf]
  %v154 = vld [vmem:[%s113 + $0xa0] sm:$0xf]
  %v155 = vld [vmem:[%s113 + $0xa4] sm:$0xf]
  %v156 = vld [vmem:[%s113 + $0xa8] sm:$0xf]
  %v157 = vld [vmem:[%s113 + $0xac] sm:$0xf]
  %v158 = vld [vmem:[%s113 + $0xb0] sm:$0xf]
  %v159 = vld [vmem:[%s113 + $0xb4] sm:$0xf]
  %v160 = vld [vmem:[%s113 + $0xb8] sm:$0xf]
  %v161 = vld [vmem:[%s113 + $0xbc] sm:$0xf]
  %v162 = vld [vmem:[%s113 + $0xc0] sm:$0xf]
  %v163 = vld [vmem:[%s113 + $0xc4] sm:$0xf]
  %v164 = vld [vmem:[%s113 + $0xc8] sm:$0xf]
  %v165 = vld [vmem:[%s113 + $0xcc] sm:$0xf]
  %v166 = vld [vmem:[%s113 + $0xd0] sm:$0xf]
  %v167 = vld [vmem:[%s113 + $0xd4] sm:$0xf]
  %v168 = vld [vmem:[%s113 + $0xd8] sm:$0xf]
  %v169 = vld [vmem:[%s113 + $0xdc] sm:$0xf]
  %s170 = scalar_lea.vmem %s1, 96
  %v171 = vld [vmem:[%s170] sm:$0xff]
  %v172 = vld [vmem:[%s170 + $0x8] sm:$0xff]
  %v173 = vld [vmem:[%s170 + $0x10] sm:$0xff]
  %v174 = vld [vmem:[%s170 + $0x18] sm:$0xff]
  %v175 = vld [vmem:[%s170 + $0x20] sm:$0xff]
  %v176 = vld [vmem:[%s170 + $0x28] sm:$0xff]
  %v177 = vld [vmem:[%s170 + $0x30] sm:$0xff]
  %v178 = vld [vmem:[%s170 + $0x38] sm:$0xff]
  %v179 = vld [vmem:[%s170 + $0x40] sm:$0xff]
  %v180 = vld [vmem:[%s170 + $0x48] sm:$0xff]
  %v181 = vld [vmem:[%s170 + $0x50] sm:$0xff]
  %v182 = vld [vmem:[%s170 + $0x58] sm:$0xff]
  %v239 = vunpack.c.l.b16 %v114
  %v240 = vunpack.c.l.b16 %v115
  %v241 = vunpack.c.l.b16 %v116
  %v242 = vunpack.c.l.b16 %v117
  %v243 = vunpack.c.l.b16 %v118
  %v244 = vunpack.c.l.b16 %v119
  %v245 = vunpack.c.l.b16 %v120
  %v246 = vunpack.c.l.b16 %v121
  %v247 = vunpack.c.l.b16 %v122
  %v248 = vunpack.c.l.b16 %v123
  %v249 = vunpack.c.l.b16 %v124
  %v250 = vunpack.c.l.b16 %v125
  %v251 = vunpack.c.l.b16 %v126
  %v252 = vunpack.c.l.b16 %v127
  %v253 = vunpack.c.l.b16 %v128
  %v254 = vunpack.c.l.b16 %v129
  %v255 = vunpack.c.l.b16 %v130
  %v256 = vunpack.c.l.b16 %v131
  %v257 = vunpack.c.l.b16 %v132
  %v258 = vunpack.c.l.b16 %v133
  %v259 = vunpack.c.l.b16 %v134
  %v260 = vunpack.c.l.b16 %v135
  %v261 = vunpack.c.l.b16 %v136
  %v262 = vunpack.c.l.b16 %v137
  %v263 = vunpack.c.l.b16 %v138
  %v264 = vunpack.c.l.b16 %v139
  %v265 = vunpack.c.l.b16 %v140
  %v266 = vunpack.c.l.b16 %v141
  %v267 = vunpack.c.l.b16 %v142
  %v268 = vunpack.c.l.b16 %v143
  %v269 = vunpack.c.l.b16 %v144
  %v270 = vunpack.c.l.b16 %v145
  %v271 = vunpack.c.l.b16 %v146
  %v272 = vunpack.c.l.b16 %v147
  %v273 = vunpack.c.l.b16 %v148
  %v274 = vunpack.c.l.b16 %v149
  %v275 = vunpack.c.l.b16 %v150
  %v276 = vunpack.c.l.b16 %v151
  %v277 = vunpack.c.l.b16 %v152
  %v278 = vunpack.c.l.b16 %v153
  %v279 = vunpack.c.l.b16 %v154
  %v280 = vunpack.c.l.b16 %v155
  %v281 = vunpack.c.l.b16 %v156
  %v282 = vunpack.c.l.b16 %v157
  %v283 = vunpack.c.l.b16 %v158
  %v284 = vunpack.c.l.b16 %v159
  %v285 = vunpack.c.l.b16 %v160
  %v286 = vunpack.c.l.b16 %v161
  %v287 = vunpack.c.l.b16 %v162
  %v288 = vunpack.c.l.b16 %v163
  %v289 = vunpack.c.l.b16 %v164
  %v290 = vunpack.c.l.b16 %v165
  %v291 = vunpack.c.l.b16 %v166
  %v292 = vunpack.c.l.b16 %v167
  %v293 = vunpack.c.l.b16 %v168
  %v294 = vunpack.c.l.b16 %v169
  %v295 = vpack.c.b16 %v240, %v239
  %v296 = vpack.c.b16 %v242, %v241
  %v297 = vpack.c.b16 %v244, %v243
  %v298 = vpack.c.b16 %v246, %v245
  %v299 = vpack.c.b16 %v248, %v247
  %v300 = vpack.c.b16 %v250, %v249
  %v301 = vpack.c.b16 %v252, %v251
  %v302 = vpack.c.b16 %v254, %v253
  %v303 = vpack.c.b16 %v256, %v255
  %v304 = vpack.c.b16 %v258, %v257
  %v305 = vpack.c.b16 %v260, %v259
  %v306 = vpack.c.b16 %v262, %v261
  %v307 = vpack.c.b16 %v264, %v263
  %v308 = vpack.c.b16 %v266, %v265
  %v309 = vpack.c.b16 %v268, %v267
  %v310 = vpack.c.b16 %v270, %v269
  %v311 = vpack.c.b16 %v272, %v271
  %v312 = vpack.c.b16 %v274, %v273
  %v313 = vpack.c.b16 %v276, %v275
  %v314 = vpack.c.b16 %v278, %v277
  %v315 = vpack.c.b16 %v280, %v279
  %v316 = vpack.c.b16 %v282, %v281
  %v317 = vpack.c.b16 %v284, %v283
  %v318 = vpack.c.b16 %v286, %v285
  %v319 = vpack.c.b16 %v288, %v287
  %v320 = vpack.c.b16 %v290, %v289
  %v321 = vpack.c.b16 %v292, %v291
  %v322 = vpack.c.b16 %v294, %v293
  %v335 = vunpack.c.l.b16 %v171
  %v336 = vunpack.c.h.b16 %v171
  %v337 = vunpack.c.l.b16 %v172
  %v338 = vunpack.c.h.b16 %v172
  %v339 = vunpack.c.l.b16 %v173
  %v340 = vunpack.c.h.b16 %v173
  %v341 = vunpack.c.l.b16 %v174
  %v342 = vunpack.c.h.b16 %v174
  %v343 = vunpack.c.l.b16 %v175
  %v344 = vunpack.c.h.b16 %v175
  %v345 = vunpack.c.l.b16 %v176
  %v346 = vunpack.c.h.b16 %v176
  %v347 = vunpack.c.l.b16 %v177
  %v348 = vunpack.c.h.b16 %v177
  %v349 = vunpack.c.l.b16 %v178
  %v350 = vunpack.c.h.b16 %v178
  %v351 = vunpack.c.l.b16 %v179
  %v352 = vunpack.c.h.b16 %v179
  %v353 = vunpack.c.l.b16 %v180
  %v354 = vunpack.c.h.b16 %v180
  %v355 = vunpack.c.l.b16 %v181
  %v356 = vunpack.c.h.b16 %v181
  %v357 = vunpack.c.l.b16 %v182
  %v358 = vunpack.c.h.b16 %v182
  %v359 = vpack.c.b16 %v337, %v335
  %v360 = vpack.c.b16 %v338, %v336
  %v361 = vpack.c.b16 %v341, %v339
  %v362 = vpack.c.b16 %v342, %v340
  %v363 = vpack.c.b16 %v345, %v343
  %v364 = vpack.c.b16 %v346, %v344
  %v365 = vpack.c.b16 %v349, %v347
  %v366 = vpack.c.b16 %v350, %v348
  %v367 = vpack.c.b16 %v353, %v351
  %v368 = vpack.c.b16 %v354, %v352
  %v369 = vpack.c.b16 %v357, %v355
  %v370 = vpack.c.b16 %v358, %v356
  %vm383 = vcmask 785408
  %v385 = vsel %vm383, %v295, 0
  %v388 = vsel %vm383, %v296, 0
  %v391 = vsel %vm383, %v297, 0
  %v394 = vsel %vm383, %v298, 0
  %v397 = vsel %vm383, %v299, 0
  %v400 = vsel %vm383, %v300, 0
  %v403 = vsel %vm383, %v301, 0
  %v406 = vsel %vm383, %v302, 0
  %v409 = vsel %vm383, %v303, 0
  %v412 = vsel %vm383, %v304, 0
  %v415 = vsel %vm383, %v305, 0
  %v418 = vsel %vm383, %v306, 0
  %v421 = vsel %vm383, %v307, 0
  %v424 = vsel %vm383, %v308, 0
  %v427 = vsel %vm383, %v309, 0
  %v430 = vsel %vm383, %v310, 0
  %v433 = vsel %vm383, %v311, 0
  %v436 = vsel %vm383, %v312, 0
  %v439 = vsel %vm383, %v313, 0
  %v442 = vsel %vm383, %v314, 0
  %v445 = vsel %vm383, %v315, 0
  %v448 = vsel %vm383, %v316, 0
  %v451 = vsel %vm383, %v317, 0
  %v454 = vsel %vm383, %v318, 0
  %v457 = vsel %vm383, %v319, 0
  %v460 = vsel %vm383, %v320, 0
  %v463 = vsel %vm383, %v321, 0
  %v466 = vsel %vm383, %v322, 0
  %468 = vmatprep.subr.bf16.mxu0 %v360
  %469 = vmatpush1.bf16.msra.mxu0 %v359
  %470 = vmatprep.subr.bf16.mxu0 %v362
  %471 = vmatpush1.bf16.msra.mxu0 %v361
  %472 = vmatprep.subr.bf16.mxu0 %v364
  %473 = vmatpush1.bf16.msra.mxu0 %v363
  %474 = vmatprep.subr.bf16.mxu0 %v366
  %475 = vmatpush1.bf16.msra.mxu0 %v365
  %476 = vmatprep.subr.bf16.mxu0 %v368
  %477 = vmatpush1.bf16.msra.mxu0 %v367
  %478 = vmatprep.subr.bf16.mxu0 %v370
  %479 = vmatpush1.bf16.msra.mxu0 %v369
  %480 = vmatprep.subr.bf16.mxu0 0
  %481 = vmatpush1.bf16.msra.mxu0 0
  %482 = vmatprep.subr.bf16.mxu0 0
  %483 = vmatpush1.bf16.msra.mxu0 0
  %484 = vmatprep.subr.bf16.mxu0 0
  %485 = vmatpush1.bf16.msra.mxu0 0
  %486 = vmatprep.subr.bf16.mxu0 0
  %487 = vmatpush1.bf16.msra.mxu0 0
  %488 = vmatprep.subr.bf16.mxu0 0
  %489 = vmatpush1.bf16.msra.mxu0 0
  %490 = vmatprep.subr.bf16.mxu0 0
  %491 = vmatpush1.bf16.msra.mxu0 0
  %492 = vmatprep.subr.bf16.mxu0 0
  %493 = vmatpush1.bf16.msra.mxu0 0
  %494 = vmatprep.subr.bf16.mxu0 0
  %495 = vmatpush1.bf16.msra.mxu0 0
  %496 = vmatprep.subr.bf16.mxu0 0
  %497 = vmatpush1.bf16.msra.mxu0 0
  %498 = vmatprep.subr.bf16.mxu0 0
  %499 = vmatpush1.bf16.msra.mxu0 0
  %500 = vmatprep.mubr.bf16.mxu0 0
  %501 = vmatmul.mubr.bf16.gmra.mrb[0].mxu0 %v385
  %v502 = vpop.f32.mrb[0].mxu0
  %v503 = vadd.f32 0.0, %v502
  %v504 = vpop.f32.mrb[0].mxu0
  %v505 = vadd.f32 0.0, %v504
  %v506 = vpop.f32.mrb[0].mxu0
  %v507 = vadd.f32 0.0, %v506
  %v508 = vpop.f32.mrb[0].mxu0
  %v509 = vadd.f32 0.0, %v508
  %510 = vmatprep.mubr.bf16.mxu0 0
  %511 = vmatmul.mubr.bf16.gmra.mrb[0].mxu0 %v388
  %v512 = vpop.f32.mrb[0].mxu0
  %v513 = vadd.f32 0.0, %v512
  %v514 = vpop.f32.mrb[0].mxu0
  %v515 = vadd.f32 0.0, %v514
  %v516 = vpop.f32.mrb[0].mxu0
  %v517 = vadd.f32 0.0, %v516
  %v518 = vpop.f32.mrb[0].mxu0
  %v519 = vadd.f32 0.0, %v518
  %520 = vmatprep.mubr.bf16.mxu0 0
  %521 = vmatmul.mubr.bf16.gmra.mrb[0].mxu0 %v391
  %v522 = vpop.f32.mrb[0].mxu0
  %v523 = vadd.f32 0.0, %v522
  %v524 = vpop.f32.mrb[0].mxu0
  %v525 = vadd.f32 0.0, %v524
  %v526 = vpop.f32.mrb[0].mxu0
  %v527 = vadd.f32 0.0, %v526
  %v528 = vpop.f32.mrb[0].mxu0
  %v529 = vadd.f32 0.0, %v528
  %530 = vmatprep.mubr.bf16.mxu0 0
  %531 = vmatmul.mubr.bf16.gmra.mrb[0].mxu0 %v394
  %v532 = vpop.f32.mrb[0].mxu0
  %v533 = vadd.f32 0.0, %v532
  %v534 = vpop.f32.mrb[0].mxu0
  %v535 = vadd.f32 0.0, %v534
  %v536 = vpop.f32.mrb[0].mxu0
  %v537 = vadd.f32 0.0, %v536
  %v538 = vpop.f32.mrb[0].mxu0
  %v539 = vadd.f32 0.0, %v538
  %540 = vmatprep.mubr.bf16.mxu0 0
  %541 = vmatmul.mubr.bf16.gmra.mrb[0].mxu0 %v397
  %v542 = vpop.f32.mrb[0].mxu0
  %v543 = vadd.f32 0.0, %v542
  %v544 = vpop.f32.mrb[0].mxu0
  %v545 = vadd.f32 0.0, %v544
  %v546 = vpop.f32.mrb[0].mxu0
  %v547 = vadd.f32 0.0, %v546
  %v548 = vpop.f32.mrb[0].mxu0
  %v549 = vadd.f32 0.0, %v548
  %550 = vmatprep.mubr.bf16.mxu0 0
  %551 = vmatmul.mubr.bf16.gmra.mrb[0].mxu0 %v400
  %v552 = vpop.f32.mrb[0].mxu0
  %v553 = vadd.f32 0.0, %v552
  %v554 = vpop.f32.mrb[0].mxu0
  %v555 = vadd.f32 0.0, %v554
  %v556 = vpop.f32.mrb[0].mxu0
  %v557 = vadd.f32 0.0, %v556
  %v558 = vpop.f32.mrb[0].mxu0
  %v559 = vadd.f32 0.0, %v558
  %560 = vmatprep.mubr.bf16.mxu0 0
  %561 = vmatmul.mubr.bf16.gmra.mrb[0].mxu0 %v403
  %v562 = vpop.f32.mrb[0].mxu0
  %v563 = vadd.f32 0.0, %v562
  %v564 = vpop.f32.mrb[0].mxu0
  %v565 = vadd.f32 0.0, %v564
  %v566 = vpop.f32.mrb[0].mxu0
  %v567 = vadd.f32 0.0, %v566
  %v568 = vpop.f32.mrb[0].mxu0
  %v569 = vadd.f32 0.0, %v568
  %570 = vmatprep.mubr.bf16.mxu0 0
  %571 = vmatmul.mubr.bf16.gmra.mrb[0].mxu0 %v406
  %v572 = vpop.f32.mrb[0].mxu0
  %v573 = vadd.f32 0.0, %v572
  %v574 = vpop.f32.mrb[0].mxu0
  %v575 = vadd.f32 0.0, %v574
  %v576 = vpop.f32.mrb[0].mxu0
  %v577 = vadd.f32 0.0, %v576
  %v578 = vpop.f32.mrb[0].mxu0
  %v579 = vadd.f32 0.0, %v578
  %580 = vmatprep.mubr.bf16.mxu0 0
  %581 = vmatmul.mubr.bf16.gmra.mrb[0].mxu0 %v409
  %v582 = vpop.f32.mrb[0].mxu0
  %v583 = vadd.f32 0.0, %v582
  %v584 = vpop.f32.mrb[0].mxu0
  %v585 = vadd.f32 0.0, %v584
  %v586 = vpop.f32.mrb[0].mxu0
  %v587 = vadd.f32 0.0, %v586
  %v588 = vpop.f32.mrb[0].mxu0
  %v589 = vadd.f32 0.0, %v588
  %590 = vmatprep.mubr.bf16.mxu0 0
  %591 = vmatmul.mubr.bf16.gmra.mrb[0].mxu0 %v412
  %v592 = vpop.f32.mrb[0].mxu0
  %v593 = vadd.f32 0.0, %v592
  %v594 = vpop.f32.mrb[0].mxu0
  %v595 = vadd.f32 0.0, %v594
  %v596 = vpop.f32.mrb[0].mxu0
  %v597 = vadd.f32 0.0, %v596
  %v598 = vpop.f32.mrb[0].mxu0
  %v599 = vadd.f32 0.0, %v598
  %600 = vmatprep.mubr.bf16.mxu0 0
  %601 = vmatmul.mubr.bf16.gmra.mrb[0].mxu0 %v415
  %v602 = vpop.f32.mrb[0].mxu0
  %v603 = vadd.f32 0.0, %v602
  %v604 = vpop.f32.mrb[0].mxu0
  %v605 = vadd.f32 0.0, %v604
  %v606 = vpop.f32.mrb[0].mxu0
  %v607 = vadd.f32 0.0, %v606
  %v608 = vpop.f32.mrb[0].mxu0
  %v609 = vadd.f32 0.0, %v608
  %610 = vmatprep.mubr.bf16.mxu0 0
  %611 = vmatmul.mubr.bf16.gmra.mrb[0].mxu0 %v418
  %v612 = vpop.f32.mrb[0].mxu0
  %v613 = vadd.f32 0.0, %v612
  %v614 = vpop.f32.mrb[0].mxu0
  %v615 = vadd.f32 0.0, %v614
  %v616 = vpop.f32.mrb[0].mxu0
  %v617 = vadd.f32 0.0, %v616
  %v618 = vpop.f32.mrb[0].mxu0
  %v619 = vadd.f32 0.0, %v618
  %620 = vmatprep.mubr.bf16.mxu0 0
  %621 = vmatmul.mubr.bf16.gmra.mrb[0].mxu0 %v421
  %v622 = vpop.f32.mrb[0].mxu0
  %v623 = vadd.f32 0.0, %v622
  %v624 = vpop.f32.mrb[0].mxu0
  %v625 = vadd.f32 0.0, %v624
  %v626 = vpop.f32.mrb[0].mxu0
  %v627 = vadd.f32 0.0, %v626
  %v628 = vpop.f32.mrb[0].mxu0
  %v629 = vadd.f32 0.0, %v628
  %630 = vmatprep.mubr.bf16.mxu0 0
  %631 = vmatmul.mubr.bf16.gmra.mrb[0].mxu0 %v424
  %v632 = vpop.f32.mrb[0].mxu0
  %v633 = vadd.f32 0.0, %v632
  %v634 = vpop.f32.mrb[0].mxu0
  %v635 = vadd.f32 0.0, %v634
  %v636 = vpop.f32.mrb[0].mxu0
  %v637 = vadd.f32 0.0, %v636
  %v638 = vpop.f32.mrb[0].mxu0
  %v639 = vadd.f32 0.0, %v638
  %640 = vmatprep.mubr.bf16.mxu0 0
  %641 = vmatmul.mubr.bf16.gmra.mrb[0].mxu0 %v427
  %v642 = vpop.f32.mrb[0].mxu0
  %v643 = vadd.f32 0.0, %v642
  %v644 = vpop.f32.mrb[0].mxu0
  %v645 = vadd.f32 0.0, %v644
  %v646 = vpop.f32.mrb[0].mxu0
  %v647 = vadd.f32 0.0, %v646
  %v648 = vpop.f32.mrb[0].mxu0
  %v649 = vadd.f32 0.0, %v648
  %650 = vmatprep.mubr.bf16.mxu0 0
  %651 = vmatmul.mubr.bf16.gmra.mrb[0].mxu0 %v430
  %v652 = vpop.f32.mrb[0].mxu0
  %v653 = vadd.f32 0.0, %v652
  %v654 = vpop.f32.mrb[0].mxu0
  %v655 = vadd.f32 0.0, %v654
  %v656 = vpop.f32.mrb[0].mxu0
  %v657 = vadd.f32 0.0, %v656
  %v658 = vpop.f32.mrb[0].mxu0
  %v659 = vadd.f32 0.0, %v658
  %660 = vmatprep.mubr.bf16.mxu0 0
  %661 = vmatmul.mubr.bf16.gmra.mrb[0].mxu0 %v433
  %v662 = vpop.f32.mrb[0].mxu0
  %v663 = vadd.f32 0.0, %v662
  %v664 = vpop.f32.mrb[0].mxu0
  %v665 = vadd.f32 0.0, %v664
  %v666 = vpop.f32.mrb[0].mxu0
  %v667 = vadd.f32 0.0, %v666
  %v668 = vpop.f32.mrb[0].mxu0
  %v669 = vadd.f32 0.0, %v668
  %670 = vmatprep.mubr.bf16.mxu0 0
  %671 = vmatmul.mubr.bf16.gmra.mrb[0].mxu0 %v436
  %v672 = vpop.f32.mrb[0].mxu0
  %v673 = vadd.f32 0.0, %v672
  %v674 = vpop.f32.mrb[0].mxu0
  %v675 = vadd.f32 0.0, %v674
  %v676 = vpop.f32.mrb[0].mxu0
  %v677 = vadd.f32 0.0, %v676
  %v678 = vpop.f32.mrb[0].mxu0
  %v679 = vadd.f32 0.0, %v678
  %680 = vmatprep.mubr.bf16.mxu0 0
  %681 = vmatmul.mubr.bf16.gmra.mrb[0].mxu0 %v439
  %v682 = vpop.f32.mrb[0].mxu0
  %v683 = vadd.f32 0.0, %v682
  %v684 = vpop.f32.mrb[0].mxu0
  %v685 = vadd.f32 0.0, %v684
  %v686 = vpop.f32.mrb[0].mxu0
  %v687 = vadd.f32 0.0, %v686
  %v688 = vpop.f32.mrb[0].mxu0
  %v689 = vadd.f32 0.0, %v688
  %690 = vmatprep.mubr.bf16.mxu0 0
  %691 = vmatmul.mubr.bf16.gmra.mrb[0].mxu0 %v442
  %v692 = vpop.f32.mrb[0].mxu0
  %v693 = vadd.f32 0.0, %v692
  %v694 = vpop.f32.mrb[0].mxu0
  %v695 = vadd.f32 0.0, %v694
  %v696 = vpop.f32.mrb[0].mxu0
  %v697 = vadd.f32 0.0, %v696
  %v698 = vpop.f32.mrb[0].mxu0
  %v699 = vadd.f32 0.0, %v698
  %700 = vmatprep.mubr.bf16.mxu0 0
  %701 = vmatmul.mubr.bf16.gmra.mrb[0].mxu0 %v445
  %v702 = vpop.f32.mrb[0].mxu0
  %v703 = vadd.f32 0.0, %v702
  %v704 = vpop.f32.mrb[0].mxu0
  %v705 = vadd.f32 0.0, %v704
  %v706 = vpop.f32.mrb[0].mxu0
  %v707 = vadd.f32 0.0, %v706
  %v708 = vpop.f32.mrb[0].mxu0
  %v709 = vadd.f32 0.0, %v708
  %710 = vmatprep.mubr.bf16.mxu0 0
  %711 = vmatmul.mubr.bf16.gmra.mrb[0].mxu0 %v448
  %v712 = vpop.f32.mrb[0].mxu0
  %v713 = vadd.f32 0.0, %v712
  %v714 = vpop.f32.mrb[0].mxu0
  %v715 = vadd.f32 0.0, %v714
  %v716 = vpop.f32.mrb[0].mxu0
  %v717 = vadd.f32 0.0, %v716
  %v718 = vpop.f32.mrb[0].mxu0
  %v719 = vadd.f32 0.0, %v718
  %720 = vmatprep.mubr.bf16.mxu0 0
  %721 = vmatmul.mubr.bf16.gmra.mrb[0].mxu0 %v451
  %v722 = vpop.f32.mrb[0].mxu0
  %v723 = vadd.f32 0.0, %v722
  %v724 = vpop.f32.mrb[0].mxu0
  %v725 = vadd.f32 0.0, %v724
  %v726 = vpop.f32.mrb[0].mxu0
  %v727 = vadd.f32 0.0, %v726
  %v728 = vpop.f32.mrb[0].mxu0
  %v729 = vadd.f32 0.0, %v728
  %730 = vmatprep.mubr.bf16.mxu0 0
  %731 = vmatmul.mubr.bf16.gmra.mrb[0].mxu0 %v454
  %v732 = vpop.f32.mrb[0].mxu0
  %v733 = vadd.f32 0.0, %v732
  %v734 = vpop.f32.mrb[0].mxu0
  %v735 = vadd.f32 0.0, %v734
  %v736 = vpop.f32.mrb[0].mxu0
  %v737 = vadd.f32 0.0, %v736
  %v738 = vpop.f32.mrb[0].mxu0
  %v739 = vadd.f32 0.0, %v738
  %740 = vmatprep.mubr.bf16.mxu0 0
  %741 = vmatmul.mubr.bf16.gmra.mrb[0].mxu0 %v457
  %v742 = vpop.f32.mrb[0].mxu0
  %v743 = vadd.f32 0.0, %v742
  %v744 = vpop.f32.mrb[0].mxu0
  %v745 = vadd.f32 0.0, %v744
  %v746 = vpop.f32.mrb[0].mxu0
  %v747 = vadd.f32 0.0, %v746
  %v748 = vpop.f32.mrb[0].mxu0
  %v749 = vadd.f32 0.0, %v748
  %750 = vmatprep.mubr.bf16.mxu0 0
  %751 = vmatmul.mubr.bf16.gmra.mrb[0].mxu0 %v460
  %v752 = vpop.f32.mrb[0].mxu0
  %v753 = vadd.f32 0.0, %v752
  %v754 = vpop.f32.mrb[0].mxu0
  %v755 = vadd.f32 0.0, %v754
  %v756 = vpop.f32.mrb[0].mxu0
  %v757 = vadd.f32 0.0, %v756
  %v758 = vpop.f32.mrb[0].mxu0
  %v759 = vadd.f32 0.0, %v758
  %760 = vmatprep.mubr.bf16.mxu0 0
  %761 = vmatmul.mubr.bf16.gmra.mrb[0].mxu0 %v463
  %v762 = vpop.f32.mrb[0].mxu0
  %v763 = vadd.f32 0.0, %v762
  %v764 = vpop.f32.mrb[0].mxu0
  %v765 = vadd.f32 0.0, %v764
  %v766 = vpop.f32.mrb[0].mxu0
  %v767 = vadd.f32 0.0, %v766
  %v768 = vpop.f32.mrb[0].mxu0
  %v769 = vadd.f32 0.0, %v768
  %770 = vmatprep.mubr.bf16.mxu0 0
  %771 = vmatmul.mubr.bf16.gmra.mrb[0].mxu0 %v466
  %v772 = vpop.f32.mrb[0].mxu0
  %v773 = vadd.f32 0.0, %v772
  %v774 = vpop.f32.mrb[0].mxu0
  %v775 = vadd.f32 0.0, %v774
  %v776 = vpop.f32.mrb[0].mxu0
  %v777 = vadd.f32 0.0, %v776
  %v778 = vpop.f32.mrb[0].mxu0
  %v779 = vadd.f32 0.0, %v778
  %780 = vdwg.mxu0
  %v837 = vunpack.c.l.b16 %v45
  %v838 = vunpack.c.l.b16 %v46
  %v839 = vunpack.c.l.b16 %v47
  %v840 = vunpack.c.l.b16 %v48
  %v841 = vunpack.c.l.b16 %v49
  %v842 = vunpack.c.l.b16 %v50
  %v843 = vunpack.c.l.b16 %v51
  %v844 = vunpack.c.l.b16 %v52
  %v845 = vunpack.c.l.b16 %v53
  %v846 = vunpack.c.l.b16 %v54
  %v847 = vunpack.c.l.b16 %v55
  %v848 = vunpack.c.l.b16 %v56
  %v849 = vunpack.c.l.b16 %v57
  %v850 = vunpack.c.l.b16 %v58
  %v851 = vunpack.c.l.b16 %v59
  %v852 = vunpack.c.l.b16 %v60
  %v853 = vunpack.c.l.b16 %v61
  %v854 = vunpack.c.l.b16 %v62
  %v855 = vunpack.c.l.b16 %v63
  %v856 = vunpack.c.l.b16 %v64
  %v857 = vunpack.c.l.b16 %v65
  %v858 = vunpack.c.l.b16 %v66
  %v859 = vunpack.c.l.b16 %v67
  %v860 = vunpack.c.l.b16 %v68
  %v861 = vunpack.c.l.b16 %v69
  %v862 = vunpack.c.l.b16 %v70
  %v863 = vunpack.c.l.b16 %v71
  %v864 = vunpack.c.l.b16 %v72
  %v865 = vunpack.c.l.b16 %v73
  %v866 = vunpack.c.l.b16 %v74
  %v867 = vunpack.c.l.b16 %v75
  %v868 = vunpack.c.l.b16 %v76
  %v869 = vunpack.c.l.b16 %v77
  %v870 = vunpack.c.l.b16 %v78
  %v871 = vunpack.c.l.b16 %v79
  %v872 = vunpack.c.l.b16 %v80
  %v873 = vunpack.c.l.b16 %v81
  %v874 = vunpack.c.l.b16 %v82
  %v875 = vunpack.c.l.b16 %v83
  %v876 = vunpack.c.l.b16 %v84
  %v877 = vunpack.c.l.b16 %v85
  %v878 = vunpack.c.l.b16 %v86
  %v879 = vunpack.c.l.b16 %v87
  %v880 = vunpack.c.l.b16 %v88
  %v881 = vunpack.c.l.b16 %v89
  %v882 = vunpack.c.l.b16 %v90
  %v883 = vunpack.c.l.b16 %v91
  %v884 = vunpack.c.l.b16 %v92
  %v885 = vunpack.c.l.b16 %v93
  %v886 = vunpack.c.l.b16 %v94
  %v887 = vunpack.c.l.b16 %v95
  %v888 = vunpack.c.l.b16 %v96
  %v889 = vunpack.c.l.b16 %v97
  %v890 = vunpack.c.l.b16 %v98
  %v891 = vunpack.c.l.b16 %v99
  %v892 = vunpack.c.l.b16 %v100
  %v893 = vpack.c.b16 %v838, %v837
  %v894 = vpack.c.b16 %v840, %v839
  %v895 = vpack.c.b16 %v842, %v841
  %v896 = vpack.c.b16 %v844, %v843
  %v897 = vpack.c.b16 %v846, %v845
  %v898 = vpack.c.b16 %v848, %v847
  %v899 = vpack.c.b16 %v850, %v849
  %v900 = vpack.c.b16 %v852, %v851
  %v901 = vpack.c.b16 %v854, %v853
  %v902 = vpack.c.b16 %v856, %v855
  %v903 = vpack.c.b16 %v858, %v857
  %v904 = vpack.c.b16 %v860, %v859
  %v905 = vpack.c.b16 %v862, %v861
  %v906 = vpack.c.b16 %v864, %v863
  %v907 = vpack.c.b16 %v866, %v865
  %v908 = vpack.c.b16 %v868, %v867
  %v909 = vpack.c.b16 %v870, %v869
  %v910 = vpack.c.b16 %v872, %v871
  %v911 = vpack.c.b16 %v874, %v873
  %v912 = vpack.c.b16 %v876, %v875
  %v913 = vpack.c.b16 %v878, %v877
  %v914 = vpack.c.b16 %v880, %v879
  %v915 = vpack.c.b16 %v882, %v881
  %v916 = vpack.c.b16 %v884, %v883
  %v917 = vpack.c.b16 %v886, %v885
  %v918 = vpack.c.b16 %v888, %v887
  %v919 = vpack.c.b16 %v890, %v889
  %v920 = vpack.c.b16 %v892, %v891
  %v933 = vunpack.c.l.b16 %v101
  %v934 = vunpack.c.h.b16 %v101
  %v935 = vunpack.c.l.b16 %v102
  %v936 = vunpack.c.h.b16 %v102
  %v937 = vunpack.c.l.b16 %v103
  %v938 = vunpack.c.h.b16 %v103
  %v939 = vunpack.c.l.b16 %v104
  %v940 = vunpack.c.h.b16 %v104
  %v941 = vunpack.c.l.b16 %v105
  %v942 = vunpack.c.h.b16 %v105
  %v943 = vunpack.c.l.b16 %v106
  %v944 = vunpack.c.h.b16 %v106
  %v945 = vunpack.c.l.b16 %v107
  %v946 = vunpack.c.h.b16 %v107
  %v947 = vunpack.c.l.b16 %v108
  %v948 = vunpack.c.h.b16 %v108
  %v949 = vunpack.c.l.b16 %v109
  %v950 = vunpack.c.h.b16 %v109
  %v951 = vunpack.c.l.b16 %v110
  %v952 = vunpack.c.h.b16 %v110
  %v953 = vunpack.c.l.b16 %v111
  %v954 = vunpack.c.h.b16 %v111
  %v955 = vunpack.c.l.b16 %v112
  %v956 = vunpack.c.h.b16 %v112
  %v957 = vpack.c.b16 %v935, %v933
  %v958 = vpack.c.b16 %v936, %v934
  %v959 = vpack.c.b16 %v939, %v937
  %v960 = vpack.c.b16 %v940, %v938
  %v961 = vpack.c.b16 %v943, %v941
  %v962 = vpack.c.b16 %v944, %v942
  %v963 = vpack.c.b16 %v947, %v945
  %v964 = vpack.c.b16 %v948, %v946
  %v965 = vpack.c.b16 %v951, %v949
  %v966 = vpack.c.b16 %v952, %v950
  %v967 = vpack.c.b16 %v955, %v953
  %v968 = vpack.c.b16 %v956, %v954
  %v982 = vsel %vm383, %v893, 0
  %v985 = vsel %vm383, %v894, 0
  %v988 = vsel %vm383, %v895, 0
  %v991 = vsel %vm383, %v896, 0
  %v994 = vsel %vm383, %v897, 0
  %v997 = vsel %vm383, %v898, 0
  %v1000 = vsel %vm383, %v899, 0
  %v1003 = vsel %vm383, %v900, 0
  %v1006 = vsel %vm383, %v901, 0
  %v1009 = vsel %vm383, %v902, 0
  %v1012 = vsel %vm383, %v903, 0
  %v1015 = vsel %vm383, %v904, 0
  %v1018 = vsel %vm383, %v905, 0
  %v1021 = vsel %vm383, %v906, 0
  %v1024 = vsel %vm383, %v907, 0
  %v1027 = vsel %vm383, %v908, 0
  %v1030 = vsel %vm383, %v909, 0
  %v1033 = vsel %vm383, %v910, 0
  %v1036 = vsel %vm383, %v911, 0
  %v1039 = vsel %vm383, %v912, 0
  %v1042 = vsel %vm383, %v913, 0
  %v1045 = vsel %vm383, %v914, 0
  %v1048 = vsel %vm383, %v915, 0
  %v1051 = vsel %vm383, %v916, 0
  %v1054 = vsel %vm383, %v917, 0
  %v1057 = vsel %vm383, %v918, 0
  %v1060 = vsel %vm383, %v919, 0
  %v1063 = vsel %vm383, %v920, 0
  %1065 = vmatprep.subr.bf16.mxu0 %v958
  %1066 = vmatpush1.bf16.msra.mxu0 %v957
  %1067 = vmatprep.subr.bf16.mxu0 %v960
  %1068 = vmatpush1.bf16.msra.mxu0 %v959
  %1069 = vmatprep.subr.bf16.mxu0 %v962
  %1070 = vmatpush1.bf16.msra.mxu0 %v961
  %1071 = vmatprep.subr.bf16.mxu0 %v964
  %1072 = vmatpush1.bf16.msra.mxu0 %v963
  %1073 = vmatprep.subr.bf16.mxu0 %v966
  %1074 = vmatpush1.bf16.msra.mxu0 %v965
  %1075 = vmatprep.subr.bf16.mxu0 %v968
  %1076 = vmatpush1.bf16.msra.mxu0 %v967
  %1077 = vmatprep.subr.bf16.mxu0 0
  %1078 = vmatpush1.bf16.msra.mxu0 0
  %1079 = vmatprep.subr.bf16.mxu0 0
  %1080 = vmatpush1.bf16.msra.mxu0 0
  %1081 = vmatprep.subr.bf16.mxu0 0
  %1082 = vmatpush1.bf16.msra.mxu0 0
  %1083 = vmatprep.subr.bf16.mxu0 0
  %1084 = vmatpush1.bf16.msra.mxu0 0
  %1085 = vmatprep.subr.bf16.mxu0 0
  %1086 = vmatpush1.bf16.msra.mxu0 0
  %1087 = vmatprep.subr.bf16.mxu0 0
  %1088 = vmatpush1.bf16.msra.mxu0 0
  %1089 = vmatprep.subr.bf16.mxu0 0
  %1090 = vmatpush1.bf16.msra.mxu0 0
  %1091 = vmatprep.subr.bf16.mxu0 0
  %1092 = vmatpush1.bf16.msra.mxu0 0
  %1093 = vmatprep.subr.bf16.mxu0 0
  %1094 = vmatpush1.bf16.msra.mxu0 0
  %1095 = vmatprep.subr.bf16.mxu0 0
  %1096 = vmatpush1.bf16.msra.mxu0 0
  %1097 = vmatprep.mubr.bf16.mxu0 0
  %1098 = vmatmul.mubr.bf16.gmra.mrb[0].mxu0 %v982
  %v1099 = vpop.f32.mrb[0].mxu0
  %v1100 = vadd.f32 %v503, %v1099
  %v1101 = vpop.f32.mrb[0].mxu0
  %v1102 = vadd.f32 %v505, %v1101
  %v1103 = vpop.f32.mrb[0].mxu0
  %v1104 = vadd.f32 %v507, %v1103
  %v1105 = vpop.f32.mrb[0].mxu0
  %v1106 = vadd.f32 %v509, %v1105
  %1107 = vmatprep.mubr.bf16.mxu0 0
  %1108 = vmatmul.mubr.bf16.gmra.mrb[0].mxu0 %v985
  %v1109 = vpop.f32.mrb[0].mxu0
  %v1110 = vadd.f32 %v513, %v1109
  %v1111 = vpop.f32.mrb[0].mxu0
  %v1112 = vadd.f32 %v515, %v1111
  %v1113 = vpop.f32.mrb[0].mxu0
  %v1114 = vadd.f32 %v517, %v1113
  %v1115 = vpop.f32.mrb[0].mxu0
  %v1116 = vadd.f32 %v519, %v1115
  %1117 = vmatprep.mubr.bf16.mxu0 0
  %1118 = vmatmul.mubr.bf16.gmra.mrb[0].mxu0 %v988
  %v1119 = vpop.f32.mrb[0].mxu0
  %v1120 = vadd.f32 %v523, %v1119
  %v1121 = vpop.f32.mrb[0].mxu0
  %v1122 = vadd.f32 %v525, %v1121
  %v1123 = vpop.f32.mrb[0].mxu0
  %v1124 = vadd.f32 %v527, %v1123
  %v1125 = vpop.f32.mrb[0].mxu0
  %v1126 = vadd.f32 %v529, %v1125
  %1127 = vmatprep.mubr.bf16.mxu0 0
  %1128 = vmatmul.mubr.bf16.gmra.mrb[0].mxu0 %v991
  %v1129 = vpop.f32.mrb[0].mxu0
  %v1130 = vadd.f32 %v533, %v1129
  %v1131 = vpop.f32.mrb[0].mxu0
  %v1132 = vadd.f32 %v535, %v1131
  %v1133 = vpop.f32.mrb[0].mxu0
  %v1134 = vadd.f32 %v537, %v1133
  %v1135 = vpop.f32.mrb[0].mxu0
  %v1136 = vadd.f32 %v539, %v1135
  %1137 = vmatprep.mubr.bf16.mxu0 0
  %1138 = vmatmul.mubr.bf16.gmra.mrb[0].mxu0 %v994
  %v1139 = vpop.f32.mrb[0].mxu0
  %v1140 = vadd.f32 %v543, %v1139
  %v1141 = vpop.f32.mrb[0].mxu0
  %v1142 = vadd.f32 %v545, %v1141
  %v1143 = vpop.f32.mrb[0].mxu0
  %v1144 = vadd.f32 %v547, %v1143
  %v1145 = vpop.f32.mrb[0].mxu0
  %v1146 = vadd.f32 %v549, %v1145
  %1147 = vmatprep.mubr.bf16.mxu0 0
  %1148 = vmatmul.mubr.bf16.gmra.mrb[0].mxu0 %v997
  %v1149 = vpop.f32.mrb[0].mxu0
  %v1150 = vadd.f32 %v553, %v1149
  %v1151 = vpop.f32.mrb[0].mxu0
  %v1152 = vadd.f32 %v555, %v1151
  %v1153 = vpop.f32.mrb[0].mxu0
  %v1154 = vadd.f32 %v557, %v1153
  %v1155 = vpop.f32.mrb[0].mxu0
  %v1156 = vadd.f32 %v559, %v1155
  %1157 = vmatprep.mubr.bf16.mxu0 0
  %1158 = vmatmul.mubr.bf16.gmra.mrb[0].mxu0 %v1000
  %v1159 = vpop.f32.mrb[0].mxu0
  %v1160 = vadd.f32 %v563, %v1159
  %v1161 = vpop.f32.mrb[0].mxu0
  %v1162 = vadd.f32 %v565, %v1161
  %v1163 = vpop.f32.mrb[0].mxu0
  %v1164 = vadd.f32 %v567, %v1163
  %v1165 = vpop.f32.mrb[0].mxu0
  %v1166 = vadd.f32 %v569, %v1165
  %1167 = vmatprep.mubr.bf16.mxu0 0
  %1168 = vmatmul.mubr.bf16.gmra.mrb[0].mxu0 %v1003
  %v1169 = vpop.f32.mrb[0].mxu0
  %v1170 = vadd.f32 %v573, %v1169
  %v1171 = vpop.f32.mrb[0].mxu0
  %v1172 = vadd.f32 %v575, %v1171
  %v1173 = vpop.f32.mrb[0].mxu0
  %v1174 = vadd.f32 %v577, %v1173
  %v1175 = vpop.f32.mrb[0].mxu0
  %v1176 = vadd.f32 %v579, %v1175
  %1177 = vmatprep.mubr.bf16.mxu0 0
  %1178 = vmatmul.mubr.bf16.gmra.mrb[0].mxu0 %v1006
  %v1179 = vpop.f32.mrb[0].mxu0
  %v1180 = vadd.f32 %v583, %v1179
  %v1181 = vpop.f32.mrb[0].mxu0
  %v1182 = vadd.f32 %v585, %v1181
  %v1183 = vpop.f32.mrb[0].mxu0
  %v1184 = vadd.f32 %v587, %v1183
  %v1185 = vpop.f32.mrb[0].mxu0
  %v1186 = vadd.f32 %v589, %v1185
  %1187 = vmatprep.mubr.bf16.mxu0 0
  %1188 = vmatmul.mubr.bf16.gmra.mrb[0].mxu0 %v1009
  %v1189 = vpop.f32.mrb[0].mxu0
  %v1190 = vadd.f32 %v593, %v1189
  %v1191 = vpop.f32.mrb[0].mxu0
  %v1192 = vadd.f32 %v595, %v1191
  %v1193 = vpop.f32.mrb[0].mxu0
  %v1194 = vadd.f32 %v597, %v1193
  %v1195 = vpop.f32.mrb[0].mxu0
  %v1196 = vadd.f32 %v599, %v1195
  %1197 = vmatprep.mubr.bf16.mxu0 0
  %1198 = vmatmul.mubr.bf16.gmra.mrb[0].mxu0 %v1012
  %v1199 = vpop.f32.mrb[0].mxu0
  %v1200 = vadd.f32 %v603, %v1199
  %v1201 = vpop.f32.mrb[0].mxu0
  %v1202 = vadd.f32 %v605, %v1201
  %v1203 = vpop.f32.mrb[0].mxu0
  %v1204 = vadd.f32 %v607, %v1203
  %v1205 = vpop.f32.mrb[0].mxu0
  %v1206 = vadd.f32 %v609, %v1205
  %1207 = vmatprep.mubr.bf16.mxu0 0
  %1208 = vmatmul.mubr.bf16.gmra.mrb[0].mxu0 %v1015
  %v1209 = vpop.f32.mrb[0].mxu0
  %v1210 = vadd.f32 %v613, %v1209
  %v1211 = vpop.f32.mrb[0].mxu0
  %v1212 = vadd.f32 %v615, %v1211
  %v1213 = vpop.f32.mrb[0].mxu0
  %v1214 = vadd.f32 %v617, %v1213
  %v1215 = vpop.f32.mrb[0].mxu0
  %v1216 = vadd.f32 %v619, %v1215
  %1217 = vmatprep.mubr.bf16.mxu0 0
  %1218 = vmatmul.mubr.bf16.gmra.mrb[0].mxu0 %v1018
  %v1219 = vpop.f32.mrb[0].mxu0
  %v1220 = vadd.f32 %v623, %v1219
  %v1221 = vpop.f32.mrb[0].mxu0
  %v1222 = vadd.f32 %v625, %v1221
  %v1223 = vpop.f32.mrb[0].mxu0
  %v1224 = vadd.f32 %v627, %v1223
  %v1225 = vpop.f32.mrb[0].mxu0
  %v1226 = vadd.f32 %v629, %v1225
  %1227 = vmatprep.mubr.bf16.mxu0 0
  %1228 = vmatmul.mubr.bf16.gmra.mrb[0].mxu0 %v1021
  %v1229 = vpop.f32.mrb[0].mxu0
  %v1230 = vadd.f32 %v633, %v1229
  %v1231 = vpop.f32.mrb[0].mxu0
  %v1232 = vadd.f32 %v635, %v1231
  %v1233 = vpop.f32.mrb[0].mxu0
  %v1234 = vadd.f32 %v637, %v1233
  %v1235 = vpop.f32.mrb[0].mxu0
  %v1236 = vadd.f32 %v639, %v1235
  %1237 = vmatprep.mubr.bf16.mxu0 0
  %1238 = vmatmul.mubr.bf16.gmra.mrb[0].mxu0 %v1024
  %v1239 = vpop.f32.mrb[0].mxu0
  %v1240 = vadd.f32 %v643, %v1239
  %v1241 = vpop.f32.mrb[0].mxu0
  %v1242 = vadd.f32 %v645, %v1241
  %v1243 = vpop.f32.mrb[0].mxu0
  %v1244 = vadd.f32 %v647, %v1243
  %v1245 = vpop.f32.mrb[0].mxu0
  %v1246 = vadd.f32 %v649, %v1245
  %1247 = vmatprep.mubr.bf16.mxu0 0
  %1248 = vmatmul.mubr.bf16.gmra.mrb[0].mxu0 %v1027
  %v1249 = vpop.f32.mrb[0].mxu0
  %v1250 = vadd.f32 %v653, %v1249
  %v1251 = vpop.f32.mrb[0].mxu0
  %v1252 = vadd.f32 %v655, %v1251
  %v1253 = vpop.f32.mrb[0].mxu0
  %v1254 = vadd.f32 %v657, %v1253
  %v1255 = vpop.f32.mrb[0].mxu0
  %v1256 = vadd.f32 %v659, %v1255
  %1257 = vmatprep.mubr.bf16.mxu0 0
  %1258 = vmatmul.mubr.bf16.gmra.mrb[0].mxu0 %v1030
  %v1259 = vpop.f32.mrb[0].mxu0
  %v1260 = vadd.f32 %v663, %v1259
  %v1261 = vpop.f32.mrb[0].mxu0
  %v1262 = vadd.f32 %v665, %v1261
  %v1263 = vpop.f32.mrb[0].mxu0
  %v1264 = vadd.f32 %v667, %v1263
  %v1265 = vpop.f32.mrb[0].mxu0
  %v1266 = vadd.f32 %v669, %v1265
  %1267 = vmatprep.mubr.bf16.mxu0 0
  %1268 = vmatmul.mubr.bf16.gmra.mrb[0].mxu0 %v1033
  %v1269 = vpop.f32.mrb[0].mxu0
  %v1270 = vadd.f32 %v673, %v1269
  %v1271 = vpop.f32.mrb[0].mxu0
  %v1272 = vadd.f32 %v675, %v1271
  %v1273 = vpop.f32.mrb[0].mxu0
  %v1274 = vadd.f32 %v677, %v1273
  %v1275 = vpop.f32.mrb[0].mxu0
  %v1276 = vadd.f32 %v679, %v1275
  %1277 = vmatprep.mubr.bf16.mxu0 0
  %1278 = vmatmul.mubr.bf16.gmra.mrb[0].mxu0 %v1036
  %v1279 = vpop.f32.mrb[0].mxu0
  %v1280 = vadd.f32 %v683, %v1279
  %v1281 = vpop.f32.mrb[0].mxu0
  %v1282 = vadd.f32 %v685, %v1281
  %v1283 = vpop.f32.mrb[0].mxu0
  %v1284 = vadd.f32 %v687, %v1283
  %v1285 = vpop.f32.mrb[0].mxu0
  %v1286 = vadd.f32 %v689, %v1285
  %1287 = vmatprep.mubr.bf16.mxu0 0
  %1288 = vmatmul.mubr.bf16.gmra.mrb[0].mxu0 %v1039
  %v1289 = vpop.f32.mrb[0].mxu0
  %v1290 = vadd.f32 %v693, %v1289
  %v1291 = vpop.f32.mrb[0].mxu0
  %v1292 = vadd.f32 %v695, %v1291
  %v1293 = vpop.f32.mrb[0].mxu0
  %v1294 = vadd.f32 %v697, %v1293
  %v1295 = vpop.f32.mrb[0].mxu0
  %v1296 = vadd.f32 %v699, %v1295
  %1297 = vmatprep.mubr.bf16.mxu0 0
  %1298 = vmatmul.mubr.bf16.gmra.mrb[0].mxu0 %v1042
  %v1299 = vpop.f32.mrb[0].mxu0
  %v1300 = vadd.f32 %v703, %v1299
  %v1301 = vpop.f32.mrb[0].mxu0
  %v1302 = vadd.f32 %v705, %v1301
  %v1303 = vpop.f32.mrb[0].mxu0
  %v1304 = vadd.f32 %v707, %v1303
  %v1305 = vpop.f32.mrb[0].mxu0
  %v1306 = vadd.f32 %v709, %v1305
  %1307 = vmatprep.mubr.bf16.mxu0 0
  %1308 = vmatmul.mubr.bf16.gmra.mrb[0].mxu0 %v1045
  %v1309 = vpop.f32.mrb[0].mxu0
  %v1310 = vadd.f32 %v713, %v1309
  %v1311 = vpop.f32.mrb[0].mxu0
  %v1312 = vadd.f32 %v715, %v1311
  %v1313 = vpop.f32.mrb[0].mxu0
  %v1314 = vadd.f32 %v717, %v1313
  %v1315 = vpop.f32.mrb[0].mxu0
  %v1316 = vadd.f32 %v719, %v1315
  %1317 = vmatprep.mubr.bf16.mxu0 0
  %1318 = vmatmul.mubr.bf16.gmra.mrb[0].mxu0 %v1048
  %v1319 = vpop.f32.mrb[0].mxu0
  %v1320 = vadd.f32 %v723, %v1319
  %v1321 = vpop.f32.mrb[0].mxu0
  %v1322 = vadd.f32 %v725, %v1321
  %v1323 = vpop.f32.mrb[0].mxu0
  %v1324 = vadd.f32 %v727, %v1323
  %v1325 = vpop.f32.mrb[0].mxu0
  %v1326 = vadd.f32 %v729, %v1325
  %1327 = vmatprep.mubr.bf16.mxu0 0
  %1328 = vmatmul.mubr.bf16.gmra.mrb[0].mxu0 %v1051
  %v1329 = vpop.f32.mrb[0].mxu0
  %v1330 = vadd.f32 %v733, %v1329
  %v1331 = vpop.f32.mrb[0].mxu0
  %v1332 = vadd.f32 %v735, %v1331
  %v1333 = vpop.f32.mrb[0].mxu0
  %v1334 = vadd.f32 %v737, %v1333
  %v1335 = vpop.f32.mrb[0].mxu0
  %v1336 = vadd.f32 %v739, %v1335
  %1337 = vmatprep.mubr.bf16.mxu0 0
  %1338 = vmatmul.mubr.bf16.gmra.mrb[0].mxu0 %v1054
  %v1339 = vpop.f32.mrb[0].mxu0
  %v1340 = vadd.f32 %v743, %v1339
  %v1341 = vpop.f32.mrb[0].mxu0
  %v1342 = vadd.f32 %v745, %v1341
  %v1343 = vpop.f32.mrb[0].mxu0
  %v1344 = vadd.f32 %v747, %v1343
  %v1345 = vpop.f32.mrb[0].mxu0
  %v1346 = vadd.f32 %v749, %v1345
  %1347 = vmatprep.mubr.bf16.mxu0 0
  %1348 = vmatmul.mubr.bf16.gmra.mrb[0].mxu0 %v1057
  %v1349 = vpop.f32.mrb[0].mxu0
  %v1350 = vadd.f32 %v753, %v1349
  %v1351 = vpop.f32.mrb[0].mxu0
  %v1352 = vadd.f32 %v755, %v1351
  %v1353 = vpop.f32.mrb[0].mxu0
  %v1354 = vadd.f32 %v757, %v1353
  %v1355 = vpop.f32.mrb[0].mxu0
  %v1356 = vadd.f32 %v759, %v1355
  %1357 = vmatprep.mubr.bf16.mxu0 0
  %1358 = vmatmul.mubr.bf16.gmra.mrb[0].mxu0 %v1060
  %v1359 = vpop.f32.mrb[0].mxu0
  %v1360 = vadd.f32 %v763, %v1359
  %v1361 = vpop.f32.mrb[0].mxu0
  %v1362 = vadd.f32 %v765, %v1361
  %v1363 = vpop.f32.mrb[0].mxu0
  %v1364 = vadd.f32 %v767, %v1363
  %v1365 = vpop.f32.mrb[0].mxu0
  %v1366 = vadd.f32 %v769, %v1365
  %1367 = vmatprep.mubr.bf16.mxu0 0
  %1368 = vmatmul.mubr.bf16.gmra.mrb[0].mxu0 %v1063
  %v1369 = vpop.f32.mrb[0].mxu0
  %v1370 = vadd.f32 %v773, %v1369
  %v1371 = vpop.f32.mrb[0].mxu0
  %v1372 = vadd.f32 %v775, %v1371
  %v1373 = vpop.f32.mrb[0].mxu0
  %v1374 = vadd.f32 %v777, %v1373
  %v1375 = vpop.f32.mrb[0].mxu0
  %v1376 = vadd.f32 %v779, %v1375
  %1377 = vdwg.mxu0
  %s1378 = scalar_lea.vmem %s0, 16
  %v1379 = vld [vmem:[%s1378] sm:$0xf]
  %v1380 = vld [vmem:[%s1378 + $0x4] sm:$0xf]
  %v1381 = vld [vmem:[%s1378 + $0x8] sm:$0xf]
  %v1382 = vld [vmem:[%s1378 + $0xc] sm:$0xf]
  %v1383 = vld [vmem:[%s1378 + $0x10] sm:$0xf]
  %v1384 = vld [vmem:[%s1378 + $0x14] sm:$0xf]
  %v1385 = vld [vmem:[%s1378 + $0x18] sm:$0xf]
  %v1386 = vld [vmem:[%s1378 + $0x1c] sm:$0xf]
  %v1387 = vld [vmem:[%s1378 + $0x20] sm:$0xf]
  %v1388 = vld [vmem:[%s1378 + $0x24] sm:$0xf]
  %v1389 = vld [vmem:[%s1378 + $0x28] sm:$0xf]
  %v1390 = vld [vmem:[%s1378 + $0x2c] sm:$0xf]
  %v1391 = vld [vmem:[%s1378 + $0x30] sm:$0xf]
  %v1392 = vld [vmem:[%s1378 + $0x34] sm:$0xf]
  %v1393 = vld [vmem:[%s1378 + $0x38] sm:$0xf]
  %v1394 = vld [vmem:[%s1378 + $0x3c] sm:$0xf]
  %v1395 = vld [vmem:[%s1378 + $0x40] sm:$0xf]
  %v1396 = vld [vmem:[%s1378 + $0x44] sm:$0xf]
  %v1397 = vld [vmem:[%s1378 + $0x48] sm:$0xf]
  %v1398 = vld [vmem:[%s1378 + $0x4c] sm:$0xf]
  %v1399 = vld [vmem:[%s1378 + $0x50] sm:$0xf]
  %v1400 = vld [vmem:[%s1378 + $0x54] sm:$0xf]
  %v1401 = vld [vmem:[%s1378 + $0x58] sm:$0xf]
  %v1402 = vld [vmem:[%s1378 + $0x5c] sm:$0xf]
  %v1403 = vld [vmem:[%s1378 + $0x60] sm:$0xf]
  %v1404 = vld [vmem:[%s1378 + $0x64] sm:$0xf]
  %v1405 = vld [vmem:[%s1378 + $0x68] sm:$0xf]
  %v1406 = vld [vmem:[%s1378 + $0x6c] sm:$0xf]
  %v1407 = vld [vmem:[%s1378 + $0x70] sm:$0xf]
  %v1408 = vld [vmem:[%s1378 + $0x74] sm:$0xf]
  %v1409 = vld [vmem:[%s1378 + $0x78] sm:$0xf]
  %v1410 = vld [vmem:[%s1378 + $0x7c] sm:$0xf]
  %v1411 = vld [vmem:[%s1378 + $0x80] sm:$0xf]
  %v1412 = vld [vmem:[%s1378 + $0x84] sm:$0xf]
  %v1413 = vld [vmem:[%s1378 + $0x88] sm:$0xf]
  %v1414 = vld [vmem:[%s1378 + $0x8c] sm:$0xf]
  %v1415 = vld [vmem:[%s1378 + $0x90] sm:$0xf]
  %v1416 = vld [vmem:[%s1378 + $0x94] sm:$0xf]
  %v1417 = vld [vmem:[%s1378 + $0x98] sm:$0xf]
  %v1418 = vld [vmem:[%s1378 + $0x9c] sm:$0xf]
  %v1419 = vld [vmem:[%s1378 + $0xa0] sm:$0xf]
  %v1420 = vld [vmem:[%s1378 + $0xa4] sm:$0xf]
  %v1421 = vld [vmem:[%s1378 + $0xa8] sm:$0xf]
  %v1422 = vld [vmem:[%s1378 + $0xac] sm:$0xf]
  %v1423 = vld [vmem:[%s1378 + $0xb0] sm:$0xf]
  %v1424 = vld [vmem:[%s1378 + $0xb4] sm:$0xf]
  %v1425 = vld [vmem:[%s1378 + $0xb8] sm:$0xf]
  %v1426 = vld [vmem:[%s1378 + $0xbc] sm:$0xf]
  %v1427 = vld [vmem:[%s1378 + $0xc0] sm:$0xf]
  %v1428 = vld [vmem:[%s1378 + $0xc4] sm:$0xf]
  %v1429 = vld [vmem:[%s1378 + $0xc8] sm:$0xf]
  %v1430 = vld [vmem:[%s1378 + $0xcc] sm:$0xf]
  %v1431 = vld [vmem:[%s1378 + $0xd0] sm:$0xf]
  %v1432 = vld [vmem:[%s1378 + $0xd4] sm:$0xf]
  %v1433 = vld [vmem:[%s1378 + $0xd8] sm:$0xf]
  %v1434 = vld [vmem:[%s1378 + $0xdc] sm:$0xf]
  %s1435 = scalar_lea.vmem %s1, 192
  %v1436 = vld [vmem:[%s1435] sm:$0xff]
  %v1437 = vld [vmem:[%s1435 + $0x8] sm:$0xff]
  %v1438 = vld [vmem:[%s1435 + $0x10] sm:$0xff]
  %v1439 = vld [vmem:[%s1435 + $0x18] sm:$0xff]
  %v1440 = vld [vmem:[%s1435 + $0x20] sm:$0xff]
  %v1441 = vld [vmem:[%s1435 + $0x28] sm:$0xff]
  %v1442 = vld [vmem:[%s1435 + $0x30] sm:$0xff]
  %v1443 = vld [vmem:[%s1435 + $0x38] sm:$0xff]
  %v1444 = vld [vmem:[%s1435 + $0x40] sm:$0xff]
  %v1445 = vld [vmem:[%s1435 + $0x48] sm:$0xff]
  %v1446 = vld [vmem:[%s1435 + $0x50] sm:$0xff]
  %v1447 = vld [vmem:[%s1435 + $0x58] sm:$0xff]
  %v1504 = vunpack.c.l.b16 %v1379
  %v1505 = vunpack.c.l.b16 %v1380
  %v1506 = vunpack.c.l.b16 %v1381
  %v1507 = vunpack.c.l.b16 %v1382
  %v1508 = vunpack.c.l.b16 %v1383
  %v1509 = vunpack.c.l.b16 %v1384
  %v1510 = vunpack.c.l.b16 %v1385
  %v1511 = vunpack.c.l.b16 %v1386
  %v1512 = vunpack.c.l.b16 %v1387
  %v1513 = vunpack.c.l.b16 %v1388
  %v1514 = vunpack.c.l.b16 %v1389
  %v1515 = vunpack.c.l.b16 %v1390
  %v1516 = vunpack.c.l.b16 %v1391
  %v1517 = vunpack.c.l.b16 %v1392
  %v1518 = vunpack.c.l.b16 %v1393
  %v1519 = vunpack.c.l.b16 %v1394
  %v1520 = vunpack.c.l.b16 %v1395
  %v1521 = vunpack.c.l.b16 %v1396
  %v1522 = vunpack.c.l.b16 %v1397
  %v1523 = vunpack.c.l.b16 %v1398
  %v1524 = vunpack.c.l.b16 %v1399
  %v1525 = vunpack.c.l.b16 %v1400
  %v1526 = vunpack.c.l.b16 %v1401
  %v1527 = vunpack.c.l.b16 %v1402
  %v1528 = vunpack.c.l.b16 %v1403
  %v1529 = vunpack.c.l.b16 %v1404
  %v1530 = vunpack.c.l.b16 %v1405
  %v1531 = vunpack.c.l.b16 %v1406
  %v1532 = vunpack.c.l.b16 %v1407
  %v1533 = vunpack.c.l.b16 %v1408
  %v1534 = vunpack.c.l.b16 %v1409
  %v1535 = vunpack.c.l.b16 %v1410
  %v1536 = vunpack.c.l.b16 %v1411
  %v1537 = vunpack.c.l.b16 %v1412
  %v1538 = vunpack.c.l.b16 %v1413
  %v1539 = vunpack.c.l.b16 %v1414
  %v1540 = vunpack.c.l.b16 %v1415
  %v1541 = vunpack.c.l.b16 %v1416
  %v1542 = vunpack.c.l.b16 %v1417
  %v1543 = vunpack.c.l.b16 %v1418
  %v1544 = vunpack.c.l.b16 %v1419
  %v1545 = vunpack.c.l.b16 %v1420
  %v1546 = vunpack.c.l.b16 %v1421
  %v1547 = vunpack.c.l.b16 %v1422
  %v1548 = vunpack.c.l.b16 %v1423
  %v1549 = vunpack.c.l.b16 %v1424
  %v1550 = vunpack.c.l.b16 %v1425
  %v1551 = vunpack.c.l.b16 %v1426
  %v1552 = vunpack.c.l.b16 %v1427
  %v1553 = vunpack.c.l.b16 %v1428
  %v1554 = vunpack.c.l.b16 %v1429
  %v1555 = vunpack.c.l.b16 %v1430
  %v1556 = vunpack.c.l.b16 %v1431
  %v1557 = vunpack.c.l.b16 %v1432
  %v1558 = vunpack.c.l.b16 %v1433
  %v1559 = vunpack.c.l.b16 %v1434
  %v1560 = vpack.c.b16 %v1505, %v1504
  %v1561 = vpack.c.b16 %v1507, %v1506
  %v1562 = vpack.c.b16 %v1509, %v1508
  %v1563 = vpack.c.b16 %v1511, %v1510
  %v1564 = vpack.c.b16 %v1513, %v1512
  %v1565 = vpack.c.b16 %v1515, %v1514
  %v1566 = vpack.c.b16 %v1517, %v1516
  %v1567 = vpack.c.b16 %v1519, %v1518
  %v1568 = vpack.c.b16 %v1521, %v1520
  %v1569 = vpack.c.b16 %v1523, %v1522
  %v1570 = vpack.c.b16 %v1525, %v1524
  %v1571 = vpack.c.b16 %v1527, %v1526
  %v1572 = vpack.c.b16 %v1529, %v1528
  %v1573 = vpack.c.b16 %v1531, %v1530
  %v1574 = vpack.c.b16 %v1533, %v1532
  %v1575 = vpack.c.b16 %v1535, %v1534
  %v1576 = vpack.c.b16 %v1537, %v1536
  %v1577 = vpack.c.b16 %v1539, %v1538
  %v1578 = vpack.c.b16 %v1541, %v1540
  %v1579 = vpack.c.b16 %v1543, %v1542
  %v1580 = vpack.c.b16 %v1545, %v1544
  %v1581 = vpack.c.b16 %v1547, %v1546
  %v1582 = vpack.c.b16 %v1549, %v1548
  %v1583 = vpack.c.b16 %v1551, %v1550
  %v1584 = vpack.c.b16 %v1553, %v1552
  %v1585 = vpack.c.b16 %v1555, %v1554
  %v1586 = vpack.c.b16 %v1557, %v1556
  %v1587 = vpack.c.b16 %v1559, %v1558
  %v1600 = vunpack.c.l.b16 %v1436
  %v1601 = vunpack.c.h.b16 %v1436
  %v1602 = vunpack.c.l.b16 %v1437
  %v1603 = vunpack.c.h.b16 %v1437
  %v1604 = vunpack.c.l.b16 %v1438
  %v1605 = vunpack.c.h.b16 %v1438
  %v1606 = vunpack.c.l.b16 %v1439
  %v1607 = vunpack.c.h.b16 %v1439
  %v1608 = vunpack.c.l.b16 %v1440
  %v1609 = vunpack.c.h.b16 %v1440
  %v1610 = vunpack.c.l.b16 %v1441
  %v1611 = vunpack.c.h.b16 %v1441
  %v1612 = vunpack.c.l.b16 %v1442
  %v1613 = vunpack.c.h.b16 %v1442
  %v1614 = vunpack.c.l.b16 %v1443
  %v1615 = vunpack.c.h.b16 %v1443
  %v1616 = vunpack.c.l.b16 %v1444
  %v1617 = vunpack.c.h.b16 %v1444
  %v1618 = vunpack.c.l.b16 %v1445
  %v1619 = vunpack.c.h.b16 %v1445
  %v1620 = vunpack.c.l.b16 %v1446
  %v1621 = vunpack.c.h.b16 %v1446
  %v1622 = vunpack.c.l.b16 %v1447
  %v1623 = vunpack.c.h.b16 %v1447
  %v1624 = vpack.c.b16 %v1602, %v1600
  %v1625 = vpack.c.b16 %v1603, %v1601
  %v1626 = vpack.c.b16 %v1606, %v1604
  %v1627 = vpack.c.b16 %v1607, %v1605
  %v1628 = vpack.c.b16 %v1610, %v1608
  %v1629 = vpack.c.b16 %v1611, %v1609
  %v1630 = vpack.c.b16 %v1614, %v1612
  %v1631 = vpack.c.b16 %v1615, %v1613
  %v1632 = vpack.c.b16 %v1618, %v1616
  %v1633 = vpack.c.b16 %v1619, %v1617
  %v1634 = vpack.c.b16 %v1622, %v1620
  %v1635 = vpack.c.b16 %v1623, %v1621
  %v1649 = vsel %vm383, %v1560, 0
  %v1652 = vsel %vm383, %v1561, 0
  %v1655 = vsel %vm383, %v1562, 0
  %v1658 = vsel %vm383, %v1563, 0
  %v1661 = vsel %vm383, %v1564, 0
  %v1664 = vsel %vm383, %v1565, 0
  %v1667 = vsel %vm383, %v1566, 0
  %v1670 = vsel %vm383, %v1567, 0
  %v1673 = vsel %vm383, %v1568, 0
  %v1676 = vsel %vm383, %v1569, 0
  %v1679 = vsel %vm383, %v1570, 0
  %v1682 = vsel %vm383, %v1571, 0
  %v1685 = vsel %vm383, %v1572, 0
  %v1688 = vsel %vm383, %v1573, 0
  %v1691 = vsel %vm383, %v1574, 0
  %v1694 = vsel %vm383, %v1575, 0
  %v1697 = vsel %vm383, %v1576, 0
  %v1700 = vsel %vm383, %v1577, 0
  %v1703 = vsel %vm383, %v1578, 0
  %v1706 = vsel %vm383, %v1579, 0
  %v1709 = vsel %vm383, %v1580, 0
  %v1712 = vsel %vm383, %v1581, 0
  %v1715 = vsel %vm383, %v1582, 0
  %v1718 = vsel %vm383, %v1583, 0
  %v1721 = vsel %vm383, %v1584, 0
  %v1724 = vsel %vm383, %v1585, 0
  %v1727 = vsel %vm383, %v1586, 0
  %v1730 = vsel %vm383, %v1587, 0
  %1732 = vmatprep.subr.bf16.mxu0 %v1625
  %1733 = vmatpush1.bf16.msra.mxu0 %v1624
  %1734 = vmatprep.subr.bf16.mxu0 %v1627
  %1735 = vmatpush1.bf16.msra.mxu0 %v1626
  %1736 = vmatprep.subr.bf16.mxu0 %v1629
  %1737 = vmatpush1.bf16.msra.mxu0 %v1628
  %1738 = vmatprep.subr.bf16.mxu0 %v1631
  %1739 = vmatpush1.bf16.msra.mxu0 %v1630
  %1740 = vmatprep.subr.bf16.mxu0 %v1633
  %1741 = vmatpush1.bf16.msra.mxu0 %v1632
  %1742 = vmatprep.subr.bf16.mxu0 %v1635
  %1743 = vmatpush1.bf16.msra.mxu0 %v1634
  %1744 = vmatprep.subr.bf16.mxu0 0
  %1745 = vmatpush1.bf16.msra.mxu0 0
  %1746 = vmatprep.subr.bf16.mxu0 0
  %1747 = vmatpush1.bf16.msra.mxu0 0
  %1748 = vmatprep.subr.bf16.mxu0 0
  %1749 = vmatpush1.bf16.msra.mxu0 0
  %1750 = vmatprep.subr.bf16.mxu0 0
  %1751 = vmatpush1.bf16.msra.mxu0 0
  %1752 = vmatprep.subr.bf16.mxu0 0
  %1753 = vmatpush1.bf16.msra.mxu0 0
  %1754 = vmatprep.subr.bf16.mxu0 0
  %1755 = vmatpush1.bf16.msra.mxu0 0
  %1756 = vmatprep.subr.bf16.mxu0 0
  %1757 = vmatpush1.bf16.msra.mxu0 0
  %1758 = vmatprep.subr.bf16.mxu0 0
  %1759 = vmatpush1.bf16.msra.mxu0 0
  %1760 = vmatprep.subr.bf16.mxu0 0
  %1761 = vmatpush1.bf16.msra.mxu0 0
  %1762 = vmatprep.subr.bf16.mxu0 0
  %1763 = vmatpush1.bf16.msra.mxu0 0
  %1764 = vmatprep.mubr.bf16.mxu0 0
  %1765 = vmatmul.mubr.bf16.gmra.mrb[0].mxu0 %v1649
  %v1766 = vpop.f32.mrb[0].mxu0
  %v1767 = vadd.f32 0.0, %v1766
  %v1768 = vpop.f32.mrb[0].mxu0
  %v1769 = vadd.f32 0.0, %v1768
  %v1770 = vpop.f32.mrb[0].mxu0
  %v1771 = vadd.f32 0.0, %v1770
  %v1772 = vpop.f32.mrb[0].mxu0
  %v1773 = vadd.f32 0.0, %v1772
  %1774 = vmatprep.mubr.bf16.mxu0 0
  %1775 = vmatmul.mubr.bf16.gmra.mrb[0].mxu0 %v1652
  %v1776 = vpop.f32.mrb[0].mxu0
  %v1777 = vadd.f32 0.0, %v1776
  %v1778 = vpop.f32.mrb[0].mxu0
  %v1779 = vadd.f32 0.0, %v1778
  %v1780 = vpop.f32.mrb[0].mxu0
  %v1781 = vadd.f32 0.0, %v1780
  %v1782 = vpop.f32.mrb[0].mxu0
  %v1783 = vadd.f32 0.0, %v1782
  %1784 = vmatprep.mubr.bf16.mxu0 0
  %1785 = vmatmul.mubr.bf16.gmra.mrb[0].mxu0 %v1655
  %v1786 = vpop.f32.mrb[0].mxu0
  %v1787 = vadd.f32 0.0, %v1786
  %v1788 = vpop.f32.mrb[0].mxu0
  %v1789 = vadd.f32 0.0, %v1788
  %v1790 = vpop.f32.mrb[0].mxu0
  %v1791 = vadd.f32 0.0, %v1790
  %v1792 = vpop.f32.mrb[0].mxu0
  %v1793 = vadd.f32 0.0, %v1792
  %1794 = vmatprep.mubr.bf16.mxu0 0
  %1795 = vmatmul.mubr.bf16.gmra.mrb[0].mxu0 %v1658
  %v1796 = vpop.f32.mrb[0].mxu0
  %v1797 = vadd.f32 0.0, %v1796
  %v1798 = vpop.f32.mrb[0].mxu0
  %v1799 = vadd.f32 0.0, %v1798
  %v1800 = vpop.f32.mrb[0].mxu0
  %v1801 = vadd.f32 0.0, %v1800
  %v1802 = vpop.f32.mrb[0].mxu0
  %v1803 = vadd.f32 0.0, %v1802
  %1804 = vmatprep.mubr.bf16.mxu0 0
  %1805 = vmatmul.mubr.bf16.gmra.mrb[0].mxu0 %v1661
  %v1806 = vpop.f32.mrb[0].mxu0
  %v1807 = vadd.f32 0.0, %v1806
  %v1808 = vpop.f32.mrb[0].mxu0
  %v1809 = vadd.f32 0.0, %v1808
  %v1810 = vpop.f32.mrb[0].mxu0
  %v1811 = vadd.f32 0.0, %v1810
  %v1812 = vpop.f32.mrb[0].mxu0
  %v1813 = vadd.f32 0.0, %v1812
  %1814 = vmatprep.mubr.bf16.mxu0 0
  %1815 = vmatmul.mubr.bf16.gmra.mrb[0].mxu0 %v1664
  %v1816 = vpop.f32.mrb[0].mxu0
  %v1817 = vadd.f32 0.0, %v1816
  %v1818 = vpop.f32.mrb[0].mxu0
  %v1819 = vadd.f32 0.0, %v1818
  %v1820 = vpop.f32.mrb[0].mxu0
  %v1821 = vadd.f32 0.0, %v1820
  %v1822 = vpop.f32.mrb[0].mxu0
  %v1823 = vadd.f32 0.0, %v1822
  %1824 = vmatprep.mubr.bf16.mxu0 0
  %1825 = vmatmul.mubr.bf16.gmra.mrb[0].mxu0 %v1667
  %v1826 = vpop.f32.mrb[0].mxu0
  %v1827 = vadd.f32 0.0, %v1826
  %v1828 = vpop.f32.mrb[0].mxu0
  %v1829 = vadd.f32 0.0, %v1828
  %v1830 = vpop.f32.mrb[0].mxu0
  %v1831 = vadd.f32 0.0, %v1830
  %v1832 = vpop.f32.mrb[0].mxu0
  %v1833 = vadd.f32 0.0, %v1832
  %1834 = vmatprep.mubr.bf16.mxu0 0
  %1835 = vmatmul.mubr.bf16.gmra.mrb[0].mxu0 %v1670
  %v1836 = vpop.f32.mrb[0].mxu0
  %v1837 = vadd.f32 0.0, %v1836
  %v1838 = vpop.f32.mrb[0].mxu0
  %v1839 = vadd.f32 0.0, %v1838
  %v1840 = vpop.f32.mrb[0].mxu0
  %v1841 = vadd.f32 0.0, %v1840
  %v1842 = vpop.f32.mrb[0].mxu0
  %v1843 = vadd.f32 0.0, %v1842
  %1844 = vmatprep.mubr.bf16.mxu0 0
  %1845 = vmatmul.mubr.bf16.gmra.mrb[0].mxu0 %v1673
  %v1846 = vpop.f32.mrb[0].mxu0
  %v1847 = vadd.f32 0.0, %v1846
  %v1848 = vpop.f32.mrb[0].mxu0
  %v1849 = vadd.f32 0.0, %v1848
  %v1850 = vpop.f32.mrb[0].mxu0
  %v1851 = vadd.f32 0.0, %v1850
  %v1852 = vpop.f32.mrb[0].mxu0
  %v1853 = vadd.f32 0.0, %v1852
  %1854 = vmatprep.mubr.bf16.mxu0 0
  %1855 = vmatmul.mubr.bf16.gmra.mrb[0].mxu0 %v1676
  %v1856 = vpop.f32.mrb[0].mxu0
  %v1857 = vadd.f32 0.0, %v1856
  %v1858 = vpop.f32.mrb[0].mxu0
  %v1859 = vadd.f32 0.0, %v1858
  %v1860 = vpop.f32.mrb[0].mxu0
  %v1861 = vadd.f32 0.0, %v1860
  %v1862 = vpop.f32.mrb[0].mxu0
  %v1863 = vadd.f32 0.0, %v1862
  %1864 = vmatprep.mubr.bf16.mxu0 0
  %1865 = vmatmul.mubr.bf16.gmra.mrb[0].mxu0 %v1679
  %v1866 = vpop.f32.mrb[0].mxu0
  %v1867 = vadd.f32 0.0, %v1866
  %v1868 = vpop.f32.mrb[0].mxu0
  %v1869 = vadd.f32 0.0, %v1868
  %v1870 = vpop.f32.mrb[0].mxu0
  %v1871 = vadd.f32 0.0, %v1870
  %v1872 = vpop.f32.mrb[0].mxu0
  %v1873 = vadd.f32 0.0, %v1872
  %1874 = vmatprep.mubr.bf16.mxu0 0
  %1875 = vmatmul.mubr.bf16.gmra.mrb[0].mxu0 %v1682
  %v1876 = vpop.f32.mrb[0].mxu0
  %v1877 = vadd.f32 0.0, %v1876
  %v1878 = vpop.f32.mrb[0].mxu0
  %v1879 = vadd.f32 0.0, %v1878
  %v1880 = vpop.f32.mrb[0].mxu0
  %v1881 = vadd.f32 0.0, %v1880
  %v1882 = vpop.f32.mrb[0].mxu0
  %v1883 = vadd.f32 0.0, %v1882
  %1884 = vmatprep.mubr.bf16.mxu0 0
  %1885 = vmatmul.mubr.bf16.gmra.mrb[0].mxu0 %v1685
  %v1886 = vpop.f32.mrb[0].mxu0
  %v1887 = vadd.f32 0.0, %v1886
  %v1888 = vpop.f32.mrb[0].mxu0
  %v1889 = vadd.f32 0.0, %v1888
  %v1890 = vpop.f32.mrb[0].mxu0
  %v1891 = vadd.f32 0.0, %v1890
  %v1892 = vpop.f32.mrb[0].mxu0
  %v1893 = vadd.f32 0.0, %v1892
  %1894 = vmatprep.mubr.bf16.mxu0 0
  %1895 = vmatmul.mubr.bf16.gmra.mrb[0].mxu0 %v1688
  %v1896 = vpop.f32.mrb[0].mxu0
  %v1897 = vadd.f32 0.0, %v1896
  %v1898 = vpop.f32.mrb[0].mxu0
  %v1899 = vadd.f32 0.0, %v1898
  %v1900 = vpop.f32.mrb[0].mxu0
  %v1901 = vadd.f32 0.0, %v1900
  %v1902 = vpop.f32.mrb[0].mxu0
  %v1903 = vadd.f32 0.0, %v1902
  %1904 = vmatprep.mubr.bf16.mxu0 0
  %1905 = vmatmul.mubr.bf16.gmra.mrb[0].mxu0 %v1691
  %v1906 = vpop.f32.mrb[0].mxu0
  %v1907 = vadd.f32 0.0, %v1906
  %v1908 = vpop.f32.mrb[0].mxu0
  %v1909 = vadd.f32 0.0, %v1908
  %v1910 = vpop.f32.mrb[0].mxu0
  %v1911 = vadd.f32 0.0, %v1910
  %v1912 = vpop.f32.mrb[0].mxu0
  %v1913 = vadd.f32 0.0, %v1912
  %1914 = vmatprep.mubr.bf16.mxu0 0
  %1915 = vmatmul.mubr.bf16.gmra.mrb[0].mxu0 %v1694
  %v1916 = vpop.f32.mrb[0].mxu0
  %v1917 = vadd.f32 0.0, %v1916
  %v1918 = vpop.f32.mrb[0].mxu0
  %v1919 = vadd.f32 0.0, %v1918
  %v1920 = vpop.f32.mrb[0].mxu0
  %v1921 = vadd.f32 0.0, %v1920
  %v1922 = vpop.f32.mrb[0].mxu0
  %v1923 = vadd.f32 0.0, %v1922
  %1924 = vmatprep.mubr.bf16.mxu0 0
  %1925 = vmatmul.mubr.bf16.gmra.mrb[0].mxu0 %v1697
  %v1926 = vpop.f32.mrb[0].mxu0
  %v1927 = vadd.f32 0.0, %v1926
  %v1928 = vpop.f32.mrb[0].mxu0
  %v1929 = vadd.f32 0.0, %v1928
  %v1930 = vpop.f32.mrb[0].mxu0
  %v1931 = vadd.f32 0.0, %v1930
  %v1932 = vpop.f32.mrb[0].mxu0
  %v1933 = vadd.f32 0.0, %v1932
  %1934 = vmatprep.mubr.bf16.mxu0 0
  %1935 = vmatmul.mubr.bf16.gmra.mrb[0].mxu0 %v1700
  %v1936 = vpop.f32.mrb[0].mxu0
  %v1937 = vadd.f32 0.0, %v1936
  %v1938 = vpop.f32.mrb[0].mxu0
  %v1939 = vadd.f32 0.0, %v1938
  %v1940 = vpop.f32.mrb[0].mxu0
  %v1941 = vadd.f32 0.0, %v1940
  %v1942 = vpop.f32.mrb[0].mxu0
  %v1943 = vadd.f32 0.0, %v1942
  %1944 = vmatprep.mubr.bf16.mxu0 0
  %1945 = vmatmul.mubr.bf16.gmra.mrb[0].mxu0 %v1703
  %v1946 = vpop.f32.mrb[0].mxu0
  %v1947 = vadd.f32 0.0, %v1946
  %v1948 = vpop.f32.mrb[0].mxu0
  %v1949 = vadd.f32 0.0, %v1948
  %v1950 = vpop.f32.mrb[0].mxu0
  %v1951 = vadd.f32 0.0, %v1950
  %v1952 = vpop.f32.mrb[0].mxu0
  %v1953 = vadd.f32 0.0, %v1952
  %1954 = vmatprep.mubr.bf16.mxu0 0
  %1955 = vmatmul.mubr.bf16.gmra.mrb[0].mxu0 %v1706
  %v1956 = vpop.f32.mrb[0].mxu0
  %v1957 = vadd.f32 0.0, %v1956
  %v1958 = vpop.f32.mrb[0].mxu0
  %v1959 = vadd.f32 0.0, %v1958
  %v1960 = vpop.f32.mrb[0].mxu0
  %v1961 = vadd.f32 0.0, %v1960
  %v1962 = vpop.f32.mrb[0].mxu0
  %v1963 = vadd.f32 0.0, %v1962
  %1964 = vmatprep.mubr.bf16.mxu0 0
  %1965 = vmatmul.mubr.bf16.gmra.mrb[0].mxu0 %v1709
  %v1966 = vpop.f32.mrb[0].mxu0
  %v1967 = vadd.f32 0.0, %v1966
  %v1968 = vpop.f32.mrb[0].mxu0
  %v1969 = vadd.f32 0.0, %v1968
  %v1970 = vpop.f32.mrb[0].mxu0
  %v1971 = vadd.f32 0.0, %v1970
  %v1972 = vpop.f32.mrb[0].mxu0
  %v1973 = vadd.f32 0.0, %v1972
  %1974 = vmatprep.mubr.bf16.mxu0 0
  %1975 = vmatmul.mubr.bf16.gmra.mrb[0].mxu0 %v1712
  %v1976 = vpop.f32.mrb[0].mxu0
  %v1977 = vadd.f32 0.0, %v1976
  %v1978 = vpop.f32.mrb[0].mxu0
  %v1979 = vadd.f32 0.0, %v1978
  %v1980 = vpop.f32.mrb[0].mxu0
  %v1981 = vadd.f32 0.0, %v1980
  %v1982 = vpop.f32.mrb[0].mxu0
  %v1983 = vadd.f32 0.0, %v1982
  %1984 = vmatprep.mubr.bf16.mxu0 0
  %1985 = vmatmul.mubr.bf16.gmra.mrb[0].mxu0 %v1715
  %v1986 = vpop.f32.mrb[0].mxu0
  %v1987 = vadd.f32 0.0, %v1986
  %v1988 = vpop.f32.mrb[0].mxu0
  %v1989 = vadd.f32 0.0, %v1988
  %v1990 = vpop.f32.mrb[0].mxu0
  %v1991 = vadd.f32 0.0, %v1990
  %v1992 = vpop.f32.mrb[0].mxu0
  %v1993 = vadd.f32 0.0, %v1992
  %1994 = vmatprep.mubr.bf16.mxu0 0
  %1995 = vmatmul.mubr.bf16.gmra.mrb[0].mxu0 %v1718
  %v1996 = vpop.f32.mrb[0].mxu0
  %v1997 = vadd.f32 0.0, %v1996
  %v1998 = vpop.f32.mrb[0].mxu0
  %v1999 = vadd.f32 0.0, %v1998
  %v2000 = vpop.f32.mrb[0].mxu0
  %v2001 = vadd.f32 0.0, %v2000
  %v2002 = vpop.f32.mrb[0].mxu0
  %v2003 = vadd.f32 0.0, %v2002
  %2004 = vmatprep.mubr.bf16.mxu0 0
  %2005 = vmatmul.mubr.bf16.gmra.mrb[0].mxu0 %v1721
  %v2006 = vpop.f32.mrb[0].mxu0
  %v2007 = vadd.f32 0.0, %v2006
  %v2008 = vpop.f32.mrb[0].mxu0
  %v2009 = vadd.f32 0.0, %v2008
  %v2010 = vpop.f32.mrb[0].mxu0
  %v2011 = vadd.f32 0.0, %v2010
  %v2012 = vpop.f32.mrb[0].mxu0
  %v2013 = vadd.f32 0.0, %v2012
  %2014 = vmatprep.mubr.bf16.mxu0 0
  %2015 = vmatmul.mubr.bf16.gmra.mrb[0].mxu0 %v1724
  %v2016 = vpop.f32.mrb[0].mxu0
  %v2017 = vadd.f32 0.0, %v2016
  %v2018 = vpop.f32.mrb[0].mxu0
  %v2019 = vadd.f32 0.0, %v2018
  %v2020 = vpop.f32.mrb[0].mxu0
  %v2021 = vadd.f32 0.0, %v2020
  %v2022 = vpop.f32.mrb[0].mxu0
  %v2023 = vadd.f32 0.0, %v2022
  %2024 = vmatprep.mubr.bf16.mxu0 0
  %2025 = vmatmul.mubr.bf16.gmra.mrb[0].mxu0 %v1727
  %v2026 = vpop.f32.mrb[0].mxu0
  %v2027 = vadd.f32 0.0, %v2026
  %v2028 = vpop.f32.mrb[0].mxu0
  %v2029 = vadd.f32 0.0, %v2028
  %v2030 = vpop.f32.mrb[0].mxu0
  %v2031 = vadd.f32 0.0, %v2030
  %v2032 = vpop.f32.mrb[0].mxu0
  %v2033 = vadd.f32 0.0, %v2032
  %2034 = vmatprep.mubr.bf16.mxu0 0
  %2035 = vmatmul.mubr.bf16.gmra.mrb[0].mxu0 %v1730
  %v2036 = vpop.f32.mrb[0].mxu0
  %v2037 = vadd.f32 0.0, %v2036
  %v2038 = vpop.f32.mrb[0].mxu0
  %v2039 = vadd.f32 0.0, %v2038
  %v2040 = vpop.f32.mrb[0].mxu0
  %v2041 = vadd.f32 0.0, %v2040
  %v2042 = vpop.f32.mrb[0].mxu0
  %v2043 = vadd.f32 0.0, %v2042
  %2044 = vdwg.mxu0
  %v2045 = vadd.f32 %v1100, %v1767
  %v2046 = vadd.f32 %v1102, %v1769
  %v2047 = vadd.f32 %v1104, %v1771
  %v2048 = vadd.f32 %v1106, %v1773
  %v2049 = vadd.f32 %v1110, %v1777
  %v2050 = vadd.f32 %v1112, %v1779
  %v2051 = vadd.f32 %v1114, %v1781
  %v2052 = vadd.f32 %v1116, %v1783
  %v2053 = vadd.f32 %v1120, %v1787
  %v2054 = vadd.f32 %v1122, %v1789
  %v2055 = vadd.f32 %v1124, %v1791
  %v2056 = vadd.f32 %v1126, %v1793
  %v2057 = vadd.f32 %v1130, %v1797
  %v2058 = vadd.f32 %v1132, %v1799
  %v2059 = vadd.f32 %v1134, %v1801
  %v2060 = vadd.f32 %v1136, %v1803
  %v2061 = vadd.f32 %v1140, %v1807
  %v2062 = vadd.f32 %v1142, %v1809
  %v2063 = vadd.f32 %v1144, %v1811
  %v2064 = vadd.f32 %v1146, %v1813
  %v2065 = vadd.f32 %v1150, %v1817
  %v2066 = vadd.f32 %v1152, %v1819
  %v2067 = vadd.f32 %v1154, %v1821
  %v2068 = vadd.f32 %v1156, %v1823
  %v2069 = vadd.f32 %v1160, %v1827
  %v2070 = vadd.f32 %v1162, %v1829
  %v2071 = vadd.f32 %v1164, %v1831
  %v2072 = vadd.f32 %v1166, %v1833
  %v2073 = vadd.f32 %v1170, %v1837
  %v2074 = vadd.f32 %v1172, %v1839
  %v2075 = vadd.f32 %v1174, %v1841
  %v2076 = vadd.f32 %v1176, %v1843
  %v2077 = vadd.f32 %v1180, %v1847
  %v2078 = vadd.f32 %v1182, %v1849
  %v2079 = vadd.f32 %v1184, %v1851
  %v2080 = vadd.f32 %v1186, %v1853
  %v2081 = vadd.f32 %v1190, %v1857
  %v2082 = vadd.f32 %v1192, %v1859
  %v2083 = vadd.f32 %v1194, %v1861
  %v2084 = vadd.f32 %v1196, %v1863
  %v2085 = vadd.f32 %v1200, %v1867
  %v2086 = vadd.f32 %v1202, %v1869
  %v2087 = vadd.f32 %v1204, %v1871
  %v2088 = vadd.f32 %v1206, %v1873
  %v2089 = vadd.f32 %v1210, %v1877
  %v2090 = vadd.f32 %v1212, %v1879
  %v2091 = vadd.f32 %v1214, %v1881
  %v2092 = vadd.f32 %v1216, %v1883
  %v2093 = vadd.f32 %v1220, %v1887
  %v2094 = vadd.f32 %v1222, %v1889
  %v2095 = vadd.f32 %v1224, %v1891
  %v2096 = vadd.f32 %v1226, %v1893
  %v2097 = vadd.f32 %v1230, %v1897
  %v2098 = vadd.f32 %v1232, %v1899
  %v2099 = vadd.f32 %v1234, %v1901
  %v2100 = vadd.f32 %v1236, %v1903
  %v2101 = vadd.f32 %v1240, %v1907
  %v2102 = vadd.f32 %v1242, %v1909
  %v2103 = vadd.f32 %v1244, %v1911
  %v2104 = vadd.f32 %v1246, %v1913
  %v2105 = vadd.f32 %v1250, %v1917
  %v2106 = vadd.f32 %v1252, %v1919
  %v2107 = vadd.f32 %v1254, %v1921
  %v2108 = vadd.f32 %v1256, %v1923
  %v2109 = vadd.f32 %v1260, %v1927
  %v2110 = vadd.f32 %v1262, %v1929
  %v2111 = vadd.f32 %v1264, %v1931
  %v2112 = vadd.f32 %v1266, %v1933
  %v2113 = vadd.f32 %v1270, %v1937
  %v2114 = vadd.f32 %v1272, %v1939
  %v2115 = vadd.f32 %v1274, %v1941
  %v2116 = vadd.f32 %v1276, %v1943
  %v2117 = vadd.f32 %v1280, %v1947
  %v2118 = vadd.f32 %v1282, %v1949
  %v2119 = vadd.f32 %v1284, %v1951
  %v2120 = vadd.f32 %v1286, %v1953
  %v2121 = vadd.f32 %v1290, %v1957
  %v2122 = vadd.f32 %v1292, %v1959
  %v2123 = vadd.f32 %v1294, %v1961
  %v2124 = vadd.f32 %v1296, %v1963
  %v2125 = vadd.f32 %v1300, %v1967
  %v2126 = vadd.f32 %v1302, %v1969
  %v2127 = vadd.f32 %v1304, %v1971
  %v2128 = vadd.f32 %v1306, %v1973
  %v2129 = vadd.f32 %v1310, %v1977
  %v2130 = vadd.f32 %v1312, %v1979
  %v2131 = vadd.f32 %v1314, %v1981
  %v2132 = vadd.f32 %v1316, %v1983
  %v2133 = vadd.f32 %v1320, %v1987
  %v2134 = vadd.f32 %v1322, %v1989
  %v2135 = vadd.f32 %v1324, %v1991
  %v2136 = vadd.f32 %v1326, %v1993
  %v2137 = vadd.f32 %v1330, %v1997
  %v2138 = vadd.f32 %v1332, %v1999
  %v2139 = vadd.f32 %v1334, %v2001
  %v2140 = vadd.f32 %v1336, %v2003
  %v2141 = vadd.f32 %v1340, %v2007
  %v2142 = vadd.f32 %v1342, %v2009
  %v2143 = vadd.f32 %v1344, %v2011
  %v2144 = vadd.f32 %v1346, %v2013
  %v2145 = vadd.f32 %v1350, %v2017
  %v2146 = vadd.f32 %v1352, %v2019
  %v2147 = vadd.f32 %v1354, %v2021
  %v2148 = vadd.f32 %v1356, %v2023
  %v2149 = vadd.f32 %v1360, %v2027
  %v2150 = vadd.f32 %v1362, %v2029
  %v2151 = vadd.f32 %v1364, %v2031
  %v2152 = vadd.f32 %v1366, %v2033
  %v2153 = vadd.f32 %v1370, %v2037
  %v2154 = vadd.f32 %v1372, %v2039
  %v2155 = vadd.f32 %v1374, %v2041
  %v2156 = vadd.f32 %v1376, %v2043
  %s2157 = scalar_lea.vmem %s0, 24
  %v2158 = vld [vmem:[%s2157] sm:$0xf]
  %v2159 = vld [vmem:[%s2157 + $0x4] sm:$0xf]
  %v2160 = vld [vmem:[%s2157 + $0x8] sm:$0xf]
  %v2161 = vld [vmem:[%s2157 + $0xc] sm:$0xf]
  %v2162 = vld [vmem:[%s2157 + $0x10] sm:$0xf]
  %v2163 = vld [vmem:[%s2157 + $0x14] sm:$0xf]
  %v2164 = vld [vmem:[%s2157 + $0x18] sm:$0xf]
  %v2165 = vld [vmem:[%s2157 + $0x1c] sm:$0xf]
  %v2166 = vld [vmem:[%s2157 + $0x20] sm:$0xf]
  %v2167 = vld [vmem:[%s2157 + $0x24] sm:$0xf]
  %v2168 = vld [vmem:[%s2157 + $0x28] sm:$0xf]
  %v2169 = vld [vmem:[%s2157 + $0x2c] sm:$0xf]
  %v2170 = vld [vmem:[%s2157 + $0x30] sm:$0xf]
  %v2171 = vld [vmem:[%s2157 + $0x34] sm:$0xf]
  %v2172 = vld [vmem:[%s2157 + $0x38] sm:$0xf]
  %v2173 = vld [vmem:[%s2157 + $0x3c] sm:$0xf]
  %v2174 = vld [vmem:[%s2157 + $0x40] sm:$0xf]
  %v2175 = vld [vmem:[%s2157 + $0x44] sm:$0xf]
  %v2176 = vld [vmem:[%s2157 + $0x48] sm:$0xf]
  %v2177 = vld [vmem:[%s2157 + $0x4c] sm:$0xf]
  %v2178 = vld [vmem:[%s2157 + $0x50] sm:$0xf]
  %v2179 = vld [vmem:[%s2157 + $0x54] sm:$0xf]
  %v2180 = vld [vmem:[%s2157 + $0x58] sm:$0xf]
  %v2181 = vld [vmem:[%s2157 + $0x5c] sm:$0xf]
  %v2182 = vld [vmem:[%s2157 + $0x60] sm:$0xf]
  %v2183 = vld [vmem:[%s2157 + $0x64] sm:$0xf]
  %v2184 = vld [vmem:[%s2157 + $0x68] sm:$0xf]
  %v2185 = vld [vmem:[%s2157 + $0x6c] sm:$0xf]
  %v2186 = vld [vmem:[%s2157 + $0x70] sm:$0xf]
  %v2187 = vld [vmem:[%s2157 + $0x74] sm:$0xf]
  %v2188 = vld [vmem:[%s2157 + $0x78] sm:$0xf]
  %v2189 = vld [vmem:[%s2157 + $0x7c] sm:$0xf]
  %v2190 = vld [vmem:[%s2157 + $0x80] sm:$0xf]
  %v2191 = vld [vmem:[%s2157 + $0x84] sm:$0xf]
  %v2192 = vld [vmem:[%s2157 + $0x88] sm:$0xf]
  %v2193 = vld [vmem:[%s2157 + $0x8c] sm:$0xf]
  %v2194 = vld [vmem:[%s2157 + $0x90] sm:$0xf]
  %v2195 = vld [vmem:[%s2157 + $0x94] sm:$0xf]
  %v2196 = vld [vmem:[%s2157 + $0x98] sm:$0xf]
  %v2197 = vld [vmem:[%s2157 + $0x9c] sm:$0xf]
  %v2198 = vld [vmem:[%s2157 + $0xa0] sm:$0xf]
  %v2199 = vld [vmem:[%s2157 + $0xa4] sm:$0xf]
  %v2200 = vld [vmem:[%s2157 + $0xa8] sm:$0xf]
  %v2201 = vld [vmem:[%s2157 + $0xac] sm:$0xf]
  %v2202 = vld [vmem:[%s2157 + $0xb0] sm:$0xf]
  %v2203 = vld [vmem:[%s2157 + $0xb4] sm:$0xf]
  %v2204 = vld [vmem:[%s2157 + $0xb8] sm:$0xf]
  %v2205 = vld [vmem:[%s2157 + $0xbc] sm:$0xf]
  %v2206 = vld [vmem:[%s2157 + $0xc0] sm:$0xf]
  %v2207 = vld [vmem:[%s2157 + $0xc4] sm:$0xf]
  %v2208 = vld [vmem:[%s2157 + $0xc8] sm:$0xf]
  %v2209 = vld [vmem:[%s2157 + $0xcc] sm:$0xf]
  %v2210 = vld [vmem:[%s2157 + $0xd0] sm:$0xf]
  %v2211 = vld [vmem:[%s2157 + $0xd4] sm:$0xf]
  %v2212 = vld [vmem:[%s2157 + $0xd8] sm:$0xf]
  %v2213 = vld [vmem:[%s2157 + $0xdc] sm:$0xf]
  %s2214 = scalar_lea.vmem %s1, 288
  %v2215 = vld [vmem:[%s2214] sm:$0xff]
  %v2216 = vld [vmem:[%s2214 + $0x8] sm:$0xff]
  %v2217 = vld [vmem:[%s2214 + $0x10] sm:$0xff]
  %v2218 = vld [vmem:[%s2214 + $0x18] sm:$0xff]
  %v2219 = vld [vmem:[%s2214 + $0x20] sm:$0xff]
  %v2220 = vld [vmem:[%s2214 + $0x28] sm:$0xff]
  %v2221 = vld [vmem:[%s2214 + $0x30] sm:$0xff]
  %v2222 = vld [vmem:[%s2214 + $0x38] sm:$0xff]
  %v2223 = vld [vmem:[%s2214 + $0x40] sm:$0xff]
  %v2224 = vld [vmem:[%s2214 + $0x48] sm:$0xff]
  %v2225 = vld [vmem:[%s2214 + $0x50] sm:$0xff]
  %v2226 = vld [vmem:[%s2214 + $0x58] sm:$0xff]
  %v2283 = vunpack.c.l.b16 %v2158
  %v2284 = vunpack.c.l.b16 %v2159
  %v2285 = vunpack.c.l.b16 %v2160
  %v2286 = vunpack.c.l.b16 %v2161
  %v2287 = vunpack.c.l.b16 %v2162
  %v2288 = vunpack.c.l.b16 %v2163
  %v2289 = vunpack.c.l.b16 %v2164
  %v2290 = vunpack.c.l.b16 %v2165
  %v2291 = vunpack.c.l.b16 %v2166
  %v2292 = vunpack.c.l.b16 %v2167
  %v2293 = vunpack.c.l.b16 %v2168
  %v2294 = vunpack.c.l.b16 %v2169
  %v2295 = vunpack.c.l.b16 %v2170
  %v2296 = vunpack.c.l.b16 %v2171
  %v2297 = vunpack.c.l.b16 %v2172
  %v2298 = vunpack.c.l.b16 %v2173
  %v2299 = vunpack.c.l.b16 %v2174
  %v2300 = vunpack.c.l.b16 %v2175
  %v2301 = vunpack.c.l.b16 %v2176
  %v2302 = vunpack.c.l.b16 %v2177
  %v2303 = vunpack.c.l.b16 %v2178
  %v2304 = vunpack.c.l.b16 %v2179
  %v2305 = vunpack.c.l.b16 %v2180
  %v2306 = vunpack.c.l.b16 %v2181
  %v2307 = vunpack.c.l.b16 %v2182
  %v2308 = vunpack.c.l.b16 %v2183
  %v2309 = vunpack.c.l.b16 %v2184
  %v2310 = vunpack.c.l.b16 %v2185
  %v2311 = vunpack.c.l.b16 %v2186
  %v2312 = vunpack.c.l.b16 %v2187
  %v2313 = vunpack.c.l.b16 %v2188
  %v2314 = vunpack.c.l.b16 %v2189
  %v2315 = vunpack.c.l.b16 %v2190
  %v2316 = vunpack.c.l.b16 %v2191
  %v2317 = vunpack.c.l.b16 %v2192
  %v2318 = vunpack.c.l.b16 %v2193
  %v2319 = vunpack.c.l.b16 %v2194
  %v2320 = vunpack.c.l.b16 %v2195
  %v2321 = vunpack.c.l.b16 %v2196
  %v2322 = vunpack.c.l.b16 %v2197
  %v2323 = vunpack.c.l.b16 %v2198
  %v2324 = vunpack.c.l.b16 %v2199
  %v2325 = vunpack.c.l.b16 %v2200
  %v2326 = vunpack.c.l.b16 %v2201
  %v2327 = vunpack.c.l.b16 %v2202
  %v2328 = vunpack.c.l.b16 %v2203
  %v2329 = vunpack.c.l.b16 %v2204
  %v2330 = vunpack.c.l.b16 %v2205
  %v2331 = vunpack.c.l.b16 %v2206
  %v2332 = vunpack.c.l.b16 %v2207
  %v2333 = vunpack.c.l.b16 %v2208
  %v2334 = vunpack.c.l.b16 %v2209
  %v2335 = vunpack.c.l.b16 %v2210
  %v2336 = vunpack.c.l.b16 %v2211
  %v2337 = vunpack.c.l.b16 %v2212
  %v2338 = vunpack.c.l.b16 %v2213
  %v2339 = vpack.c.b16 %v2284, %v2283
  %v2340 = vpack.c.b16 %v2286, %v2285
  %v2341 = vpack.c.b16 %v2288, %v2287
  %v2342 = vpack.c.b16 %v2290, %v2289
  %v2343 = vpack.c.b16 %v2292, %v2291
  %v2344 = vpack.c.b16 %v2294, %v2293
  %v2345 = vpack.c.b16 %v2296, %v2295
  %v2346 = vpack.c.b16 %v2298, %v2297
  %v2347 = vpack.c.b16 %v2300, %v2299
  %v2348 = vpack.c.b16 %v2302, %v2301
  %v2349 = vpack.c.b16 %v2304, %v2303
  %v2350 = vpack.c.b16 %v2306, %v2305
  %v2351 = vpack.c.b16 %v2308, %v2307
  %v2352 = vpack.c.b16 %v2310, %v2309
  %v2353 = vpack.c.b16 %v2312, %v2311
  %v2354 = vpack.c.b16 %v2314, %v2313
  %v2355 = vpack.c.b16 %v2316, %v2315
  %v2356 = vpack.c.b16 %v2318, %v2317
  %v2357 = vpack.c.b16 %v2320, %v2319
  %v2358 = vpack.c.b16 %v2322, %v2321
  %v2359 = vpack.c.b16 %v2324, %v2323
  %v2360 = vpack.c.b16 %v2326, %v2325
  %v2361 = vpack.c.b16 %v2328, %v2327
  %v2362 = vpack.c.b16 %v2330, %v2329
  %v2363 = vpack.c.b16 %v2332, %v2331
  %v2364 = vpack.c.b16 %v2334, %v2333
  %v2365 = vpack.c.b16 %v2336, %v2335
  %v2366 = vpack.c.b16 %v2338, %v2337
  %v2379 = vunpack.c.l.b16 %v2215
  %v2380 = vunpack.c.h.b16 %v2215
  %v2381 = vunpack.c.l.b16 %v2216
  %v2382 = vunpack.c.h.b16 %v2216
  %v2383 = vunpack.c.l.b16 %v2217
  %v2384 = vunpack.c.h.b16 %v2217
  %v2385 = vunpack.c.l.b16 %v2218
  %v2386 = vunpack.c.h.b16 %v2218
  %v2387 = vunpack.c.l.b16 %v2219
  %v2388 = vunpack.c.h.b16 %v2219
  %v2389 = vunpack.c.l.b16 %v2220
  %v2390 = vunpack.c.h.b16 %v2220
  %v2391 = vunpack.c.l.b16 %v2221
  %v2392 = vunpack.c.h.b16 %v2221
  %v2393 = vunpack.c.l.b16 %v2222
  %v2394 = vunpack.c.h.b16 %v2222
  %v2395 = vunpack.c.l.b16 %v2223
  %v2396 = vunpack.c.h.b16 %v2223
  %v2397 = vunpack.c.l.b16 %v2224
  %v2398 = vunpack.c.h.b16 %v2224
  %v2399 = vunpack.c.l.b16 %v2225
  %v2400 = vunpack.c.h.b16 %v2225
  %v2401 = vunpack.c.l.b16 %v2226
  %v2402 = vunpack.c.h.b16 %v2226
  %v2403 = vpack.c.b16 %v2381, %v2379
  %v2404 = vpack.c.b16 %v2382, %v2380
  %v2405 = vpack.c.b16 %v2385, %v2383
  %v2406 = vpack.c.b16 %v2386, %v2384
  %v2407 = vpack.c.b16 %v2389, %v2387
  %v2408 = vpack.c.b16 %v2390, %v2388
  %v2409 = vpack.c.b16 %v2393, %v2391
  %v2410 = vpack.c.b16 %v2394, %v2392
  %v2411 = vpack.c.b16 %v2397, %v2395
  %v2412 = vpack.c.b16 %v2398, %v2396
  %v2413 = vpack.c.b16 %v2401, %v2399
  %v2414 = vpack.c.b16 %v2402, %v2400
  %v2428 = vsel %vm383, %v2339, 0
  %v2431 = vsel %vm383, %v2340, 0
  %v2434 = vsel %vm383, %v2341, 0
  %v2437 = vsel %vm383, %v2342, 0
  %v2440 = vsel %vm383, %v2343, 0
  %v2443 = vsel %vm383, %v2344, 0
  %v2446 = vsel %vm383, %v2345, 0
  %v2449 = vsel %vm383, %v2346, 0
  %v2452 = vsel %vm383, %v2347, 0
  %v2455 = vsel %vm383, %v2348, 0
  %v2458 = vsel %vm383, %v2349, 0
  %v2461 = vsel %vm383, %v2350, 0
  %v2464 = vsel %vm383, %v2351, 0
  %v2467 = vsel %vm383, %v2352, 0
  %v2470 = vsel %vm383, %v2353, 0
  %v2473 = vsel %vm383, %v2354, 0
  %v2476 = vsel %vm383, %v2355, 0
  %v2479 = vsel %vm383, %v2356, 0
  %v2482 = vsel %vm383, %v2357, 0
  %v2485 = vsel %vm383, %v2358, 0
  %v2488 = vsel %vm383, %v2359, 0
  %v2491 = vsel %vm383, %v2360, 0
  %v2494 = vsel %vm383, %v2361, 0
  %v2497 = vsel %vm383, %v2362, 0
  %v2500 = vsel %vm383, %v2363, 0
  %v2503 = vsel %vm383, %v2364, 0
  %v2506 = vsel %vm383, %v2365, 0
  %v2509 = vsel %vm383, %v2366, 0
  %2511 = vmatprep.subr.bf16.mxu0 %v2404
  %2512 = vmatpush1.bf16.msra.mxu0 %v2403
  %2513 = vmatprep.subr.bf16.mxu0 %v2406
  %2514 = vmatpush1.bf16.msra.mxu0 %v2405
  %2515 = vmatprep.subr.bf16.mxu0 %v2408
  %2516 = vmatpush1.bf16.msra.mxu0 %v2407
  %2517 = vmatprep.subr.bf16.mxu0 %v2410
  %2518 = vmatpush1.bf16.msra.mxu0 %v2409
  %2519 = vmatprep.subr.bf16.mxu0 %v2412
  %2520 = vmatpush1.bf16.msra.mxu0 %v2411
  %2521 = vmatprep.subr.bf16.mxu0 %v2414
  %2522 = vmatpush1.bf16.msra.mxu0 %v2413
  %2523 = vmatprep.subr.bf16.mxu0 0
  %2524 = vmatpush1.bf16.msra.mxu0 0
  %2525 = vmatprep.subr.bf16.mxu0 0
  %2526 = vmatpush1.bf16.msra.mxu0 0
  %2527 = vmatprep.subr.bf16.mxu0 0
  %2528 = vmatpush1.bf16.msra.mxu0 0
  %2529 = vmatprep.subr.bf16.mxu0 0
  %2530 = vmatpush1.bf16.msra.mxu0 0
  %2531 = vmatprep.subr.bf16.mxu0 0
  %2532 = vmatpush1.bf16.msra.mxu0 0
  %2533 = vmatprep.subr.bf16.mxu0 0
  %2534 = vmatpush1.bf16.msra.mxu0 0
  %2535 = vmatprep.subr.bf16.mxu0 0
  %2536 = vmatpush1.bf16.msra.mxu0 0
  %2537 = vmatprep.subr.bf16.mxu0 0
  %2538 = vmatpush1.bf16.msra.mxu0 0
  %2539 = vmatprep.subr.bf16.mxu0 0
  %2540 = vmatpush1.bf16.msra.mxu0 0
  %2541 = vmatprep.subr.bf16.mxu0 0
  %2542 = vmatpush1.bf16.msra.mxu0 0
  %2543 = vmatprep.mubr.bf16.mxu0 0
  %2544 = vmatmul.mubr.bf16.gmra.mrb[0].mxu0 %v2428
  %v2545 = vpop.f32.mrb[0].mxu0
  %v2546 = vadd.f32 0.0, %v2545
  %v2547 = vpop.f32.mrb[0].mxu0
  %v2548 = vadd.f32 0.0, %v2547
  %v2549 = vpop.f32.mrb[0].mxu0
  %v2550 = vadd.f32 0.0, %v2549
  %v2551 = vpop.f32.mrb[0].mxu0
  %v2552 = vadd.f32 0.0, %v2551
  %2553 = vmatprep.mubr.bf16.mxu0 0
  %2554 = vmatmul.mubr.bf16.gmra.mrb[0].mxu0 %v2431
  %v2555 = vpop.f32.mrb[0].mxu0
  %v2556 = vadd.f32 0.0, %v2555
  %v2557 = vpop.f32.mrb[0].mxu0
  %v2558 = vadd.f32 0.0, %v2557
  %v2559 = vpop.f32.mrb[0].mxu0
  %v2560 = vadd.f32 0.0, %v2559
  %v2561 = vpop.f32.mrb[0].mxu0
  %v2562 = vadd.f32 0.0, %v2561
  %2563 = vmatprep.mubr.bf16.mxu0 0
  %2564 = vmatmul.mubr.bf16.gmra.mrb[0].mxu0 %v2434
  %v2565 = vpop.f32.mrb[0].mxu0
  %v2566 = vadd.f32 0.0, %v2565
  %v2567 = vpop.f32.mrb[0].mxu0
  %v2568 = vadd.f32 0.0, %v2567
  %v2569 = vpop.f32.mrb[0].mxu0
  %v2570 = vadd.f32 0.0, %v2569
  %v2571 = vpop.f32.mrb[0].mxu0
  %v2572 = vadd.f32 0.0, %v2571
  %2573 = vmatprep.mubr.bf16.mxu0 0
  %2574 = vmatmul.mubr.bf16.gmra.mrb[0].mxu0 %v2437
  %v2575 = vpop.f32.mrb[0].mxu0
  %v2576 = vadd.f32 0.0, %v2575
  %v2577 = vpop.f32.mrb[0].mxu0
  %v2578 = vadd.f32 0.0, %v2577
  %v2579 = vpop.f32.mrb[0].mxu0
  %v2580 = vadd.f32 0.0, %v2579
  %v2581 = vpop.f32.mrb[0].mxu0
  %v2582 = vadd.f32 0.0, %v2581
  %2583 = vmatprep.mubr.bf16.mxu0 0
  %2584 = vmatmul.mubr.bf16.gmra.mrb[0].mxu0 %v2440
  %v2585 = vpop.f32.mrb[0].mxu0
  %v2586 = vadd.f32 0.0, %v2585
  %v2587 = vpop.f32.mrb[0].mxu0
  %v2588 = vadd.f32 0.0, %v2587
  %v2589 = vpop.f32.mrb[0].mxu0
  %v2590 = vadd.f32 0.0, %v2589
  %v2591 = vpop.f32.mrb[0].mxu0
  %v2592 = vadd.f32 0.0, %v2591
  %2593 = vmatprep.mubr.bf16.mxu0 0
  %2594 = vmatmul.mubr.bf16.gmra.mrb[0].mxu0 %v2443
  %v2595 = vpop.f32.mrb[0].mxu0
  %v2596 = vadd.f32 0.0, %v2595
  %v2597 = vpop.f32.mrb[0].mxu0
  %v2598 = vadd.f32 0.0, %v2597
  %v2599 = vpop.f32.mrb[0].mxu0
  %v2600 = vadd.f32 0.0, %v2599
  %v2601 = vpop.f32.mrb[0].mxu0
  %v2602 = vadd.f32 0.0, %v2601
  %2603 = vmatprep.mubr.bf16.mxu0 0
  %2604 = vmatmul.mubr.bf16.gmra.mrb[0].mxu0 %v2446
  %v2605 = vpop.f32.mrb[0].mxu0
  %v2606 = vadd.f32 0.0, %v2605
  %v2607 = vpop.f32.mrb[0].mxu0
  %v2608 = vadd.f32 0.0, %v2607
  %v2609 = vpop.f32.mrb[0].mxu0
  %v2610 = vadd.f32 0.0, %v2609
  %v2611 = vpop.f32.mrb[0].mxu0
  %v2612 = vadd.f32 0.0, %v2611
  %2613 = vmatprep.mubr.bf16.mxu0 0
  %2614 = vmatmul.mubr.bf16.gmra.mrb[0].mxu0 %v2449
  %v2615 = vpop.f32.mrb[0].mxu0
  %v2616 = vadd.f32 0.0, %v2615
  %v2617 = vpop.f32.mrb[0].mxu0
  %v2618 = vadd.f32 0.0, %v2617
  %v2619 = vpop.f32.mrb[0].mxu0
  %v2620 = vadd.f32 0.0, %v2619
  %v2621 = vpop.f32.mrb[0].mxu0
  %v2622 = vadd.f32 0.0, %v2621
  %2623 = vmatprep.mubr.bf16.mxu0 0
  %2624 = vmatmul.mubr.bf16.gmra.mrb[0].mxu0 %v2452
  %v2625 = vpop.f32.mrb[0].mxu0
  %v2626 = vadd.f32 0.0, %v2625
  %v2627 = vpop.f32.mrb[0].mxu0
  %v2628 = vadd.f32 0.0, %v2627
  %v2629 = vpop.f32.mrb[0].mxu0
  %v2630 = vadd.f32 0.0, %v2629
  %v2631 = vpop.f32.mrb[0].mxu0
  %v2632 = vadd.f32 0.0, %v2631
  %2633 = vmatprep.mubr.bf16.mxu0 0
  %2634 = vmatmul.mubr.bf16.gmra.mrb[0].mxu0 %v2455
  %v2635 = vpop.f32.mrb[0].mxu0
  %v2636 = vadd.f32 0.0, %v2635
  %v2637 = vpop.f32.mrb[0].mxu0
  %v2638 = vadd.f32 0.0, %v2637
  %v2639 = vpop.f32.mrb[0].mxu0
  %v2640 = vadd.f32 0.0, %v2639
  %v2641 = vpop.f32.mrb[0].mxu0
  %v2642 = vadd.f32 0.0, %v2641
  %2643 = vmatprep.mubr.bf16.mxu0 0
  %2644 = vmatmul.mubr.bf16.gmra.mrb[0].mxu0 %v2458
  %v2645 = vpop.f32.mrb[0].mxu0
  %v2646 = vadd.f32 0.0, %v2645
  %v2647 = vpop.f32.mrb[0].mxu0
  %v2648 = vadd.f32 0.0, %v2647
  %v2649 = vpop.f32.mrb[0].mxu0
  %v2650 = vadd.f32 0.0, %v2649
  %v2651 = vpop.f32.mrb[0].mxu0
  %v2652 = vadd.f32 0.0, %v2651
  %2653 = vmatprep.mubr.bf16.mxu0 0
  %2654 = vmatmul.mubr.bf16.gmra.mrb[0].mxu0 %v2461
  %v2655 = vpop.f32.mrb[0].mxu0
  %v2656 = vadd.f32 0.0, %v2655
  %v2657 = vpop.f32.mrb[0].mxu0
  %v2658 = vadd.f32 0.0, %v2657
  %v2659 = vpop.f32.mrb[0].mxu0
  %v2660 = vadd.f32 0.0, %v2659
  %v2661 = vpop.f32.mrb[0].mxu0
  %v2662 = vadd.f32 0.0, %v2661
  %2663 = vmatprep.mubr.bf16.mxu0 0
  %2664 = vmatmul.mubr.bf16.gmra.mrb[0].mxu0 %v2464
  %v2665 = vpop.f32.mrb[0].mxu0
  %v2666 = vadd.f32 0.0, %v2665
  %v2667 = vpop.f32.mrb[0].mxu0
  %v2668 = vadd.f32 0.0, %v2667
  %v2669 = vpop.f32.mrb[0].mxu0
  %v2670 = vadd.f32 0.0, %v2669
  %v2671 = vpop.f32.mrb[0].mxu0
  %v2672 = vadd.f32 0.0, %v2671
  %2673 = vmatprep.mubr.bf16.mxu0 0
  %2674 = vmatmul.mubr.bf16.gmra.mrb[0].mxu0 %v2467
  %v2675 = vpop.f32.mrb[0].mxu0
  %v2676 = vadd.f32 0.0, %v2675
  %v2677 = vpop.f32.mrb[0].mxu0
  %v2678 = vadd.f32 0.0, %v2677
  %v2679 = vpop.f32.mrb[0].mxu0
  %v2680 = vadd.f32 0.0, %v2679
  %v2681 = vpop.f32.mrb[0].mxu0
  %v2682 = vadd.f32 0.0, %v2681
  %2683 = vmatprep.mubr.bf16.mxu0 0
  %2684 = vmatmul.mubr.bf16.gmra.mrb[0].mxu0 %v2470
  %v2685 = vpop.f32.mrb[0].mxu0
  %v2686 = vadd.f32 0.0, %v2685
  %v2687 = vpop.f32.mrb[0].mxu0
  %v2688 = vadd.f32 0.0, %v2687
  %v2689 = vpop.f32.mrb[0].mxu0
  %v2690 = vadd.f32 0.0, %v2689
  %v2691 = vpop.f32.mrb[0].mxu0
  %v2692 = vadd.f32 0.0, %v2691
  %2693 = vmatprep.mubr.bf16.mxu0 0
  %2694 = vmatmul.mubr.bf16.gmra.mrb[0].mxu0 %v2473
  %v2695 = vpop.f32.mrb[0].mxu0
  %v2696 = vadd.f32 0.0, %v2695
  %v2697 = vpop.f32.mrb[0].mxu0
  %v2698 = vadd.f32 0.0, %v2697
  %v2699 = vpop.f32.mrb[0].mxu0
  %v2700 = vadd.f32 0.0, %v2699
  %v2701 = vpop.f32.mrb[0].mxu0
  %v2702 = vadd.f32 0.0, %v2701
  %2703 = vmatprep.mubr.bf16.mxu0 0
  %2704 = vmatmul.mubr.bf16.gmra.mrb[0].mxu0 %v2476
  %v2705 = vpop.f32.mrb[0].mxu0
  %v2706 = vadd.f32 0.0, %v2705
  %v2707 = vpop.f32.mrb[0].mxu0
  %v2708 = vadd.f32 0.0, %v2707
  %v2709 = vpop.f32.mrb[0].mxu0
  %v2710 = vadd.f32 0.0, %v2709
  %v2711 = vpop.f32.mrb[0].mxu0
  %v2712 = vadd.f32 0.0, %v2711
  %2713 = vmatprep.mubr.bf16.mxu0 0
  %2714 = vmatmul.mubr.bf16.gmra.mrb[0].mxu0 %v2479
  %v2715 = vpop.f32.mrb[0].mxu0
  %v2716 = vadd.f32 0.0, %v2715
  %v2717 = vpop.f32.mrb[0].mxu0
  %v2718 = vadd.f32 0.0, %v2717
  %v2719 = vpop.f32.mrb[0].mxu0
  %v2720 = vadd.f32 0.0, %v2719
  %v2721 = vpop.f32.mrb[0].mxu0
  %v2722 = vadd.f32 0.0, %v2721
  %2723 = vmatprep.mubr.bf16.mxu0 0
  %2724 = vmatmul.mubr.bf16.gmra.mrb[0].mxu0 %v2482
  %v2725 = vpop.f32.mrb[0].mxu0
  %v2726 = vadd.f32 0.0, %v2725
  %v2727 = vpop.f32.mrb[0].mxu0
  %v2728 = vadd.f32 0.0, %v2727
  %v2729 = vpop.f32.mrb[0].mxu0
  %v2730 = vadd.f32 0.0, %v2729
  %v2731 = vpop.f32.mrb[0].mxu0
  %v2732 = vadd.f32 0.0, %v2731
  %2733 = vmatprep.mubr.bf16.mxu0 0
  %2734 = vmatmul.mubr.bf16.gmra.mrb[0].mxu0 %v2485
  %v2735 = vpop.f32.mrb[0].mxu0
  %v2736 = vadd.f32 0.0, %v2735
  %v2737 = vpop.f32.mrb[0].mxu0
  %v2738 = vadd.f32 0.0, %v2737
  %v2739 = vpop.f32.mrb[0].mxu0
  %v2740 = vadd.f32 0.0, %v2739
  %v2741 = vpop.f32.mrb[0].mxu0
  %v2742 = vadd.f32 0.0, %v2741
  %2743 = vmatprep.mubr.bf16.mxu0 0
  %2744 = vmatmul.mubr.bf16.gmra.mrb[0].mxu0 %v2488
  %v2745 = vpop.f32.mrb[0].mxu0
  %v2746 = vadd.f32 0.0, %v2745
  %v2747 = vpop.f32.mrb[0].mxu0
  %v2748 = vadd.f32 0.0, %v2747
  %v2749 = vpop.f32.mrb[0].mxu0
  %v2750 = vadd.f32 0.0, %v2749
  %v2751 = vpop.f32.mrb[0].mxu0
  %v2752 = vadd.f32 0.0, %v2751
  %2753 = vmatprep.mubr.bf16.mxu0 0
  %2754 = vmatmul.mubr.bf16.gmra.mrb[0].mxu0 %v2491
  %v2755 = vpop.f32.mrb[0].mxu0
  %v2756 = vadd.f32 0.0, %v2755
  %v2757 = vpop.f32.mrb[0].mxu0
  %v2758 = vadd.f32 0.0, %v2757
  %v2759 = vpop.f32.mrb[0].mxu0
  %v2760 = vadd.f32 0.0, %v2759
  %v2761 = vpop.f32.mrb[0].mxu0
  %v2762 = vadd.f32 0.0, %v2761
  %2763 = vmatprep.mubr.bf16.mxu0 0
  %2764 = vmatmul.mubr.bf16.gmra.mrb[0].mxu0 %v2494
  %v2765 = vpop.f32.mrb[0].mxu0
  %v2766 = vadd.f32 0.0, %v2765
  %v2767 = vpop.f32.mrb[0].mxu0
  %v2768 = vadd.f32 0.0, %v2767
  %v2769 = vpop.f32.mrb[0].mxu0
  %v2770 = vadd.f32 0.0, %v2769
  %v2771 = vpop.f32.mrb[0].mxu0
  %v2772 = vadd.f32 0.0, %v2771
  %2773 = vmatprep.mubr.bf16.mxu0 0
  %2774 = vmatmul.mubr.bf16.gmra.mrb[0].mxu0 %v2497
  %v2775 = vpop.f32.mrb[0].mxu0
  %v2776 = vadd.f32 0.0, %v2775
  %v2777 = vpop.f32.mrb[0].mxu0
  %v2778 = vadd.f32 0.0, %v2777
  %v2779 = vpop.f32.mrb[0].mxu0
  %v2780 = vadd.f32 0.0, %v2779
  %v2781 = vpop.f32.mrb[0].mxu0
  %v2782 = vadd.f32 0.0, %v2781
  %2783 = vmatprep.mubr.bf16.mxu0 0
  %2784 = vmatmul.mubr.bf16.gmra.mrb[0].mxu0 %v2500
  %v2785 = vpop.f32.mrb[0].mxu0
  %v2786 = vadd.f32 0.0, %v2785
  %v2787 = vpop.f32.mrb[0].mxu0
  %v2788 = vadd.f32 0.0, %v2787
  %v2789 = vpop.f32.mrb[0].mxu0
  %v2790 = vadd.f32 0.0, %v2789
  %v2791 = vpop.f32.mrb[0].mxu0
  %v2792 = vadd.f32 0.0, %v2791
  %2793 = vmatprep.mubr.bf16.mxu0 0
  %2794 = vmatmul.mubr.bf16.gmra.mrb[0].mxu0 %v2503
  %v2795 = vpop.f32.mrb[0].mxu0
  %v2796 = vadd.f32 0.0, %v2795
  %v2797 = vpop.f32.mrb[0].mxu0
  %v2798 = vadd.f32 0.0, %v2797
  %v2799 = vpop.f32.mrb[0].mxu0
  %v2800 = vadd.f32 0.0, %v2799
  %v2801 = vpop.f32.mrb[0].mxu0
  %v2802 = vadd.f32 0.0, %v2801
  %2803 = vmatprep.mubr.bf16.mxu0 0
  %2804 = vmatmul.mubr.bf16.gmra.mrb[0].mxu0 %v2506
  %v2805 = vpop.f32.mrb[0].mxu0
  %v2806 = vadd.f32 0.0, %v2805
  %v2807 = vpop.f32.mrb[0].mxu0
  %v2808 = vadd.f32 0.0, %v2807
  %v2809 = vpop.f32.mrb[0].mxu0
  %v2810 = vadd.f32 0.0, %v2809
  %v2811 = vpop.f32.mrb[0].mxu0
  %v2812 = vadd.f32 0.0, %v2811
  %2813 = vmatprep.mubr.bf16.mxu0 0
  %2814 = vmatmul.mubr.bf16.gmra.mrb[0].mxu0 %v2509
  %v2815 = vpop.f32.mrb[0].mxu0
  %v2816 = vadd.f32 0.0, %v2815
  %v2817 = vpop.f32.mrb[0].mxu0
  %v2818 = vadd.f32 0.0, %v2817
  %v2819 = vpop.f32.mrb[0].mxu0
  %v2820 = vadd.f32 0.0, %v2819
  %v2821 = vpop.f32.mrb[0].mxu0
  %v2822 = vadd.f32 0.0, %v2821
  %2823 = vdwg.mxu0
  %v2824 = vadd.f32 %v2045, %v2546
  %v2825 = vadd.f32 %v2046, %v2548
  %v2826 = vadd.f32 %v2047, %v2550
  %v2827 = vadd.f32 %v2048, %v2552
  %v2828 = vadd.f32 %v2049, %v2556
  %v2829 = vadd.f32 %v2050, %v2558
  %v2830 = vadd.f32 %v2051, %v2560
  %v2831 = vadd.f32 %v2052, %v2562
  %v2832 = vadd.f32 %v2053, %v2566
  %v2833 = vadd.f32 %v2054, %v2568
  %v2834 = vadd.f32 %v2055, %v2570
  %v2835 = vadd.f32 %v2056, %v2572
  %v2836 = vadd.f32 %v2057, %v2576
  %v2837 = vadd.f32 %v2058, %v2578
  %v2838 = vadd.f32 %v2059, %v2580
  %v2839 = vadd.f32 %v2060, %v2582
  %v2840 = vadd.f32 %v2061, %v2586
  %v2841 = vadd.f32 %v2062, %v2588
  %v2842 = vadd.f32 %v2063, %v2590
  %v2843 = vadd.f32 %v2064, %v2592
  %v2844 = vadd.f32 %v2065, %v2596
  %v2845 = vadd.f32 %v2066, %v2598
  %v2846 = vadd.f32 %v2067, %v2600
  %v2847 = vadd.f32 %v2068, %v2602
  %v2848 = vadd.f32 %v2069, %v2606
  %v2849 = vadd.f32 %v2070, %v2608
  %v2850 = vadd.f32 %v2071, %v2610
  %v2851 = vadd.f32 %v2072, %v2612
  %v2852 = vadd.f32 %v2073, %v2616
  %v2853 = vadd.f32 %v2074, %v2618
  %v2854 = vadd.f32 %v2075, %v2620
  %v2855 = vadd.f32 %v2076, %v2622
  %v2856 = vadd.f32 %v2077, %v2626
  %v2857 = vadd.f32 %v2078, %v2628
  %v2858 = vadd.f32 %v2079, %v2630
  %v2859 = vadd.f32 %v2080, %v2632
  %v2860 = vadd.f32 %v2081, %v2636
  %v2861 = vadd.f32 %v2082, %v2638
  %v2862 = vadd.f32 %v2083, %v2640
  %v2863 = vadd.f32 %v2084, %v2642
  %v2864 = vadd.f32 %v2085, %v2646
  %v2865 = vadd.f32 %v2086, %v2648
  %v2866 = vadd.f32 %v2087, %v2650
  %v2867 = vadd.f32 %v2088, %v2652
  %v2868 = vadd.f32 %v2089, %v2656
  %v2869 = vadd.f32 %v2090, %v2658
  %v2870 = vadd.f32 %v2091, %v2660
  %v2871 = vadd.f32 %v2092, %v2662
  %v2872 = vadd.f32 %v2093, %v2666
  %v2873 = vadd.f32 %v2094, %v2668
  %v2874 = vadd.f32 %v2095, %v2670
  %v2875 = vadd.f32 %v2096, %v2672
  %v2876 = vadd.f32 %v2097, %v2676
  %v2877 = vadd.f32 %v2098, %v2678
  %v2878 = vadd.f32 %v2099, %v2680
  %v2879 = vadd.f32 %v2100, %v2682
  %v2880 = vadd.f32 %v2101, %v2686
  %v2881 = vadd.f32 %v2102, %v2688
  %v2882 = vadd.f32 %v2103, %v2690
  %v2883 = vadd.f32 %v2104, %v2692
  %v2884 = vadd.f32 %v2105, %v2696
  %v2885 = vadd.f32 %v2106, %v2698
  %v2886 = vadd.f32 %v2107, %v2700
  %v2887 = vadd.f32 %v2108, %v2702
  %v2888 = vadd.f32 %v2109, %v2706
  %v2889 = vadd.f32 %v2110, %v2708
  %v2890 = vadd.f32 %v2111, %v2710
  %v2891 = vadd.f32 %v2112, %v2712
  %v2892 = vadd.f32 %v2113, %v2716
  %v2893 = vadd.f32 %v2114, %v2718
  %v2894 = vadd.f32 %v2115, %v2720
  %v2895 = vadd.f32 %v2116, %v2722
  %v2896 = vadd.f32 %v2117, %v2726
  %v2897 = vadd.f32 %v2118, %v2728
  %v2898 = vadd.f32 %v2119, %v2730
  %v2899 = vadd.f32 %v2120, %v2732
  %v2900 = vadd.f32 %v2121, %v2736
  %v2901 = vadd.f32 %v2122, %v2738
  %v2902 = vadd.f32 %v2123, %v2740
  %v2903 = vadd.f32 %v2124, %v2742
  %v2904 = vadd.f32 %v2125, %v2746
  %v2905 = vadd.f32 %v2126, %v2748
  %v2906 = vadd.f32 %v2127, %v2750
  %v2907 = vadd.f32 %v2128, %v2752
  %v2908 = vadd.f32 %v2129, %v2756
  %v2909 = vadd.f32 %v2130, %v2758
  %v2910 = vadd.f32 %v2131, %v2760
  %v2911 = vadd.f32 %v2132, %v2762
  %v2912 = vadd.f32 %v2133, %v2766
  %v2913 = vadd.f32 %v2134, %v2768
  %v2914 = vadd.f32 %v2135, %v2770
  %v2915 = vadd.f32 %v2136, %v2772
  %v2916 = vadd.f32 %v2137, %v2776
  %v2917 = vadd.f32 %v2138, %v2778
  %v2918 = vadd.f32 %v2139, %v2780
  %v2919 = vadd.f32 %v2140, %v2782
  %v2920 = vadd.f32 %v2141, %v2786
  %v2921 = vadd.f32 %v2142, %v2788
  %v2922 = vadd.f32 %v2143, %v2790
  %v2923 = vadd.f32 %v2144, %v2792
  %v2924 = vadd.f32 %v2145, %v2796
  %v2925 = vadd.f32 %v2146, %v2798
  %v2926 = vadd.f32 %v2147, %v2800
  %v2927 = vadd.f32 %v2148, %v2802
  %v2928 = vadd.f32 %v2149, %v2806
  %v2929 = vadd.f32 %v2150, %v2808
  %v2930 = vadd.f32 %v2151, %v2810
  %v2931 = vadd.f32 %v2152, %v2812
  %v2932 = vadd.f32 %v2153, %v2816
  %v2933 = vadd.f32 %v2154, %v2818
  %v2934 = vadd.f32 %v2155, %v2820
  %v2935 = vadd.f32 %v2156, %v2822
  %s2936 = scalar_lea.vmem %s0, 32
  %v2937 = vld [vmem:[%s2936] sm:$0xf]
  %v2938 = vld [vmem:[%s2936 + $0x4] sm:$0xf]
  %v2939 = vld [vmem:[%s2936 + $0x8] sm:$0xf]
  %v2940 = vld [vmem:[%s2936 + $0xc] sm:$0xf]
  %v2941 = vld [vmem:[%s2936 + $0x10] sm:$0xf]
  %v2942 = vld [vmem:[%s2936 + $0x14] sm:$0xf]
  %v2943 = vld [vmem:[%s2936 + $0x18] sm:$0xf]
  %v2944 = vld [vmem:[%s2936 + $0x1c] sm:$0xf]
  %v2945 = vld [vmem:[%s2936 + $0x20] sm:$0xf]
  %v2946 = vld [vmem:[%s2936 + $0x24] sm:$0xf]
  %v2947 = vld [vmem:[%s2936 + $0x28] sm:$0xf]
  %v2948 = vld [vmem:[%s2936 + $0x2c] sm:$0xf]
  %v2949 = vld [vmem:[%s2936 + $0x30] sm:$0xf]
  %v2950 = vld [vmem:[%s2936 + $0x34] sm:$0xf]
  %v2951 = vld [vmem:[%s2936 + $0x38] sm:$0xf]
  %v2952 = vld [vmem:[%s2936 + $0x3c] sm:$0xf]
  %v2953 = vld [vmem:[%s2936 + $0x40] sm:$0xf]
  %v2954 = vld [vmem:[%s2936 + $0x44] sm:$0xf]
  %v2955 = vld [vmem:[%s2936 + $0x48] sm:$0xf]
  %v2956 = vld [vmem:[%s2936 + $0x4c] sm:$0xf]
  %v2957 = vld [vmem:[%s2936 + $0x50] sm:$0xf]
  %v2958 = vld [vmem:[%s2936 + $0x54] sm:$0xf]
  %v2959 = vld [vmem:[%s2936 + $0x58] sm:$0xf]
  %v2960 = vld [vmem:[%s2936 + $0x5c] sm:$0xf]
  %v2961 = vld [vmem:[%s2936 + $0x60] sm:$0xf]
  %v2962 = vld [vmem:[%s2936 + $0x64] sm:$0xf]
  %v2963 = vld [vmem:[%s2936 + $0x68] sm:$0xf]
  %v2964 = vld [vmem:[%s2936 + $0x6c] sm:$0xf]
  %v2965 = vld [vmem:[%s2936 + $0x70] sm:$0xf]
  %v2966 = vld [vmem:[%s2936 + $0x74] sm:$0xf]
  %v2967 = vld [vmem:[%s2936 + $0x78] sm:$0xf]
  %v2968 = vld [vmem:[%s2936 + $0x7c] sm:$0xf]
  %v2969 = vld [vmem:[%s2936 + $0x80] sm:$0xf]
  %v2970 = vld [vmem:[%s2936 + $0x84] sm:$0xf]
  %v2971 = vld [vmem:[%s2936 + $0x88] sm:$0xf]
  %v2972 = vld [vmem:[%s2936 + $0x8c] sm:$0xf]
  %v2973 = vld [vmem:[%s2936 + $0x90] sm:$0xf]
  %v2974 = vld [vmem:[%s2936 + $0x94] sm:$0xf]
  %v2975 = vld [vmem:[%s2936 + $0x98] sm:$0xf]
  %v2976 = vld [vmem:[%s2936 + $0x9c] sm:$0xf]
  %v2977 = vld [vmem:[%s2936 + $0xa0] sm:$0xf]
  %v2978 = vld [vmem:[%s2936 + $0xa4] sm:$0xf]
  %v2979 = vld [vmem:[%s2936 + $0xa8] sm:$0xf]
  %v2980 = vld [vmem:[%s2936 + $0xac] sm:$0xf]
  %v2981 = vld [vmem:[%s2936 + $0xb0] sm:$0xf]
  %v2982 = vld [vmem:[%s2936 + $0xb4] sm:$0xf]
  %v2983 = vld [vmem:[%s2936 + $0xb8] sm:$0xf]
  %v2984 = vld [vmem:[%s2936 + $0xbc] sm:$0xf]
  %v2985 = vld [vmem:[%s2936 + $0xc0] sm:$0xf]
  %v2986 = vld [vmem:[%s2936 + $0xc4] sm:$0xf]
  %v2987 = vld [vmem:[%s2936 + $0xc8] sm:$0xf]
  %v2988 = vld [vmem:[%s2936 + $0xcc] sm:$0xf]
  %v2989 = vld [vmem:[%s2936 + $0xd0] sm:$0xf]
  %v2990 = vld [vmem:[%s2936 + $0xd4] sm:$0xf]
  %v2991 = vld [vmem:[%s2936 + $0xd8] sm:$0xf]
  %v2992 = vld [vmem:[%s2936 + $0xdc] sm:$0xf]
  %s2993 = scalar_lea.vmem %s1, 384
  %v2994 = vld [vmem:[%s2993] sm:$0xff]
  %v2995 = vld [vmem:[%s2993 + $0x8] sm:$0xff]
  %v2996 = vld [vmem:[%s2993 + $0x10] sm:$0xff]
  %v2997 = vld [vmem:[%s2993 + $0x18] sm:$0xff]
  %v2998 = vld [vmem:[%s2993 + $0x20] sm:$0xff]
  %v2999 = vld [vmem:[%s2993 + $0x28] sm:$0xff]
  %v3000 = vld [vmem:[%s2993 + $0x30] sm:$0xff]
  %v3001 = vld [vmem:[%s2993 + $0x38] sm:$0xff]
  %v3002 = vld [vmem:[%s2993 + $0x40] sm:$0xff]
  %v3003 = vld [vmem:[%s2993 + $0x48] sm:$0xff]
  %v3004 = vld [vmem:[%s2993 + $0x50] sm:$0xff]
  %v3005 = vld [vmem:[%s2993 + $0x58] sm:$0xff]
  %v3062 = vunpack.c.l.b16 %v2937
  %v3063 = vunpack.c.l.b16 %v2938
  %v3064 = vunpack.c.l.b16 %v2939
  %v3065 = vunpack.c.l.b16 %v2940
  %v3066 = vunpack.c.l.b16 %v2941
  %v3067 = vunpack.c.l.b16 %v2942
  %v3068 = vunpack.c.l.b16 %v2943
  %v3069 = vunpack.c.l.b16 %v2944
  %v3070 = vunpack.c.l.b16 %v2945
  %v3071 = vunpack.c.l.b16 %v2946
  %v3072 = vunpack.c.l.b16 %v2947
  %v3073 = vunpack.c.l.b16 %v2948
  %v3074 = vunpack.c.l.b16 %v2949
  %v3075 = vunpack.c.l.b16 %v2950
  %v3076 = vunpack.c.l.b16 %v2951
  %v3077 = vunpack.c.l.b16 %v2952
  %v3078 = vunpack.c.l.b16 %v2953
  %v3079 = vunpack.c.l.b16 %v2954
  %v3080 = vunpack.c.l.b16 %v2955
  %v3081 = vunpack.c.l.b16 %v2956
  %v3082 = vunpack.c.l.b16 %v2957
  %v3083 = vunpack.c.l.b16 %v2958
  %v3084 = vunpack.c.l.b16 %v2959
  %v3085 = vunpack.c.l.b16 %v2960
  %v3086 = vunpack.c.l.b16 %v2961
  %v3087 = vunpack.c.l.b16 %v2962
  %v3088 = vunpack.c.l.b16 %v2963
  %v3089 = vunpack.c.l.b16 %v2964
  %v3090 = vunpack.c.l.b16 %v2965
  %v3091 = vunpack.c.l.b16 %v2966
  %v3092 = vunpack.c.l.b16 %v2967
  %v3093 = vunpack.c.l.b16 %v2968
  %v3094 = vunpack.c.l.b16 %v2969
  %v3095 = vunpack.c.l.b16 %v2970
  %v3096 = vunpack.c.l.b16 %v2971
  %v3097 = vunpack.c.l.b16 %v2972
  %v3098 = vunpack.c.l.b16 %v2973
  %v3099 = vunpack.c.l.b16 %v2974
  %v3100 = vunpack.c.l.b16 %v2975
  %v3101 = vunpack.c.l.b16 %v2976
  %v3102 = vunpack.c.l.b16 %v2977
  %v3103 = vunpack.c.l.b16 %v2978
  %v3104 = vunpack.c.l.b16 %v2979
  %v3105 = vunpack.c.l.b16 %v2980
  %v3106 = vunpack.c.l.b16 %v2981
  %v3107 = vunpack.c.l.b16 %v2982
  %v3108 = vunpack.c.l.b16 %v2983
  %v3109 = vunpack.c.l.b16 %v2984
  %v3110 = vunpack.c.l.b16 %v2985
  %v3111 = vunpack.c.l.b16 %v2986
  %v3112 = vunpack.c.l.b16 %v2987
  %v3113 = vunpack.c.l.b16 %v2988
  %v3114 = vunpack.c.l.b16 %v2989
  %v3115 = vunpack.c.l.b16 %v2990
  %v3116 = vunpack.c.l.b16 %v2991
  %v3117 = vunpack.c.l.b16 %v2992
  %v3118 = vpack.c.b16 %v3063, %v3062
  %v3119 = vpack.c.b16 %v3065, %v3064
  %v3120 = vpack.c.b16 %v3067, %v3066
  %v3121 = vpack.c.b16 %v3069, %v3068
  %v3122 = vpack.c.b16 %v3071, %v3070
  %v3123 = vpack.c.b16 %v3073, %v3072
  %v3124 = vpack.c.b16 %v3075, %v3074
  %v3125 = vpack.c.b16 %v3077, %v3076
  %v3126 = vpack.c.b16 %v3079, %v3078
  %v3127 = vpack.c.b16 %v3081, %v3080
  %v3128 = vpack.c.b16 %v3083, %v3082
  %v3129 = vpack.c.b16 %v3085, %v3084
  %v3130 = vpack.c.b16 %v3087, %v3086
  %v3131 = vpack.c.b16 %v3089, %v3088
  %v3132 = vpack.c.b16 %v3091, %v3090
  %v3133 = vpack.c.b16 %v3093, %v3092
  %v3134 = vpack.c.b16 %v3095, %v3094
  %v3135 = vpack.c.b16 %v3097, %v3096
  %v3136 = vpack.c.b16 %v3099, %v3098
  %v3137 = vpack.c.b16 %v3101, %v3100
  %v3138 = vpack.c.b16 %v3103, %v3102
  %v3139 = vpack.c.b16 %v3105, %v3104
  %v3140 = vpack.c.b16 %v3107, %v3106
  %v3141 = vpack.c.b16 %v3109, %v3108
  %v3142 = vpack.c.b16 %v3111, %v3110
  %v3143 = vpack.c.b16 %v3113, %v3112
  %v3144 = vpack.c.b16 %v3115, %v3114
  %v3145 = vpack.c.b16 %v3117, %v3116
  %v3158 = vunpack.c.l.b16 %v2994
  %v3159 = vunpack.c.h.b16 %v2994
  %v3160 = vunpack.c.l.b16 %v2995
  %v3161 = vunpack.c.h.b16 %v2995
  %v3162 = vunpack.c.l.b16 %v2996
  %v3163 = vunpack.c.h.b16 %v2996
  %v3164 = vunpack.c.l.b16 %v2997
  %v3165 = vunpack.c.h.b16 %v2997
  %v3166 = vunpack.c.l.b16 %v2998
  %v3167 = vunpack.c.h.b16 %v2998
  %v3168 = vunpack.c.l.b16 %v2999
  %v3169 = vunpack.c.h.b16 %v2999
  %v3170 = vunpack.c.l.b16 %v3000
  %v3171 = vunpack.c.h.b16 %v3000
  %v3172 = vunpack.c.l.b16 %v3001
  %v3173 = vunpack.c.h.b16 %v3001
  %v3174 = vunpack.c.l.b16 %v3002
  %v3175 = vunpack.c.h.b16 %v3002
  %v3176 = vunpack.c.l.b16 %v3003
  %v3177 = vunpack.c.h.b16 %v3003
  %v3178 = vunpack.c.l.b16 %v3004
  %v3179 = vunpack.c.h.b16 %v3004
  %v3180 = vunpack.c.l.b16 %v3005
  %v3181 = vunpack.c.h.b16 %v3005
  %v3182 = vpack.c.b16 %v3160, %v3158
  %v3183 = vpack.c.b16 %v3161, %v3159
  %v3184 = vpack.c.b16 %v3164, %v3162
  %v3185 = vpack.c.b16 %v3165, %v3163
  %v3186 = vpack.c.b16 %v3168, %v3166
  %v3187 = vpack.c.b16 %v3169, %v3167
  %v3188 = vpack.c.b16 %v3172, %v3170
  %v3189 = vpack.c.b16 %v3173, %v3171
  %v3190 = vpack.c.b16 %v3176, %v3174
  %v3191 = vpack.c.b16 %v3177, %v3175
  %v3192 = vpack.c.b16 %v3180, %v3178
  %v3193 = vpack.c.b16 %v3181, %v3179
  %v3207 = vsel %vm383, %v3118, 0
  %v3210 = vsel %vm383, %v3119, 0
  %v3213 = vsel %vm383, %v3120, 0
  %v3216 = vsel %vm383, %v3121, 0
  %v3219 = vsel %vm383, %v3122, 0
  %v3222 = vsel %vm383, %v3123, 0
  %v3225 = vsel %vm383, %v3124, 0
  %v3228 = vsel %vm383, %v3125, 0
  %v3231 = vsel %vm383, %v3126, 0
  %v3234 = vsel %vm383, %v3127, 0
  %v3237 = vsel %vm383, %v3128, 0
  %v3240 = vsel %vm383, %v3129, 0
  %v3243 = vsel %vm383, %v3130, 0
  %v3246 = vsel %vm383, %v3131, 0
  %v3249 = vsel %vm383, %v3132, 0
  %v3252 = vsel %vm383, %v3133, 0
  %v3255 = vsel %vm383, %v3134, 0
  %v3258 = vsel %vm383, %v3135, 0
  %v3261 = vsel %vm383, %v3136, 0
  %v3264 = vsel %vm383, %v3137, 0
  %v3267 = vsel %vm383, %v3138, 0
  %v3270 = vsel %vm383, %v3139, 0
  %v3273 = vsel %vm383, %v3140, 0
  %v3276 = vsel %vm383, %v3141, 0
  %v3279 = vsel %vm383, %v3142, 0
  %v3282 = vsel %vm383, %v3143, 0
  %v3285 = vsel %vm383, %v3144, 0
  %v3288 = vsel %vm383, %v3145, 0
  %3290 = vmatprep.subr.bf16.mxu0 %v3183
  %3291 = vmatpush1.bf16.msra.mxu0 %v3182
  %3292 = vmatprep.subr.bf16.mxu0 %v3185
  %3293 = vmatpush1.bf16.msra.mxu0 %v3184
  %3294 = vmatprep.subr.bf16.mxu0 %v3187
  %3295 = vmatpush1.bf16.msra.mxu0 %v3186
  %3296 = vmatprep.subr.bf16.mxu0 %v3189
  %3297 = vmatpush1.bf16.msra.mxu0 %v3188
  %3298 = vmatprep.subr.bf16.mxu0 %v3191
  %3299 = vmatpush1.bf16.msra.mxu0 %v3190
  %3300 = vmatprep.subr.bf16.mxu0 %v3193
  %3301 = vmatpush1.bf16.msra.mxu0 %v3192
  %3302 = vmatprep.subr.bf16.mxu0 0
  %3303 = vmatpush1.bf16.msra.mxu0 0
  %3304 = vmatprep.subr.bf16.mxu0 0
  %3305 = vmatpush1.bf16.msra.mxu0 0
  %3306 = vmatprep.subr.bf16.mxu0 0
  %3307 = vmatpush1.bf16.msra.mxu0 0
  %3308 = vmatprep.subr.bf16.mxu0 0
  %3309 = vmatpush1.bf16.msra.mxu0 0
  %3310 = vmatprep.subr.bf16.mxu0 0
  %3311 = vmatpush1.bf16.msra.mxu0 0
  %3312 = vmatprep.subr.bf16.mxu0 0
  %3313 = vmatpush1.bf16.msra.mxu0 0
  %3314 = vmatprep.subr.bf16.mxu0 0
  %3315 = vmatpush1.bf16.msra.mxu0 0
  %3316 = vmatprep.subr.bf16.mxu0 0
  %3317 = vmatpush1.bf16.msra.mxu0 0
  %3318 = vmatprep.subr.bf16.mxu0 0
  %3319 = vmatpush1.bf16.msra.mxu0 0
  %3320 = vmatprep.subr.bf16.mxu0 0
  %3321 = vmatpush1.bf16.msra.mxu0 0
  %3322 = vmatprep.mubr.bf16.mxu0 0
  %3323 = vmatmul.mubr.bf16.gmra.mrb[0].mxu0 %v3207
  %v3324 = vpop.f32.mrb[0].mxu0
  %v3325 = vadd.f32 0.0, %v3324
  %v3326 = vpop.f32.mrb[0].mxu0
  %v3327 = vadd.f32 0.0, %v3326
  %v3328 = vpop.f32.mrb[0].mxu0
  %v3329 = vadd.f32 0.0, %v3328
  %v3330 = vpop.f32.mrb[0].mxu0
  %v3331 = vadd.f32 0.0, %v3330
  %3332 = vmatprep.mubr.bf16.mxu0 0
  %3333 = vmatmul.mubr.bf16.gmra.mrb[0].mxu0 %v3210
  %v3334 = vpop.f32.mrb[0].mxu0
  %v3335 = vadd.f32 0.0, %v3334
  %v3336 = vpop.f32.mrb[0].mxu0
  %v3337 = vadd.f32 0.0, %v3336
  %v3338 = vpop.f32.mrb[0].mxu0
  %v3339 = vadd.f32 0.0, %v3338
  %v3340 = vpop.f32.mrb[0].mxu0
  %v3341 = vadd.f32 0.0, %v3340
  %3342 = vmatprep.mubr.bf16.mxu0 0
  %3343 = vmatmul.mubr.bf16.gmra.mrb[0].mxu0 %v3213
  %v3344 = vpop.f32.mrb[0].mxu0
  %v3345 = vadd.f32 0.0, %v3344
  %v3346 = vpop.f32.mrb[0].mxu0
  %v3347 = vadd.f32 0.0, %v3346
  %v3348 = vpop.f32.mrb[0].mxu0
  %v3349 = vadd.f32 0.0, %v3348
  %v3350 = vpop.f32.mrb[0].mxu0
  %v3351 = vadd.f32 0.0, %v3350
  %3352 = vmatprep.mubr.bf16.mxu0 0
  %3353 = vmatmul.mubr.bf16.gmra.mrb[0].mxu0 %v3216
  %v3354 = vpop.f32.mrb[0].mxu0
  %v3355 = vadd.f32 0.0, %v3354
  %v3356 = vpop.f32.mrb[0].mxu0
  %v3357 = vadd.f32 0.0, %v3356
  %v3358 = vpop.f32.mrb[0].mxu0
  %v3359 = vadd.f32 0.0, %v3358
  %v3360 = vpop.f32.mrb[0].mxu0
  %v3361 = vadd.f32 0.0, %v3360
  %3362 = vmatprep.mubr.bf16.mxu0 0
  %3363 = vmatmul.mubr.bf16.gmra.mrb[0].mxu0 %v3219
  %v3364 = vpop.f32.mrb[0].mxu0
  %v3365 = vadd.f32 0.0, %v3364
  %v3366 = vpop.f32.mrb[0].mxu0
  %v3367 = vadd.f32 0.0, %v3366
  %v3368 = vpop.f32.mrb[0].mxu0
  %v3369 = vadd.f32 0.0, %v3368
  %v3370 = vpop.f32.mrb[0].mxu0
  %v3371 = vadd.f32 0.0, %v3370
  %3372 = vmatprep.mubr.bf16.mxu0 0
  %3373 = vmatmul.mubr.bf16.gmra.mrb[0].mxu0 %v3222
  %v3374 = vpop.f32.mrb[0].mxu0
  %v3375 = vadd.f32 0.0, %v3374
  %v3376 = vpop.f32.mrb[0].mxu0
  %v3377 = vadd.f32 0.0, %v3376
  %v3378 = vpop.f32.mrb[0].mxu0
  %v3379 = vadd.f32 0.0, %v3378
  %v3380 = vpop.f32.mrb[0].mxu0
  %v3381 = vadd.f32 0.0, %v3380
  %3382 = vmatprep.mubr.bf16.mxu0 0
  %3383 = vmatmul.mubr.bf16.gmra.mrb[0].mxu0 %v3225
  %v3384 = vpop.f32.mrb[0].mxu0
  %v3385 = vadd.f32 0.0, %v3384
  %v3386 = vpop.f32.mrb[0].mxu0
  %v3387 = vadd.f32 0.0, %v3386
  %v3388 = vpop.f32.mrb[0].mxu0
  %v3389 = vadd.f32 0.0, %v3388
  %v3390 = vpop.f32.mrb[0].mxu0
  %v3391 = vadd.f32 0.0, %v3390
  %3392 = vmatprep.mubr.bf16.mxu0 0
  %3393 = vmatmul.mubr.bf16.gmra.mrb[0].mxu0 %v3228
  %v3394 = vpop.f32.mrb[0].mxu0
  %v3395 = vadd.f32 0.0, %v3394
  %v3396 = vpop.f32.mrb[0].mxu0
  %v3397 = vadd.f32 0.0, %v3396
  %v3398 = vpop.f32.mrb[0].mxu0
  %v3399 = vadd.f32 0.0, %v3398
  %v3400 = vpop.f32.mrb[0].mxu0
  %v3401 = vadd.f32 0.0, %v3400
  %3402 = vmatprep.mubr.bf16.mxu0 0
  %3403 = vmatmul.mubr.bf16.gmra.mrb[0].mxu0 %v3231
  %v3404 = vpop.f32.mrb[0].mxu0
  %v3405 = vadd.f32 0.0, %v3404
  %v3406 = vpop.f32.mrb[0].mxu0
  %v3407 = vadd.f32 0.0, %v3406
  %v3408 = vpop.f32.mrb[0].mxu0
  %v3409 = vadd.f32 0.0, %v3408
  %v3410 = vpop.f32.mrb[0].mxu0
  %v3411 = vadd.f32 0.0, %v3410
  %3412 = vmatprep.mubr.bf16.mxu0 0
  %3413 = vmatmul.mubr.bf16.gmra.mrb[0].mxu0 %v3234
  %v3414 = vpop.f32.mrb[0].mxu0
  %v3415 = vadd.f32 0.0, %v3414
  %v3416 = vpop.f32.mrb[0].mxu0
  %v3417 = vadd.f32 0.0, %v3416
  %v3418 = vpop.f32.mrb[0].mxu0
  %v3419 = vadd.f32 0.0, %v3418
  %v3420 = vpop.f32.mrb[0].mxu0
  %v3421 = vadd.f32 0.0, %v3420
  %3422 = vmatprep.mubr.bf16.mxu0 0
  %3423 = vmatmul.mubr.bf16.gmra.mrb[0].mxu0 %v3237
  %v3424 = vpop.f32.mrb[0].mxu0
  %v3425 = vadd.f32 0.0, %v3424
  %v3426 = vpop.f32.mrb[0].mxu0
  %v3427 = vadd.f32 0.0, %v3426
  %v3428 = vpop.f32.mrb[0].mxu0
  %v3429 = vadd.f32 0.0, %v3428
  %v3430 = vpop.f32.mrb[0].mxu0
  %v3431 = vadd.f32 0.0, %v3430
  %3432 = vmatprep.mubr.bf16.mxu0 0
  %3433 = vmatmul.mubr.bf16.gmra.mrb[0].mxu0 %v3240
  %v3434 = vpop.f32.mrb[0].mxu0
  %v3435 = vadd.f32 0.0, %v3434
  %v3436 = vpop.f32.mrb[0].mxu0
  %v3437 = vadd.f32 0.0, %v3436
  %v3438 = vpop.f32.mrb[0].mxu0
  %v3439 = vadd.f32 0.0, %v3438
  %v3440 = vpop.f32.mrb[0].mxu0
  %v3441 = vadd.f32 0.0, %v3440
  %3442 = vmatprep.mubr.bf16.mxu0 0
  %3443 = vmatmul.mubr.bf16.gmra.mrb[0].mxu0 %v3243
  %v3444 = vpop.f32.mrb[0].mxu0
  %v3445 = vadd.f32 0.0, %v3444
  %v3446 = vpop.f32.mrb[0].mxu0
  %v3447 = vadd.f32 0.0, %v3446
  %v3448 = vpop.f32.mrb[0].mxu0
  %v3449 = vadd.f32 0.0, %v3448
  %v3450 = vpop.f32.mrb[0].mxu0
  %v3451 = vadd.f32 0.0, %v3450
  %3452 = vmatprep.mubr.bf16.mxu0 0
  %3453 = vmatmul.mubr.bf16.gmra.mrb[0].mxu0 %v3246
  %v3454 = vpop.f32.mrb[0].mxu0
  %v3455 = vadd.f32 0.0, %v3454
  %v3456 = vpop.f32.mrb[0].mxu0
  %v3457 = vadd.f32 0.0, %v3456
  %v3458 = vpop.f32.mrb[0].mxu0
  %v3459 = vadd.f32 0.0, %v3458
  %v3460 = vpop.f32.mrb[0].mxu0
  %v3461 = vadd.f32 0.0, %v3460
  %3462 = vmatprep.mubr.bf16.mxu0 0
  %3463 = vmatmul.mubr.bf16.gmra.mrb[0].mxu0 %v3249
  %v3464 = vpop.f32.mrb[0].mxu0
  %v3465 = vadd.f32 0.0, %v3464
  %v3466 = vpop.f32.mrb[0].mxu0
  %v3467 = vadd.f32 0.0, %v3466
  %v3468 = vpop.f32.mrb[0].mxu0
  %v3469 = vadd.f32 0.0, %v3468
  %v3470 = vpop.f32.mrb[0].mxu0
  %v3471 = vadd.f32 0.0, %v3470
  %3472 = vmatprep.mubr.bf16.mxu0 0
  %3473 = vmatmul.mubr.bf16.gmra.mrb[0].mxu0 %v3252
  %v3474 = vpop.f32.mrb[0].mxu0
  %v3475 = vadd.f32 0.0, %v3474
  %v3476 = vpop.f32.mrb[0].mxu0
  %v3477 = vadd.f32 0.0, %v3476
  %v3478 = vpop.f32.mrb[0].mxu0
  %v3479 = vadd.f32 0.0, %v3478
  %v3480 = vpop.f32.mrb[0].mxu0
  %v3481 = vadd.f32 0.0, %v3480
  %3482 = vmatprep.mubr.bf16.mxu0 0
  %3483 = vmatmul.mubr.bf16.gmra.mrb[0].mxu0 %v3255
  %v3484 = vpop.f32.mrb[0].mxu0
  %v3485 = vadd.f32 0.0, %v3484
  %v3486 = vpop.f32.mrb[0].mxu0
  %v3487 = vadd.f32 0.0, %v3486
  %v3488 = vpop.f32.mrb[0].mxu0
  %v3489 = vadd.f32 0.0, %v3488
  %v3490 = vpop.f32.mrb[0].mxu0
  %v3491 = vadd.f32 0.0, %v3490
  %3492 = vmatprep.mubr.bf16.mxu0 0
  %3493 = vmatmul.mubr.bf16.gmra.mrb[0].mxu0 %v3258
  %v3494 = vpop.f32.mrb[0].mxu0
  %v3495 = vadd.f32 0.0, %v3494
  %v3496 = vpop.f32.mrb[0].mxu0
  %v3497 = vadd.f32 0.0, %v3496
  %v3498 = vpop.f32.mrb[0].mxu0
  %v3499 = vadd.f32 0.0, %v3498
  %v3500 = vpop.f32.mrb[0].mxu0
  %v3501 = vadd.f32 0.0, %v3500
  %3502 = vmatprep.mubr.bf16.mxu0 0
  %3503 = vmatmul.mubr.bf16.gmra.mrb[0].mxu0 %v3261
  %v3504 = vpop.f32.mrb[0].mxu0
  %v3505 = vadd.f32 0.0, %v3504
  %v3506 = vpop.f32.mrb[0].mxu0
  %v3507 = vadd.f32 0.0, %v3506
  %v3508 = vpop.f32.mrb[0].mxu0
  %v3509 = vadd.f32 0.0, %v3508
  %v3510 = vpop.f32.mrb[0].mxu0
  %v3511 = vadd.f32 0.0, %v3510
  %3512 = vmatprep.mubr.bf16.mxu0 0
  %3513 = vmatmul.mubr.bf16.gmra.mrb[0].mxu0 %v3264
  %v3514 = vpop.f32.mrb[0].mxu0
  %v3515 = vadd.f32 0.0, %v3514
  %v3516 = vpop.f32.mrb[0].mxu0
  %v3517 = vadd.f32 0.0, %v3516
  %v3518 = vpop.f32.mrb[0].mxu0
  %v3519 = vadd.f32 0.0, %v3518
  %v3520 = vpop.f32.mrb[0].mxu0
  %v3521 = vadd.f32 0.0, %v3520
  %3522 = vmatprep.mubr.bf16.mxu0 0
  %3523 = vmatmul.mubr.bf16.gmra.mrb[0].mxu0 %v3267
  %v3524 = vpop.f32.mrb[0].mxu0
  %v3525 = vadd.f32 0.0, %v3524
  %v3526 = vpop.f32.mrb[0].mxu0
  %v3527 = vadd.f32 0.0, %v3526
  %v3528 = vpop.f32.mrb[0].mxu0
  %v3529 = vadd.f32 0.0, %v3528
  %v3530 = vpop.f32.mrb[0].mxu0
  %v3531 = vadd.f32 0.0, %v3530
  %3532 = vmatprep.mubr.bf16.mxu0 0
  %3533 = vmatmul.mubr.bf16.gmra.mrb[0].mxu0 %v3270
  %v3534 = vpop.f32.mrb[0].mxu0
  %v3535 = vadd.f32 0.0, %v3534
  %v3536 = vpop.f32.mrb[0].mxu0
  %v3537 = vadd.f32 0.0, %v3536
  %v3538 = vpop.f32.mrb[0].mxu0
  %v3539 = vadd.f32 0.0, %v3538
  %v3540 = vpop.f32.mrb[0].mxu0
  %v3541 = vadd.f32 0.0, %v3540
  %3542 = vmatprep.mubr.bf16.mxu0 0
  %3543 = vmatmul.mubr.bf16.gmra.mrb[0].mxu0 %v3273
  %v3544 = vpop.f32.mrb[0].mxu0
  %v3545 = vadd.f32 0.0, %v3544
  %v3546 = vpop.f32.mrb[0].mxu0
  %v3547 = vadd.f32 0.0, %v3546
  %v3548 = vpop.f32.mrb[0].mxu0
  %v3549 = vadd.f32 0.0, %v3548
  %v3550 = vpop.f32.mrb[0].mxu0
  %v3551 = vadd.f32 0.0, %v3550
  %3552 = vmatprep.mubr.bf16.mxu0 0
  %3553 = vmatmul.mubr.bf16.gmra.mrb[0].mxu0 %v3276
  %v3554 = vpop.f32.mrb[0].mxu0
  %v3555 = vadd.f32 0.0, %v3554
  %v3556 = vpop.f32.mrb[0].mxu0
  %v3557 = vadd.f32 0.0, %v3556
  %v3558 = vpop.f32.mrb[0].mxu0
  %v3559 = vadd.f32 0.0, %v3558
  %v3560 = vpop.f32.mrb[0].mxu0
  %v3561 = vadd.f32 0.0, %v3560
  %3562 = vmatprep.mubr.bf16.mxu0 0
  %3563 = vmatmul.mubr.bf16.gmra.mrb[0].mxu0 %v3279
  %v3564 = vpop.f32.mrb[0].mxu0
  %v3565 = vadd.f32 0.0, %v3564
  %v3566 = vpop.f32.mrb[0].mxu0
  %v3567 = vadd.f32 0.0, %v3566
  %v3568 = vpop.f32.mrb[0].mxu0
  %v3569 = vadd.f32 0.0, %v3568
  %v3570 = vpop.f32.mrb[0].mxu0
  %v3571 = vadd.f32 0.0, %v3570
  %3572 = vmatprep.mubr.bf16.mxu0 0
  %3573 = vmatmul.mubr.bf16.gmra.mrb[0].mxu0 %v3282
  %v3574 = vpop.f32.mrb[0].mxu0
  %v3575 = vadd.f32 0.0, %v3574
  %v3576 = vpop.f32.mrb[0].mxu0
  %v3577 = vadd.f32 0.0, %v3576
  %v3578 = vpop.f32.mrb[0].mxu0
  %v3579 = vadd.f32 0.0, %v3578
  %v3580 = vpop.f32.mrb[0].mxu0
  %v3581 = vadd.f32 0.0, %v3580
  %3582 = vmatprep.mubr.bf16.mxu0 0
  %3583 = vmatmul.mubr.bf16.gmra.mrb[0].mxu0 %v3285
  %v3584 = vpop.f32.mrb[0].mxu0
  %v3585 = vadd.f32 0.0, %v3584
  %v3586 = vpop.f32.mrb[0].mxu0
  %v3587 = vadd.f32 0.0, %v3586
  %v3588 = vpop.f32.mrb[0].mxu0
  %v3589 = vadd.f32 0.0, %v3588
  %v3590 = vpop.f32.mrb[0].mxu0
  %v3591 = vadd.f32 0.0, %v3590
  %3592 = vmatprep.mubr.bf16.mxu0 0
  %3593 = vmatmul.mubr.bf16.gmra.mrb[0].mxu0 %v3288
  %v3594 = vpop.f32.mrb[0].mxu0
  %v3595 = vadd.f32 0.0, %v3594
  %v3596 = vpop.f32.mrb[0].mxu0
  %v3597 = vadd.f32 0.0, %v3596
  %v3598 = vpop.f32.mrb[0].mxu0
  %v3599 = vadd.f32 0.0, %v3598
  %v3600 = vpop.f32.mrb[0].mxu0
  %v3601 = vadd.f32 0.0, %v3600
  %3602 = vdwg.mxu0
  %v3603 = vadd.f32 %v2824, %v3325
  %v3604 = vadd.f32 %v2825, %v3327
  %v3605 = vadd.f32 %v2826, %v3329
  %v3606 = vadd.f32 %v2827, %v3331
  %v3607 = vadd.f32 %v2828, %v3335
  %v3608 = vadd.f32 %v2829, %v3337
  %v3609 = vadd.f32 %v2830, %v3339
  %v3610 = vadd.f32 %v2831, %v3341
  %v3611 = vadd.f32 %v2832, %v3345
  %v3612 = vadd.f32 %v2833, %v3347
  %v3613 = vadd.f32 %v2834, %v3349
  %v3614 = vadd.f32 %v2835, %v3351
  %v3615 = vadd.f32 %v2836, %v3355
  %v3616 = vadd.f32 %v2837, %v3357
  %v3617 = vadd.f32 %v2838, %v3359
  %v3618 = vadd.f32 %v2839, %v3361
  %v3619 = vadd.f32 %v2840, %v3365
  %v3620 = vadd.f32 %v2841, %v3367
  %v3621 = vadd.f32 %v2842, %v3369
  %v3622 = vadd.f32 %v2843, %v3371
  %v3623 = vadd.f32 %v2844, %v3375
  %v3624 = vadd.f32 %v2845, %v3377
  %v3625 = vadd.f32 %v2846, %v3379
  %v3626 = vadd.f32 %v2847, %v3381
  %v3627 = vadd.f32 %v2848, %v3385
  %v3628 = vadd.f32 %v2849, %v3387
  %v3629 = vadd.f32 %v2850, %v3389
  %v3630 = vadd.f32 %v2851, %v3391
  %v3631 = vadd.f32 %v2852, %v3395
  %v3632 = vadd.f32 %v2853, %v3397
  %v3633 = vadd.f32 %v2854, %v3399
  %v3634 = vadd.f32 %v2855, %v3401
  %v3635 = vadd.f32 %v2856, %v3405
  %v3636 = vadd.f32 %v2857, %v3407
  %v3637 = vadd.f32 %v2858, %v3409
  %v3638 = vadd.f32 %v2859, %v3411
  %v3639 = vadd.f32 %v2860, %v3415
  %v3640 = vadd.f32 %v2861, %v3417
  %v3641 = vadd.f32 %v2862, %v3419
  %v3642 = vadd.f32 %v2863, %v3421
  %v3643 = vadd.f32 %v2864, %v3425
  %v3644 = vadd.f32 %v2865, %v3427
  %v3645 = vadd.f32 %v2866, %v3429
  %v3646 = vadd.f32 %v2867, %v3431
  %v3647 = vadd.f32 %v2868, %v3435
  %v3648 = vadd.f32 %v2869, %v3437
  %v3649 = vadd.f32 %v2870, %v3439
  %v3650 = vadd.f32 %v2871, %v3441
  %v3651 = vadd.f32 %v2872, %v3445
  %v3652 = vadd.f32 %v2873, %v3447
  %v3653 = vadd.f32 %v2874, %v3449
  %v3654 = vadd.f32 %v2875, %v3451
  %v3655 = vadd.f32 %v2876, %v3455
  %v3656 = vadd.f32 %v2877, %v3457
  %v3657 = vadd.f32 %v2878, %v3459
  %v3658 = vadd.f32 %v2879, %v3461
  %v3659 = vadd.f32 %v2880, %v3465
  %v3660 = vadd.f32 %v2881, %v3467
  %v3661 = vadd.f32 %v2882, %v3469
  %v3662 = vadd.f32 %v2883, %v3471
  %v3663 = vadd.f32 %v2884, %v3475
  %v3664 = vadd.f32 %v2885, %v3477
  %v3665 = vadd.f32 %v2886, %v3479
  %v3666 = vadd.f32 %v2887, %v3481
  %v3667 = vadd.f32 %v2888, %v3485
  %v3668 = vadd.f32 %v2889, %v3487
  %v3669 = vadd.f32 %v2890, %v3489
  %v3670 = vadd.f32 %v2891, %v3491
  %v3671 = vadd.f32 %v2892, %v3495
  %v3672 = vadd.f32 %v2893, %v3497
  %v3673 = vadd.f32 %v2894, %v3499
  %v3674 = vadd.f32 %v2895, %v3501
  %v3675 = vadd.f32 %v2896, %v3505
  %v3676 = vadd.f32 %v2897, %v3507
  %v3677 = vadd.f32 %v2898, %v3509
  %v3678 = vadd.f32 %v2899, %v3511
  %v3679 = vadd.f32 %v2900, %v3515
  %v3680 = vadd.f32 %v2901, %v3517
  %v3681 = vadd.f32 %v2902, %v3519
  %v3682 = vadd.f32 %v2903, %v3521
  %v3683 = vadd.f32 %v2904, %v3525
  %v3684 = vadd.f32 %v2905, %v3527
  %v3685 = vadd.f32 %v2906, %v3529
  %v3686 = vadd.f32 %v2907, %v3531
  %v3687 = vadd.f32 %v2908, %v3535
  %v3688 = vadd.f32 %v2909, %v3537
  %v3689 = vadd.f32 %v2910, %v3539
  %v3690 = vadd.f32 %v2911, %v3541
  %v3691 = vadd.f32 %v2912, %v3545
  %v3692 = vadd.f32 %v2913, %v3547
  %v3693 = vadd.f32 %v2914, %v3549
  %v3694 = vadd.f32 %v2915, %v3551
  %v3695 = vadd.f32 %v2916, %v3555
  %v3696 = vadd.f32 %v2917, %v3557
  %v3697 = vadd.f32 %v2918, %v3559
  %v3698 = vadd.f32 %v2919, %v3561
  %v3699 = vadd.f32 %v2920, %v3565
  %v3700 = vadd.f32 %v2921, %v3567
  %v3701 = vadd.f32 %v2922, %v3569
  %v3702 = vadd.f32 %v2923, %v3571
  %v3703 = vadd.f32 %v2924, %v3575
  %v3704 = vadd.f32 %v2925, %v3577
  %v3705 = vadd.f32 %v2926, %v3579
  %v3706 = vadd.f32 %v2927, %v3581
  %v3707 = vadd.f32 %v2928, %v3585
  %v3708 = vadd.f32 %v2929, %v3587
  %v3709 = vadd.f32 %v2930, %v3589
  %v3710 = vadd.f32 %v2931, %v3591
  %v3711 = vadd.f32 %v2932, %v3595
  %v3712 = vadd.f32 %v2933, %v3597
  %v3713 = vadd.f32 %v2934, %v3599
  %v3714 = vadd.f32 %v2935, %v3601
  %v3715 = vld [vmem:[%s2] sm:$0x3]
  %v3717 = vlaneseq
  %v3718 = vshrl.u32 %v3717, 7
  %v3719 = vsub.s32 0, %v3718
  %v3720 = vrot.slane %v3715, %v3719
  %v3721 = vlaneseq
  %v3722 = vshrl.u32 %v3721, 7
  %v3723 = vsub.s32 1, %v3722
  %v3724 = vrot.slane %v3715, %v3723
  %v3727 = vadd.f32 %v3603, %v3720
  %v3728 = vadd.f32 %v3604, %v3724
  %v3729 = vadd.f32 %v3605, %v3720
  %v3730 = vadd.f32 %v3606, %v3724
  %v3731 = vadd.f32 %v3607, %v3720
  %v3732 = vadd.f32 %v3608, %v3724
  %v3733 = vadd.f32 %v3609, %v3720
  %v3734 = vadd.f32 %v3610, %v3724
  %v3735 = vadd.f32 %v3611, %v3720
  %v3736 = vadd.f32 %v3612, %v3724
  %v3737 = vadd.f32 %v3613, %v3720
  %v3738 = vadd.f32 %v3614, %v3724
  %v3739 = vadd.f32 %v3615, %v3720
  %v3740 = vadd.f32 %v3616, %v3724
  %v3741 = vadd.f32 %v3617, %v3720
  %v3742 = vadd.f32 %v3618, %v3724
  %v3743 = vadd.f32 %v3619, %v3720
  %v3744 = vadd.f32 %v3620, %v3724
  %v3745 = vadd.f32 %v3621, %v3720
  %v3746 = vadd.f32 %v3622, %v3724
  %v3747 = vadd.f32 %v3623, %v3720
  %v3748 = vadd.f32 %v3624, %v3724
  %v3749 = vadd.f32 %v3625, %v3720
  %v3750 = vadd.f32 %v3626, %v3724
  %v3751 = vadd.f32 %v3627, %v3720
  %v3752 = vadd.f32 %v3628, %v3724
  %v3753 = vadd.f32 %v3629, %v3720
  %v3754 = vadd.f32 %v3630, %v3724
  %v3755 = vadd.f32 %v3631, %v3720
  %v3756 = vadd.f32 %v3632, %v3724
  %v3757 = vadd.f32 %v3633, %v3720
  %v3758 = vadd.f32 %v3634, %v3724
  %v3759 = vadd.f32 %v3635, %v3720
  %v3760 = vadd.f32 %v3636, %v3724
  %v3761 = vadd.f32 %v3637, %v3720
  %v3762 = vadd.f32 %v3638, %v3724
  %v3763 = vadd.f32 %v3639, %v3720
  %v3764 = vadd.f32 %v3640, %v3724
  %v3765 = vadd.f32 %v3641, %v3720
  %v3766 = vadd.f32 %v3642, %v3724
  %v3767 = vadd.f32 %v3643, %v3720
  %v3768 = vadd.f32 %v3644, %v3724
  %v3769 = vadd.f32 %v3645, %v3720
  %v3770 = vadd.f32 %v3646, %v3724
  %v3771 = vadd.f32 %v3647, %v3720
  %v3772 = vadd.f32 %v3648, %v3724
  %v3773 = vadd.f32 %v3649, %v3720
  %v3774 = vadd.f32 %v3650, %v3724
  %v3775 = vadd.f32 %v3651, %v3720
  %v3776 = vadd.f32 %v3652, %v3724
  %v3777 = vadd.f32 %v3653, %v3720
  %v3778 = vadd.f32 %v3654, %v3724
  %v3779 = vadd.f32 %v3655, %v3720
  %v3780 = vadd.f32 %v3656, %v3724
  %v3781 = vadd.f32 %v3657, %v3720
  %v3782 = vadd.f32 %v3658, %v3724
  %v3783 = vadd.f32 %v3659, %v3720
  %v3784 = vadd.f32 %v3660, %v3724
  %v3785 = vadd.f32 %v3661, %v3720
  %v3786 = vadd.f32 %v3662, %v3724
  %v3787 = vadd.f32 %v3663, %v3720
  %v3788 = vadd.f32 %v3664, %v3724
  %v3789 = vadd.f32 %v3665, %v3720
  %v3790 = vadd.f32 %v3666, %v3724
  %v3791 = vadd.f32 %v3667, %v3720
  %v3792 = vadd.f32 %v3668, %v3724
  %v3793 = vadd.f32 %v3669, %v3720
  %v3794 = vadd.f32 %v3670, %v3724
  %v3795 = vadd.f32 %v3671, %v3720
  %v3796 = vadd.f32 %v3672, %v3724
  %v3797 = vadd.f32 %v3673, %v3720
  %v3798 = vadd.f32 %v3674, %v3724
  %v3799 = vadd.f32 %v3675, %v3720
  %v3800 = vadd.f32 %v3676, %v3724
  %v3801 = vadd.f32 %v3677, %v3720
  %v3802 = vadd.f32 %v3678, %v3724
  %v3803 = vadd.f32 %v3679, %v3720
  %v3804 = vadd.f32 %v3680, %v3724
  %v3805 = vadd.f32 %v3681, %v3720
  %v3806 = vadd.f32 %v3682, %v3724
  %v3807 = vadd.f32 %v3683, %v3720
  %v3808 = vadd.f32 %v3684, %v3724
  %v3809 = vadd.f32 %v3685, %v3720
  %v3810 = vadd.f32 %v3686, %v3724
  %v3811 = vadd.f32 %v3687, %v3720
  %v3812 = vadd.f32 %v3688, %v3724
  %v3813 = vadd.f32 %v3689, %v3720
  %v3814 = vadd.f32 %v3690, %v3724
  %v3815 = vadd.f32 %v3691, %v3720
  %v3816 = vadd.f32 %v3692, %v3724
  %v3817 = vadd.f32 %v3693, %v3720
  %v3818 = vadd.f32 %v3694, %v3724
  %v3819 = vadd.f32 %v3695, %v3720
  %v3820 = vadd.f32 %v3696, %v3724
  %v3821 = vadd.f32 %v3697, %v3720
  %v3822 = vadd.f32 %v3698, %v3724
  %v3823 = vadd.f32 %v3699, %v3720
  %v3824 = vadd.f32 %v3700, %v3724
  %v3825 = vadd.f32 %v3701, %v3720
  %v3826 = vadd.f32 %v3702, %v3724
  %v3827 = vadd.f32 %v3703, %v3720
  %v3828 = vadd.f32 %v3704, %v3724
  %v3829 = vadd.f32 %v3705, %v3720
  %v3830 = vadd.f32 %v3706, %v3724
  %v3831 = vadd.f32 %v3707, %v3720
  %v3832 = vadd.f32 %v3708, %v3724
  %v3833 = vadd.f32 %v3709, %v3720
  %v3834 = vadd.f32 %v3710, %v3724
  %v3835 = vadd.f32 %v3711, %v3720
  %v3836 = vadd.f32 %v3712, %v3724
  %v3837 = vadd.f32 %v3713, %v3720
  %v3838 = vadd.f32 %v3714, %v3724
  %v3839 = vadd.f32 %v3727, %v3731
  %v3840 = vadd.f32 %v3728, %v3732
  %v3841 = vadd.f32 %v3729, %v3733
  %v3842 = vadd.f32 %v3730, %v3734
  %v3843 = vadd.f32 %v3735, %v3739
  %v3844 = vadd.f32 %v3736, %v3740
  %v3845 = vadd.f32 %v3737, %v3741
  %v3846 = vadd.f32 %v3738, %v3742
  %v3847 = vadd.f32 %v3743, %v3747
  %v3848 = vadd.f32 %v3744, %v3748
  %v3849 = vadd.f32 %v3745, %v3749
  %v3850 = vadd.f32 %v3746, %v3750
  %v3851 = vadd.f32 %v3751, %v3755
  %v3852 = vadd.f32 %v3752, %v3756
  %v3853 = vadd.f32 %v3753, %v3757
  %v3854 = vadd.f32 %v3754, %v3758
  %v3855 = vadd.f32 %v3759, %v3763
  %v3856 = vadd.f32 %v3760, %v3764
  %v3857 = vadd.f32 %v3761, %v3765
  %v3858 = vadd.f32 %v3762, %v3766
  %v3859 = vadd.f32 %v3767, %v3771
  %v3860 = vadd.f32 %v3768, %v3772
  %v3861 = vadd.f32 %v3769, %v3773
  %v3862 = vadd.f32 %v3770, %v3774
  %v3863 = vadd.f32 %v3775, %v3779
  %v3864 = vadd.f32 %v3776, %v3780
  %v3865 = vadd.f32 %v3777, %v3781
  %v3866 = vadd.f32 %v3778, %v3782
  %v3867 = vadd.f32 %v3783, %v3787
  %v3868 = vadd.f32 %v3784, %v3788
  %v3869 = vadd.f32 %v3785, %v3789
  %v3870 = vadd.f32 %v3786, %v3790
  %v3871 = vadd.f32 %v3791, %v3795
  %v3872 = vadd.f32 %v3792, %v3796
  %v3873 = vadd.f32 %v3793, %v3797
  %v3874 = vadd.f32 %v3794, %v3798
  %v3875 = vadd.f32 %v3799, %v3803
  %v3876 = vadd.f32 %v3800, %v3804
  %v3877 = vadd.f32 %v3801, %v3805
  %v3878 = vadd.f32 %v3802, %v3806
  %v3879 = vadd.f32 %v3807, %v3811
  %v3880 = vadd.f32 %v3808, %v3812
  %v3881 = vadd.f32 %v3809, %v3813
  %v3882 = vadd.f32 %v3810, %v3814
  %v3883 = vadd.f32 %v3815, %v3819
  %v3884 = vadd.f32 %v3816, %v3820
  %v3885 = vadd.f32 %v3817, %v3821
  %v3886 = vadd.f32 %v3818, %v3822
  %v3887 = vadd.f32 %v3823, %v3827
  %v3888 = vadd.f32 %v3824, %v3828
  %v3889 = vadd.f32 %v3825, %v3829
  %v3890 = vadd.f32 %v3826, %v3830
  %v3891 = vadd.f32 %v3831, %v3835
  %v3892 = vadd.f32 %v3832, %v3836
  %v3893 = vadd.f32 %v3833, %v3837
  %v3894 = vadd.f32 %v3834, %v3838
  %v3895 = vpack.c.bf16 %v3841, %v3839
  %v3896 = vpack.c.bf16 %v3842, %v3840
  %v3897 = vpack.c.bf16 %v3845, %v3843
  %v3898 = vpack.c.bf16 %v3846, %v3844
  %v3899 = vpack.c.bf16 %v3849, %v3847
  %v3900 = vpack.c.bf16 %v3850, %v3848
  %v3901 = vpack.c.bf16 %v3853, %v3851
  %v3902 = vpack.c.bf16 %v3854, %v3852
  %v3903 = vpack.c.bf16 %v3857, %v3855
  %v3904 = vpack.c.bf16 %v3858, %v3856
  %v3905 = vpack.c.bf16 %v3861, %v3859
  %v3906 = vpack.c.bf16 %v3862, %v3860
  %v3907 = vpack.c.bf16 %v3865, %v3863
  %v3908 = vpack.c.bf16 %v3866, %v3864
  %v3909 = vpack.c.bf16 %v3869, %v3867
  %v3910 = vpack.c.bf16 %v3870, %v3868
  %v3911 = vpack.c.bf16 %v3873, %v3871
  %v3912 = vpack.c.bf16 %v3874, %v3872
  %v3913 = vpack.c.bf16 %v3877, %v3875
  %v3914 = vpack.c.bf16 %v3878, %v3876
  %v3915 = vpack.c.bf16 %v3881, %v3879
  %v3916 = vpack.c.bf16 %v3882, %v3880
  %v3917 = vpack.c.bf16 %v3885, %v3883
  %v3918 = vpack.c.bf16 %v3886, %v3884
  %v3919 = vpack.c.bf16 %v3889, %v3887
  %v3920 = vpack.c.bf16 %v3890, %v3888
  %v3921 = vpack.c.bf16 %v3893, %v3891
  %v3922 = vpack.c.bf16 %v3894, %v3892
  %v3923 = vld [vmem:[%s3] sm:$0xf]
  %v3924 = vld [vmem:[%s3 + $0x4] sm:$0xf]
  %v3925 = vld [vmem:[%s3 + $0x8] sm:$0xf]
  %v3926 = vld [vmem:[%s3 + $0xc] sm:$0xf]
  %v3927 = vld [vmem:[%s3 + $0x10] sm:$0xf]
  %v3928 = vld [vmem:[%s3 + $0x14] sm:$0xf]
  %v3929 = vld [vmem:[%s3 + $0x18] sm:$0xf]
  %v3930 = vld [vmem:[%s3 + $0x1c] sm:$0xf]
  %v3931 = vld [vmem:[%s3 + $0x20] sm:$0xf]
  %v3932 = vld [vmem:[%s3 + $0x24] sm:$0xf]
  %v3933 = vld [vmem:[%s3 + $0x28] sm:$0xf]
  %v3934 = vld [vmem:[%s3 + $0x2c] sm:$0xf]
  %v3935 = vld [vmem:[%s3 + $0x30] sm:$0xf]
  %v3936 = vld [vmem:[%s3 + $0x34] sm:$0xf]
  %v3937 = vld [vmem:[%s3 + $0x38] sm:$0xf]
  %v3938 = vld [vmem:[%s3 + $0x3c] sm:$0xf]
  %v3939 = vld [vmem:[%s3 + $0x40] sm:$0xf]
  %v3940 = vld [vmem:[%s3 + $0x44] sm:$0xf]
  %v3941 = vld [vmem:[%s3 + $0x48] sm:$0xf]
  %v3942 = vld [vmem:[%s3 + $0x4c] sm:$0xf]
  %v3943 = vld [vmem:[%s3 + $0x50] sm:$0xf]
  %v3965 = vunpack.c.l.b16 %v3923
  %v3966 = vunpack.c.l.b16 %v3924
  %v3967 = vunpack.c.l.b16 %v3925
  %v3968 = vunpack.c.l.b16 %v3926
  %v3969 = vunpack.c.l.b16 %v3927
  %v3970 = vunpack.c.l.b16 %v3928
  %v3971 = vunpack.c.l.b16 %v3929
  %v3972 = vunpack.c.l.b16 %v3930
  %v3973 = vunpack.c.l.b16 %v3931
  %v3974 = vunpack.c.l.b16 %v3932
  %v3975 = vunpack.c.l.b16 %v3933
  %v3976 = vunpack.c.l.b16 %v3934
  %v3977 = vunpack.c.l.b16 %v3935
  %v3978 = vunpack.c.l.b16 %v3936
  %v3979 = vunpack.c.l.b16 %v3937
  %v3980 = vunpack.c.l.b16 %v3938
  %v3981 = vunpack.c.l.b16 %v3939
  %v3982 = vunpack.c.l.b16 %v3940
  %v3983 = vunpack.c.l.b16 %v3941
  %v3984 = vunpack.c.l.b16 %v3942
  %v3985 = vunpack.c.l.b16 %v3943
  %v3986 = vpack.c.b16 %v3966, %v3965
  %v3987 = vpack.c.b16 %v3968, %v3967
  %v3988 = vpack.c.b16 %v3970, %v3969
  %v3989 = vpack.c.b16 %v3972, %v3971
  %v3990 = vpack.c.b16 %v3974, %v3973
  %v3991 = vpack.c.b16 %v3976, %v3975
  %v3992 = vpack.c.b16 %v3978, %v3977
  %v3993 = vpack.c.b16 %v3980, %v3979
  %v3994 = vpack.c.b16 %v3982, %v3981
  %v3995 = vpack.c.b16 %v3984, %v3983
  %v3996 = vpack.c.b16 %v3985, %v3985
  %vm4007 = vcmask 326656
  %v4009 = vsel %vm4007, %v3896, 0
  %v4012 = vsel %vm4007, %v3898, 0
  %v4015 = vsel %vm4007, %v3900, 0
  %v4018 = vsel %vm4007, %v3902, 0
  %v4021 = vsel %vm4007, %v3904, 0
  %v4024 = vsel %vm4007, %v3906, 0
  %v4027 = vsel %vm4007, %v3908, 0
  %v4030 = vsel %vm4007, %v3910, 0
  %v4033 = vsel %vm4007, %v3912, 0
  %v4036 = vsel %vm4007, %v3914, 0
  %v4039 = vsel %vm4007, %v3916, 0
  %v4042 = vsel %vm4007, %v3918, 0
  %v4045 = vsel %vm4007, %v3920, 0
  %v4048 = vsel %vm4007, %v3922, 0
  %vm4050 = vcmask 1043456
  %v4052 = vsel %vm4050, %v3996, 0
  %4054 = vmatprep.subr.bf16.mxu0 0
  %4055 = vmatpush1.bf16.msra.mxu0 %v3986
  %4056 = vmatprep.subr.bf16.mxu0 0
  %4057 = vmatpush1.bf16.msra.mxu0 %v3987
  %4058 = vmatprep.subr.bf16.mxu0 0
  %4059 = vmatpush1.bf16.msra.mxu0 %v3988
  %4060 = vmatprep.subr.bf16.mxu0 0
  %4061 = vmatpush1.bf16.msra.mxu0 %v3989
  %4062 = vmatprep.subr.bf16.mxu0 0
  %4063 = vmatpush1.bf16.msra.mxu0 %v3990
  %4064 = vmatprep.subr.bf16.mxu0 0
  %4065 = vmatpush1.bf16.msra.mxu0 %v3991
  %4066 = vmatprep.subr.bf16.mxu0 0
  %4067 = vmatpush1.bf16.msra.mxu0 %v3992
  %4068 = vmatprep.subr.bf16.mxu0 0
  %4069 = vmatpush1.bf16.msra.mxu0 %v3993
  %4070 = vmatprep.subr.bf16.mxu0 0
  %4071 = vmatpush1.bf16.msra.mxu0 %v3994
  %4072 = vmatprep.subr.bf16.mxu0 0
  %4073 = vmatpush1.bf16.msra.mxu0 %v3995
  %4074 = vmatprep.subr.bf16.mxu0 0
  %4075 = vmatpush1.bf16.msra.mxu0 %v4052
  %4076 = vmatprep.subr.bf16.mxu0 0
  %4077 = vmatpush1.bf16.msra.mxu0 0
  %4078 = vmatprep.subr.bf16.mxu0 0
  %4079 = vmatpush1.bf16.msra.mxu0 0
  %4080 = vmatprep.subr.bf16.mxu0 0
  %4081 = vmatpush1.bf16.msra.mxu0 0
  %4082 = vmatprep.subr.bf16.mxu0 0
  %4083 = vmatpush1.bf16.msra.mxu0 0
  %4084 = vmatprep.subr.bf16.mxu0 0
  %4085 = vmatpush1.bf16.msra.mxu0 0
  %4086 = vmatprep.mubr.bf16.mxu0 %v4009
  %4087 = vmatmul.mubr.bf16.gmra.mrb[0].mxu0 %v3895
  %v4088 = vpop.f32.mrb[0].mxu0
  %v4089 = vadd.f32 0.0, %v4088
  %v4090 = vpop.f32.mrb[0].mxu0
  %v4091 = vpop.f32.mrb[0].mxu0
  %v4092 = vadd.f32 0.0, %v4091
  %v4093 = vpop.f32.mrb[0].mxu0
  %4094 = vmatprep.mubr.bf16.mxu0 %v4012
  %4095 = vmatmul.mubr.bf16.gmra.mrb[0].mxu0 %v3897
  %v4096 = vpop.f32.mrb[0].mxu0
  %v4097 = vadd.f32 0.0, %v4096
  %v4098 = vpop.f32.mrb[0].mxu0
  %v4099 = vpop.f32.mrb[0].mxu0
  %v4100 = vadd.f32 0.0, %v4099
  %v4101 = vpop.f32.mrb[0].mxu0
  %4102 = vmatprep.mubr.bf16.mxu0 %v4015
  %4103 = vmatmul.mubr.bf16.gmra.mrb[0].mxu0 %v3899
  %v4104 = vpop.f32.mrb[0].mxu0
  %v4105 = vadd.f32 0.0, %v4104
  %v4106 = vpop.f32.mrb[0].mxu0
  %v4107 = vpop.f32.mrb[0].mxu0
  %v4108 = vadd.f32 0.0, %v4107
  %v4109 = vpop.f32.mrb[0].mxu0
  %4110 = vmatprep.mubr.bf16.mxu0 %v4018
  %4111 = vmatmul.mubr.bf16.gmra.mrb[0].mxu0 %v3901
  %v4112 = vpop.f32.mrb[0].mxu0
  %v4113 = vadd.f32 0.0, %v4112
  %v4114 = vpop.f32.mrb[0].mxu0
  %v4115 = vpop.f32.mrb[0].mxu0
  %v4116 = vadd.f32 0.0, %v4115
  %v4117 = vpop.f32.mrb[0].mxu0
  %4118 = vmatprep.mubr.bf16.mxu0 %v4021
  %4119 = vmatmul.mubr.bf16.gmra.mrb[0].mxu0 %v3903
  %v4120 = vpop.f32.mrb[0].mxu0
  %v4121 = vadd.f32 0.0, %v4120
  %v4122 = vpop.f32.mrb[0].mxu0
  %v4123 = vpop.f32.mrb[0].mxu0
  %v4124 = vadd.f32 0.0, %v4123
  %v4125 = vpop.f32.mrb[0].mxu0
  %4126 = vmatprep.mubr.bf16.mxu0 %v4024
  %4127 = vmatmul.mubr.bf16.gmra.mrb[0].mxu0 %v3905
  %v4128 = vpop.f32.mrb[0].mxu0
  %v4129 = vadd.f32 0.0, %v4128
  %v4130 = vpop.f32.mrb[0].mxu0
  %v4131 = vpop.f32.mrb[0].mxu0
  %v4132 = vadd.f32 0.0, %v4131
  %v4133 = vpop.f32.mrb[0].mxu0
  %4134 = vmatprep.mubr.bf16.mxu0 %v4027
  %4135 = vmatmul.mubr.bf16.gmra.mrb[0].mxu0 %v3907
  %v4136 = vpop.f32.mrb[0].mxu0
  %v4137 = vadd.f32 0.0, %v4136
  %v4138 = vpop.f32.mrb[0].mxu0
  %v4139 = vpop.f32.mrb[0].mxu0
  %v4140 = vadd.f32 0.0, %v4139
  %v4141 = vpop.f32.mrb[0].mxu0
  %4142 = vmatprep.mubr.bf16.mxu0 %v4030
  %4143 = vmatmul.mubr.bf16.gmra.mrb[0].mxu0 %v3909
  %v4144 = vpop.f32.mrb[0].mxu0
  %v4145 = vadd.f32 0.0, %v4144
  %v4146 = vpop.f32.mrb[0].mxu0
  %v4147 = vpop.f32.mrb[0].mxu0
  %v4148 = vadd.f32 0.0, %v4147
  %v4149 = vpop.f32.mrb[0].mxu0
  %4150 = vmatprep.mubr.bf16.mxu0 %v4033
  %4151 = vmatmul.mubr.bf16.gmra.mrb[0].mxu0 %v3911
  %v4152 = vpop.f32.mrb[0].mxu0
  %v4153 = vadd.f32 0.0, %v4152
  %v4154 = vpop.f32.mrb[0].mxu0
  %v4155 = vpop.f32.mrb[0].mxu0
  %v4156 = vadd.f32 0.0, %v4155
  %v4157 = vpop.f32.mrb[0].mxu0
  %4158 = vmatprep.mubr.bf16.mxu0 %v4036
  %4159 = vmatmul.mubr.bf16.gmra.mrb[0].mxu0 %v3913
  %v4160 = vpop.f32.mrb[0].mxu0
  %v4161 = vadd.f32 0.0, %v4160
  %v4162 = vpop.f32.mrb[0].mxu0
  %v4163 = vpop.f32.mrb[0].mxu0
  %v4164 = vadd.f32 0.0, %v4163
  %v4165 = vpop.f32.mrb[0].mxu0
  %4166 = vmatprep.mubr.bf16.mxu0 %v4039
  %4167 = vmatmul.mubr.bf16.gmra.mrb[0].mxu0 %v3915
  %v4168 = vpop.f32.mrb[0].mxu0
  %v4169 = vadd.f32 0.0, %v4168
  %v4170 = vpop.f32.mrb[0].mxu0
  %v4171 = vpop.f32.mrb[0].mxu0
  %v4172 = vadd.f32 0.0, %v4171
  %v4173 = vpop.f32.mrb[0].mxu0
  %4174 = vmatprep.mubr.bf16.mxu0 %v4042
  %4175 = vmatmul.mubr.bf16.gmra.mrb[0].mxu0 %v3917
  %v4176 = vpop.f32.mrb[0].mxu0
  %v4177 = vadd.f32 0.0, %v4176
  %v4178 = vpop.f32.mrb[0].mxu0
  %v4179 = vpop.f32.mrb[0].mxu0
  %v4180 = vadd.f32 0.0, %v4179
  %v4181 = vpop.f32.mrb[0].mxu0
  %4182 = vmatprep.mubr.bf16.mxu0 %v4045
  %4183 = vmatmul.mubr.bf16.gmra.mrb[0].mxu0 %v3919
  %v4184 = vpop.f32.mrb[0].mxu0
  %v4185 = vadd.f32 0.0, %v4184
  %v4186 = vpop.f32.mrb[0].mxu0
  %v4187 = vpop.f32.mrb[0].mxu0
  %v4188 = vadd.f32 0.0, %v4187
  %v4189 = vpop.f32.mrb[0].mxu0
  %4190 = vmatprep.mubr.bf16.mxu0 %v4048
  %4191 = vmatmul.mubr.bf16.gmra.mrb[0].mxu0 %v3921
  %v4192 = vpop.f32.mrb[0].mxu0
  %v4193 = vadd.f32 0.0, %v4192
  %v4194 = vpop.f32.mrb[0].mxu0
  %v4195 = vpop.f32.mrb[0].mxu0
  %v4196 = vadd.f32 0.0, %v4195
  %v4197 = vpop.f32.mrb[0].mxu0
  %4198 = vdwg.mxu0
  %v4199 = vpack.c.bf16 %v4092, %v4089
  %v4200 = vpack.c.bf16 %v4100, %v4097
  %v4201 = vpack.c.bf16 %v4108, %v4105
  %v4202 = vpack.c.bf16 %v4116, %v4113
  %v4203 = vpack.c.bf16 %v4124, %v4121
  %v4204 = vpack.c.bf16 %v4132, %v4129
  %v4205 = vpack.c.bf16 %v4140, %v4137
  %v4206 = vpack.c.bf16 %v4148, %v4145
  %v4207 = vpack.c.bf16 %v4156, %v4153
  %v4208 = vpack.c.bf16 %v4164, %v4161
  %v4209 = vld [vmem:[%s4] sm:$0xff]
  %v4210 = vld [vmem:[%s4 + $0x8] sm:$0xff]
  %v4211 = vld [vmem:[%s4 + $0x10] sm:$0xff]
  %v4212 = vld [vmem:[%s4 + $0x18] sm:$0xff]
  %v4213 = vld [vmem:[%s4 + $0x20] sm:$0xff]
  %v4214 = vld [vmem:[%s4 + $0x28] sm:$0xff]
  %v4215 = vld [vmem:[%s4 + $0x30] sm:$0xff]
  %v4216 = vld [vmem:[%s4 + $0x38] sm:$0xff]
  %v4217 = vld [vmem:[%s4 + $0x40] sm:$0xff]
  %v4218 = vld [vmem:[%s4 + $0x48] sm:$0xff]
  %v4219 = vld [vmem:[%s4 + $0x50] sm:$0xff]
  %v4220 = vpack.c.bf16 %v4172, %v4169
  %s4221 = scalar_lea.vmem %s4, 88
  %v4222 = vld [vmem:[%s4221] sm:$0xff]
  %v4223 = vld [vmem:[%s4221 + $0x8] sm:$0xff]
  %v4224 = vld [vmem:[%s4221 + $0x10] sm:$0xff]
  %v4225 = vld [vmem:[%s4221 + $0x18] sm:$0xff]
  %v4226 = vld [vmem:[%s4221 + $0x20] sm:$0xff]
  %v4227 = vld [vmem:[%s4221 + $0x28] sm:$0xff]
  %v4228 = vld [vmem:[%s4221 + $0x30] sm:$0xff]
  %v4229 = vld [vmem:[%s4221 + $0x38] sm:$0xff]
  %v4230 = vld [vmem:[%s4221 + $0x40] sm:$0xff]
  %v4231 = vld [vmem:[%s4221 + $0x48] sm:$0xff]
  %v4232 = vld [vmem:[%s4221 + $0x50] sm:$0xff]
  %v4244 = vunpack.c.l.b16 %v4222
  %v4245 = vunpack.c.h.b16 %v4222
  %v4246 = vunpack.c.l.b16 %v4223
  %v4247 = vunpack.c.h.b16 %v4223
  %v4248 = vunpack.c.l.b16 %v4224
  %v4249 = vunpack.c.h.b16 %v4224
  %v4250 = vunpack.c.l.b16 %v4225
  %v4251 = vunpack.c.h.b16 %v4225
  %v4252 = vunpack.c.l.b16 %v4226
  %v4253 = vunpack.c.h.b16 %v4226
  %v4254 = vunpack.c.l.b16 %v4227
  %v4255 = vunpack.c.h.b16 %v4227
  %v4256 = vunpack.c.l.b16 %v4228
  %v4257 = vunpack.c.h.b16 %v4228
  %v4258 = vunpack.c.l.b16 %v4229
  %v4259 = vunpack.c.h.b16 %v4229
  %v4260 = vunpack.c.l.b16 %v4230
  %v4261 = vunpack.c.h.b16 %v4230
  %v4262 = vunpack.c.l.b16 %v4231
  %v4263 = vunpack.c.h.b16 %v4231
  %v4264 = vunpack.c.l.b16 %v4232
  %v4265 = vunpack.c.h.b16 %v4232
  %v4266 = vpack.c.b16 %v4246, %v4244
  %v4267 = vpack.c.b16 %v4247, %v4245
  %v4268 = vpack.c.b16 %v4250, %v4248
  %v4269 = vpack.c.b16 %v4251, %v4249
  %v4270 = vpack.c.b16 %v4254, %v4252
  %v4271 = vpack.c.b16 %v4255, %v4253
  %v4272 = vpack.c.b16 %v4258, %v4256
  %v4273 = vpack.c.b16 %v4259, %v4257
  %v4274 = vpack.c.b16 %v4262, %v4260
  %v4275 = vpack.c.b16 %v4263, %v4261
  %v4276 = vpack.c.b16 %v4264, %v4264
  %v4277 = vpack.c.b16 %v4265, %v4265
  %vm4288 = vcmask 719872
  %v4290 = vsel %vm4288, %v4200, 0
  %v4293 = vsel %vm4288, %v4201, 0
  %v4296 = vsel %vm4288, %v4202, 0
  %v4299 = vsel %vm4288, %v4203, 0
  %v4302 = vsel %vm4288, %v4204, 0
  %v4305 = vsel %vm4288, %v4205, 0
  %v4308 = vsel %vm4288, %v4206, 0
  %v4311 = vsel %vm4288, %v4207, 0
  %v4314 = vsel %vm4288, %v4208, 0
  %v4317 = vsel %vm4288, %v4220, 0
  %v4320 = vsel %vm4050, %v4276, 0
  %v4323 = vsel %vm4050, %v4277, 0
  %4325 = vmatprep.subr.bf16.mxu0 %v4267
  %4326 = vmatpush1.bf16.msra.mxu0 %v4266
  %4327 = vmatprep.subr.bf16.mxu0 %v4269
  %4328 = vmatpush1.bf16.msra.mxu0 %v4268
  %4329 = vmatprep.subr.bf16.mxu0 %v4271
  %4330 = vmatpush1.bf16.msra.mxu0 %v4270
  %4331 = vmatprep.subr.bf16.mxu0 %v4273
  %4332 = vmatpush1.bf16.msra.mxu0 %v4272
  %4333 = vmatprep.subr.bf16.mxu0 %v4275
  %4334 = vmatpush1.bf16.msra.mxu0 %v4274
  %4335 = vmatprep.subr.bf16.mxu0 %v4323
  %4336 = vmatpush1.bf16.msra.mxu0 %v4320
  %4337 = vmatprep.subr.bf16.mxu0 0
  %4338 = vmatpush1.bf16.msra.mxu0 0
  %4339 = vmatprep.subr.bf16.mxu0 0
  %4340 = vmatpush1.bf16.msra.mxu0 0
  %4341 = vmatprep.subr.bf16.mxu0 0
  %4342 = vmatpush1.bf16.msra.mxu0 0
  %4343 = vmatprep.subr.bf16.mxu0 0
  %4344 = vmatpush1.bf16.msra.mxu0 0
  %4345 = vmatprep.subr.bf16.mxu0 0
  %4346 = vmatpush1.bf16.msra.mxu0 0
  %4347 = vmatprep.subr.bf16.mxu0 0
  %4348 = vmatpush1.bf16.msra.mxu0 0
  %4349 = vmatprep.subr.bf16.mxu0 0
  %4350 = vmatpush1.bf16.msra.mxu0 0
  %4351 = vmatprep.subr.bf16.mxu0 0
  %4352 = vmatpush1.bf16.msra.mxu0 0
  %4353 = vmatprep.subr.bf16.mxu0 0
  %4354 = vmatpush1.bf16.msra.mxu0 0
  %4355 = vmatprep.subr.bf16.mxu0 0
  %4356 = vmatpush1.bf16.msra.mxu0 0
  %4357 = vmatprep.mubr.bf16.mxu0 0
  %4358 = vmatmul.mubr.bf16.gmra.mrb[0].mxu0 %v4290
  %v4359 = vpop.f32.mrb[0].mxu0
  %v4360 = vadd.f32 0.0, %v4359
  %v4361 = vpop.f32.mrb[0].mxu0
  %v4362 = vadd.f32 0.0, %v4361
  %v4363 = vpop.f32.mrb[0].mxu0
  %v4364 = vadd.f32 0.0, %v4363
  %v4365 = vpop.f32.mrb[0].mxu0
  %v4366 = vadd.f32 0.0, %v4365
  %4367 = vmatprep.mubr.bf16.mxu0 0
  %4368 = vmatmul.mubr.bf16.gmra.mrb[0].mxu0 %v4293
  %v4369 = vpop.f32.mrb[0].mxu0
  %v4370 = vadd.f32 0.0, %v4369
  %v4371 = vpop.f32.mrb[0].mxu0
  %v4372 = vadd.f32 0.0, %v4371
  %v4373 = vpop.f32.mrb[0].mxu0
  %v4374 = vadd.f32 0.0, %v4373
  %v4375 = vpop.f32.mrb[0].mxu0
  %v4376 = vadd.f32 0.0, %v4375
  %4377 = vmatprep.mubr.bf16.mxu0 0
  %4378 = vmatmul.mubr.bf16.gmra.mrb[0].mxu0 %v4296
  %v4379 = vpop.f32.mrb[0].mxu0
  %v4380 = vadd.f32 0.0, %v4379
  %v4381 = vpop.f32.mrb[0].mxu0
  %v4382 = vadd.f32 0.0, %v4381
  %v4383 = vpop.f32.mrb[0].mxu0
  %v4384 = vadd.f32 0.0, %v4383
  %v4385 = vpop.f32.mrb[0].mxu0
  %v4386 = vadd.f32 0.0, %v4385
  %4387 = vmatprep.mubr.bf16.mxu0 0
  %4388 = vmatmul.mubr.bf16.gmra.mrb[0].mxu0 %v4299
  %v4389 = vpop.f32.mrb[0].mxu0
  %v4390 = vadd.f32 0.0, %v4389
  %v4391 = vpop.f32.mrb[0].mxu0
  %v4392 = vadd.f32 0.0, %v4391
  %v4393 = vpop.f32.mrb[0].mxu0
  %v4394 = vadd.f32 0.0, %v4393
  %v4395 = vpop.f32.mrb[0].mxu0
  %v4396 = vadd.f32 0.0, %v4395
  %4397 = vmatprep.mubr.bf16.mxu0 0
  %4398 = vmatmul.mubr.bf16.gmra.mrb[0].mxu0 %v4302
  %v4399 = vpop.f32.mrb[0].mxu0
  %v4400 = vadd.f32 0.0, %v4399
  %v4401 = vpop.f32.mrb[0].mxu0
  %v4402 = vadd.f32 0.0, %v4401
  %v4403 = vpop.f32.mrb[0].mxu0
  %v4404 = vadd.f32 0.0, %v4403
  %v4405 = vpop.f32.mrb[0].mxu0
  %v4406 = vadd.f32 0.0, %v4405
  %4407 = vmatprep.mubr.bf16.mxu0 0
  %4408 = vmatmul.mubr.bf16.gmra.mrb[0].mxu0 %v4305
  %v4409 = vpop.f32.mrb[0].mxu0
  %v4410 = vadd.f32 0.0, %v4409
  %v4411 = vpop.f32.mrb[0].mxu0
  %v4412 = vadd.f32 0.0, %v4411
  %v4413 = vpop.f32.mrb[0].mxu0
  %v4414 = vadd.f32 0.0, %v4413
  %v4415 = vpop.f32.mrb[0].mxu0
  %v4416 = vadd.f32 0.0, %v4415
  %4417 = vmatprep.mubr.bf16.mxu0 0
  %4418 = vmatmul.mubr.bf16.gmra.mrb[0].mxu0 %v4308
  %v4419 = vpop.f32.mrb[0].mxu0
  %v4420 = vadd.f32 0.0, %v4419
  %v4421 = vpop.f32.mrb[0].mxu0
  %v4422 = vadd.f32 0.0, %v4421
  %v4423 = vpop.f32.mrb[0].mxu0
  %v4424 = vadd.f32 0.0, %v4423
  %v4425 = vpop.f32.mrb[0].mxu0
  %v4426 = vadd.f32 0.0, %v4425
  %4427 = vmatprep.mubr.bf16.mxu0 0
  %4428 = vmatmul.mubr.bf16.gmra.mrb[0].mxu0 %v4311
  %v4429 = vpop.f32.mrb[0].mxu0
  %v4430 = vadd.f32 0.0, %v4429
  %v4431 = vpop.f32.mrb[0].mxu0
  %v4432 = vadd.f32 0.0, %v4431
  %v4433 = vpop.f32.mrb[0].mxu0
  %v4434 = vadd.f32 0.0, %v4433
  %v4435 = vpop.f32.mrb[0].mxu0
  %v4436 = vadd.f32 0.0, %v4435
  %4437 = vmatprep.mubr.bf16.mxu0 0
  %4438 = vmatmul.mubr.bf16.gmra.mrb[0].mxu0 %v4314
  %v4439 = vpop.f32.mrb[0].mxu0
  %v4440 = vadd.f32 0.0, %v4439
  %v4441 = vpop.f32.mrb[0].mxu0
  %v4442 = vadd.f32 0.0, %v4441
  %v4443 = vpop.f32.mrb[0].mxu0
  %v4444 = vadd.f32 0.0, %v4443
  %v4445 = vpop.f32.mrb[0].mxu0
  %v4446 = vadd.f32 0.0, %v4445
  %4447 = vmatprep.mubr.bf16.mxu0 0
  %4448 = vmatmul.mubr.bf16.gmra.mrb[0].mxu0 %v4317
  %v4449 = vpop.f32.mrb[0].mxu0
  %v4450 = vadd.f32 0.0, %v4449
  %v4451 = vpop.f32.mrb[0].mxu0
  %v4452 = vadd.f32 0.0, %v4451
  %v4453 = vpop.f32.mrb[0].mxu0
  %v4454 = vadd.f32 0.0, %v4453
  %v4455 = vpop.f32.mrb[0].mxu0
  %v4456 = vadd.f32 0.0, %v4455
  %4457 = vdwg.mxu0
  %v4469 = vunpack.c.l.b16 %v4209
  %v4470 = vunpack.c.h.b16 %v4209
  %v4471 = vunpack.c.l.b16 %v4210
  %v4472 = vunpack.c.h.b16 %v4210
  %v4473 = vunpack.c.l.b16 %v4211
  %v4474 = vunpack.c.h.b16 %v4211
  %v4475 = vunpack.c.l.b16 %v4212
  %v4476 = vunpack.c.h.b16 %v4212
  %v4477 = vunpack.c.l.b16 %v4213
  %v4478 = vunpack.c.h.b16 %v4213
  %v4479 = vunpack.c.l.b16 %v4214
  %v4480 = vunpack.c.h.b16 %v4214
  %v4481 = vunpack.c.l.b16 %v4215
  %v4482 = vunpack.c.h.b16 %v4215
  %v4483 = vunpack.c.l.b16 %v4216
  %v4484 = vunpack.c.h.b16 %v4216
  %v4485 = vunpack.c.l.b16 %v4217
  %v4486 = vunpack.c.h.b16 %v4217
  %v4487 = vunpack.c.l.b16 %v4218
  %v4488 = vunpack.c.h.b16 %v4218
  %v4489 = vunpack.c.l.b16 %v4219
  %v4490 = vunpack.c.h.b16 %v4219
  %v4491 = vpack.c.b16 %v4471, %v4469
  %v4492 = vpack.c.b16 %v4472, %v4470
  %v4493 = vpack.c.b16 %v4475, %v4473
  %v4494 = vpack.c.b16 %v4476, %v4474
  %v4495 = vpack.c.b16 %v4479, %v4477
  %v4496 = vpack.c.b16 %v4480, %v4478
  %v4497 = vpack.c.b16 %v4483, %v4481
  %v4498 = vpack.c.b16 %v4484, %v4482
  %v4499 = vpack.c.b16 %v4487, %v4485
  %v4500 = vpack.c.b16 %v4488, %v4486
  %v4501 = vpack.c.b16 %v4489, %v4489
  %v4502 = vpack.c.b16 %v4490, %v4490
  %v4514 = vsel %vm4288, %v4199, 0
  %v4517 = vsel %vm4050, %v4501, 0
  %v4520 = vsel %vm4050, %v4502, 0
  %4522 = vmatprep.subr.bf16.mxu0 %v4492
  %4523 = vmatpush1.bf16.msra.mxu0 %v4491
  %4524 = vmatprep.subr.bf16.mxu0 %v4494
  %4525 = vmatpush1.bf16.msra.mxu0 %v4493
  %4526 = vmatprep.subr.bf16.mxu0 %v4496
  %4527 = vmatpush1.bf16.msra.mxu0 %v4495
  %4528 = vmatprep.subr.bf16.mxu0 %v4498
  %4529 = vmatpush1.bf16.msra.mxu0 %v4497
  %4530 = vmatprep.subr.bf16.mxu0 %v4500
  %4531 = vmatpush1.bf16.msra.mxu0 %v4499
  %4532 = vmatprep.subr.bf16.mxu0 %v4520
  %4533 = vmatpush1.bf16.msra.mxu0 %v4517
  %4534 = vmatprep.subr.bf16.mxu0 0
  %4535 = vmatpush1.bf16.msra.mxu0 0
  %4536 = vmatprep.subr.bf16.mxu0 0
  %4537 = vmatpush1.bf16.msra.mxu0 0
  %4538 = vmatprep.subr.bf16.mxu0 0
  %4539 = vmatpush1.bf16.msra.mxu0 0
  %4540 = vmatprep.subr.bf16.mxu0 0
  %4541 = vmatpush1.bf16.msra.mxu0 0
  %4542 = vmatprep.subr.bf16.mxu0 0
  %4543 = vmatpush1.bf16.msra.mxu0 0
  %4544 = vmatprep.subr.bf16.mxu0 0
  %4545 = vmatpush1.bf16.msra.mxu0 0
  %4546 = vmatprep.subr.bf16.mxu0 0
  %4547 = vmatpush1.bf16.msra.mxu0 0
  %4548 = vmatprep.subr.bf16.mxu0 0
  %4549 = vmatpush1.bf16.msra.mxu0 0
  %4550 = vmatprep.subr.bf16.mxu0 0
  %4551 = vmatpush1.bf16.msra.mxu0 0
  %4552 = vmatprep.subr.bf16.mxu0 0
  %4553 = vmatpush1.bf16.msra.mxu0 0
  %4554 = vmatprep.mubr.bf16.mxu0 0
  %4555 = vmatmul.mubr.bf16.gmra.mrb[0].mxu0 %v4514
  %v4556 = vpop.f32.mrb[0].mxu0
  %v4557 = vadd.f32 %v4360, %v4556
  %v4558 = vpop.f32.mrb[0].mxu0
  %v4559 = vadd.f32 %v4362, %v4558
  %v4560 = vpop.f32.mrb[0].mxu0
  %v4561 = vadd.f32 %v4364, %v4560
  %v4562 = vpop.f32.mrb[0].mxu0
  %v4563 = vadd.f32 %v4366, %v4562
  %4564 = vmatprep.mubr.bf16.mxu0 0
  %4565 = vmatmul.mubr.bf16.gmra.mrb[0].mxu0 %v4290
  %v4566 = vpop.f32.mrb[0].mxu0
  %v4567 = vadd.f32 %v4370, %v4566
  %v4568 = vpop.f32.mrb[0].mxu0
  %v4569 = vadd.f32 %v4372, %v4568
  %v4570 = vpop.f32.mrb[0].mxu0
  %v4571 = vadd.f32 %v4374, %v4570
  %v4572 = vpop.f32.mrb[0].mxu0
  %v4573 = vadd.f32 %v4376, %v4572
  %4574 = vmatprep.mubr.bf16.mxu0 0
  %4575 = vmatmul.mubr.bf16.gmra.mrb[0].mxu0 %v4293
  %v4576 = vpop.f32.mrb[0].mxu0
  %v4577 = vadd.f32 %v4380, %v4576
  %v4578 = vpop.f32.mrb[0].mxu0
  %v4579 = vadd.f32 %v4382, %v4578
  %v4580 = vpop.f32.mrb[0].mxu0
  %v4581 = vadd.f32 %v4384, %v4580
  %v4582 = vpop.f32.mrb[0].mxu0
  %v4583 = vadd.f32 %v4386, %v4582
  %4584 = vmatprep.mubr.bf16.mxu0 0
  %4585 = vmatmul.mubr.bf16.gmra.mrb[0].mxu0 %v4296
  %v4586 = vpop.f32.mrb[0].mxu0
  %v4587 = vadd.f32 %v4390, %v4586
  %v4588 = vpop.f32.mrb[0].mxu0
  %v4589 = vadd.f32 %v4392, %v4588
  %v4590 = vpop.f32.mrb[0].mxu0
  %v4591 = vadd.f32 %v4394, %v4590
  %v4592 = vpop.f32.mrb[0].mxu0
  %v4593 = vadd.f32 %v4396, %v4592
  %4594 = vmatprep.mubr.bf16.mxu0 0
  %4595 = vmatmul.mubr.bf16.gmra.mrb[0].mxu0 %v4299
  %v4596 = vpop.f32.mrb[0].mxu0
  %v4597 = vadd.f32 %v4400, %v4596
  %v4598 = vpop.f32.mrb[0].mxu0
  %v4599 = vadd.f32 %v4402, %v4598
  %v4600 = vpop.f32.mrb[0].mxu0
  %v4601 = vadd.f32 %v4404, %v4600
  %v4602 = vpop.f32.mrb[0].mxu0
  %v4603 = vadd.f32 %v4406, %v4602
  %4604 = vmatprep.mubr.bf16.mxu0 0
  %4605 = vmatmul.mubr.bf16.gmra.mrb[0].mxu0 %v4302
  %v4606 = vpop.f32.mrb[0].mxu0
  %v4607 = vadd.f32 %v4410, %v4606
  %v4608 = vpop.f32.mrb[0].mxu0
  %v4609 = vadd.f32 %v4412, %v4608
  %v4610 = vpop.f32.mrb[0].mxu0
  %v4611 = vadd.f32 %v4414, %v4610
  %v4612 = vpop.f32.mrb[0].mxu0
  %v4613 = vadd.f32 %v4416, %v4612
  %4614 = vmatprep.mubr.bf16.mxu0 0
  %4615 = vmatmul.mubr.bf16.gmra.mrb[0].mxu0 %v4305
  %v4616 = vpop.f32.mrb[0].mxu0
  %v4617 = vadd.f32 %v4420, %v4616
  %v4618 = vpop.f32.mrb[0].mxu0
  %v4619 = vadd.f32 %v4422, %v4618
  %v4620 = vpop.f32.mrb[0].mxu0
  %v4621 = vadd.f32 %v4424, %v4620
  %v4622 = vpop.f32.mrb[0].mxu0
  %v4623 = vadd.f32 %v4426, %v4622
  %4624 = vmatprep.mubr.bf16.mxu0 0
  %4625 = vmatmul.mubr.bf16.gmra.mrb[0].mxu0 %v4308
  %v4626 = vpop.f32.mrb[0].mxu0
  %v4627 = vadd.f32 %v4430, %v4626
  %v4628 = vpop.f32.mrb[0].mxu0
  %v4629 = vadd.f32 %v4432, %v4628
  %v4630 = vpop.f32.mrb[0].mxu0
  %v4631 = vadd.f32 %v4434, %v4630
  %v4632 = vpop.f32.mrb[0].mxu0
  %v4633 = vadd.f32 %v4436, %v4632
  %4634 = vmatprep.mubr.bf16.mxu0 0
  %4635 = vmatmul.mubr.bf16.gmra.mrb[0].mxu0 %v4311
  %v4636 = vpop.f32.mrb[0].mxu0
  %v4637 = vadd.f32 %v4440, %v4636
  %v4638 = vpop.f32.mrb[0].mxu0
  %v4639 = vadd.f32 %v4442, %v4638
  %v4640 = vpop.f32.mrb[0].mxu0
  %v4641 = vadd.f32 %v4444, %v4640
  %v4642 = vpop.f32.mrb[0].mxu0
  %v4643 = vadd.f32 %v4446, %v4642
  %4644 = vmatprep.mubr.bf16.mxu0 0
  %4645 = vmatmul.mubr.bf16.gmra.mrb[0].mxu0 %v4314
  %v4646 = vpop.f32.mrb[0].mxu0
  %v4647 = vadd.f32 %v4450, %v4646
  %v4648 = vpop.f32.mrb[0].mxu0
  %v4649 = vadd.f32 %v4452, %v4648
  %v4650 = vpop.f32.mrb[0].mxu0
  %v4651 = vadd.f32 %v4454, %v4650
  %v4652 = vpop.f32.mrb[0].mxu0
  %v4653 = vadd.f32 %v4456, %v4652
  %4654 = vdwg.mxu0
  %v4655 = vpack.c.bf16 %v4180, %v4177
  %s4656 = scalar_lea.vmem %s4, 176
  %v4657 = vld [vmem:[%s4656] sm:$0xff]
  %v4658 = vld [vmem:[%s4656 + $0x8] sm:$0xff]
  %v4659 = vld [vmem:[%s4656 + $0x10] sm:$0xff]
  %v4660 = vld [vmem:[%s4656 + $0x18] sm:$0xff]
  %v4661 = vld [vmem:[%s4656 + $0x20] sm:$0xff]
  %v4662 = vld [vmem:[%s4656 + $0x28] sm:$0xff]
  %v4663 = vld [vmem:[%s4656 + $0x30] sm:$0xff]
  %v4664 = vld [vmem:[%s4656 + $0x38] sm:$0xff]
  %v4665 = vld [vmem:[%s4656 + $0x40] sm:$0xff]
  %v4666 = vld [vmem:[%s4656 + $0x48] sm:$0xff]
  %v4667 = vld [vmem:[%s4656 + $0x50] sm:$0xff]
  %v4679 = vunpack.c.l.b16 %v4657
  %v4680 = vunpack.c.h.b16 %v4657
  %v4681 = vunpack.c.l.b16 %v4658
  %v4682 = vunpack.c.h.b16 %v4658
  %v4683 = vunpack.c.l.b16 %v4659
  %v4684 = vunpack.c.h.b16 %v4659
  %v4685 = vunpack.c.l.b16 %v4660
  %v4686 = vunpack.c.h.b16 %v4660
  %v4687 = vunpack.c.l.b16 %v4661
  %v4688 = vunpack.c.h.b16 %v4661
  %v4689 = vunpack.c.l.b16 %v4662
  %v4690 = vunpack.c.h.b16 %v4662
  %v4691 = vunpack.c.l.b16 %v4663
  %v4692 = vunpack.c.h.b16 %v4663
  %v4693 = vunpack.c.l.b16 %v4664
  %v4694 = vunpack.c.h.b16 %v4664
  %v4695 = vunpack.c.l.b16 %v4665
  %v4696 = vunpack.c.h.b16 %v4665
  %v4697 = vunpack.c.l.b16 %v4666
  %v4698 = vunpack.c.h.b16 %v4666
  %v4699 = vunpack.c.l.b16 %v4667
  %v4700 = vunpack.c.h.b16 %v4667
  %v4701 = vpack.c.b16 %v4681, %v4679
  %v4702 = vpack.c.b16 %v4682, %v4680
  %v4703 = vpack.c.b16 %v4685, %v4683
  %v4704 = vpack.c.b16 %v4686, %v4684
  %v4705 = vpack.c.b16 %v4689, %v4687
  %v4706 = vpack.c.b16 %v4690, %v4688
  %v4707 = vpack.c.b16 %v4693, %v4691
  %v4708 = vpack.c.b16 %v4694, %v4692
  %v4709 = vpack.c.b16 %v4697, %v4695
  %v4710 = vpack.c.b16 %v4698, %v4696
  %v4711 = vpack.c.b16 %v4699, %v4699
  %v4712 = vpack.c.b16 %v4700, %v4700
  %v4724 = vsel %vm4288, %v4655, 0
  %v4727 = vsel %vm4050, %v4711, 0
  %v4730 = vsel %vm4050, %v4712, 0
  %4732 = vmatprep.subr.bf16.mxu0 %v4702
  %4733 = vmatpush1.bf16.msra.mxu0 %v4701
  %4734 = vmatprep.subr.bf16.mxu0 %v4704
  %4735 = vmatpush1.bf16.msra.mxu0 %v4703
  %4736 = vmatprep.subr.bf16.mxu0 %v4706
  %4737 = vmatpush1.bf16.msra.mxu0 %v4705
  %4738 = vmatprep.subr.bf16.mxu0 %v4708
  %4739 = vmatpush1.bf16.msra.mxu0 %v4707
  %4740 = vmatprep.subr.bf16.mxu0 %v4710
  %4741 = vmatpush1.bf16.msra.mxu0 %v4709
  %4742 = vmatprep.subr.bf16.mxu0 %v4730
  %4743 = vmatpush1.bf16.msra.mxu0 %v4727
  %4744 = vmatprep.subr.bf16.mxu0 0
  %4745 = vmatpush1.bf16.msra.mxu0 0
  %4746 = vmatprep.subr.bf16.mxu0 0
  %4747 = vmatpush1.bf16.msra.mxu0 0
  %4748 = vmatprep.subr.bf16.mxu0 0
  %4749 = vmatpush1.bf16.msra.mxu0 0
  %4750 = vmatprep.subr.bf16.mxu0 0
  %4751 = vmatpush1.bf16.msra.mxu0 0
  %4752 = vmatprep.subr.bf16.mxu0 0
  %4753 = vmatpush1.bf16.msra.mxu0 0
  %4754 = vmatprep.subr.bf16.mxu0 0
  %4755 = vmatpush1.bf16.msra.mxu0 0
  %4756 = vmatprep.subr.bf16.mxu0 0
  %4757 = vmatpush1.bf16.msra.mxu0 0
  %4758 = vmatprep.subr.bf16.mxu0 0
  %4759 = vmatpush1.bf16.msra.mxu0 0
  %4760 = vmatprep.subr.bf16.mxu0 0
  %4761 = vmatpush1.bf16.msra.mxu0 0
  %4762 = vmatprep.subr.bf16.mxu0 0
  %4763 = vmatpush1.bf16.msra.mxu0 0
  %4764 = vmatprep.mubr.bf16.mxu0 0
  %4765 = vmatmul.mubr.bf16.gmra.mrb[0].mxu0 %v4293
  %v4766 = vpop.f32.mrb[0].mxu0
  %v4767 = vadd.f32 0.0, %v4766
  %v4768 = vpop.f32.mrb[0].mxu0
  %v4769 = vadd.f32 0.0, %v4768
  %v4770 = vpop.f32.mrb[0].mxu0
  %v4771 = vadd.f32 0.0, %v4770
  %v4772 = vpop.f32.mrb[0].mxu0
  %v4773 = vadd.f32 0.0, %v4772
  %4774 = vmatprep.mubr.bf16.mxu0 0
  %4775 = vmatmul.mubr.bf16.gmra.mrb[0].mxu0 %v4296
  %v4776 = vpop.f32.mrb[0].mxu0
  %v4777 = vadd.f32 0.0, %v4776
  %v4778 = vpop.f32.mrb[0].mxu0
  %v4779 = vadd.f32 0.0, %v4778
  %v4780 = vpop.f32.mrb[0].mxu0
  %v4781 = vadd.f32 0.0, %v4780
  %v4782 = vpop.f32.mrb[0].mxu0
  %v4783 = vadd.f32 0.0, %v4782
  %4784 = vmatprep.mubr.bf16.mxu0 0
  %4785 = vmatmul.mubr.bf16.gmra.mrb[0].mxu0 %v4299
  %v4786 = vpop.f32.mrb[0].mxu0
  %v4787 = vadd.f32 0.0, %v4786
  %v4788 = vpop.f32.mrb[0].mxu0
  %v4789 = vadd.f32 0.0, %v4788
  %v4790 = vpop.f32.mrb[0].mxu0
  %v4791 = vadd.f32 0.0, %v4790
  %v4792 = vpop.f32.mrb[0].mxu0
  %v4793 = vadd.f32 0.0, %v4792
  %4794 = vmatprep.mubr.bf16.mxu0 0
  %4795 = vmatmul.mubr.bf16.gmra.mrb[0].mxu0 %v4302
  %v4796 = vpop.f32.mrb[0].mxu0
  %v4797 = vadd.f32 0.0, %v4796
  %v4798 = vpop.f32.mrb[0].mxu0
  %v4799 = vadd.f32 0.0, %v4798
  %v4800 = vpop.f32.mrb[0].mxu0
  %v4801 = vadd.f32 0.0, %v4800
  %v4802 = vpop.f32.mrb[0].mxu0
  %v4803 = vadd.f32 0.0, %v4802
  %4804 = vmatprep.mubr.bf16.mxu0 0
  %4805 = vmatmul.mubr.bf16.gmra.mrb[0].mxu0 %v4305
  %v4806 = vpop.f32.mrb[0].mxu0
  %v4807 = vadd.f32 0.0, %v4806
  %v4808 = vpop.f32.mrb[0].mxu0
  %v4809 = vadd.f32 0.0, %v4808
  %v4810 = vpop.f32.mrb[0].mxu0
  %v4811 = vadd.f32 0.0, %v4810
  %v4812 = vpop.f32.mrb[0].mxu0
  %v4813 = vadd.f32 0.0, %v4812
  %4814 = vmatprep.mubr.bf16.mxu0 0
  %4815 = vmatmul.mubr.bf16.gmra.mrb[0].mxu0 %v4308
  %v4816 = vpop.f32.mrb[0].mxu0
  %v4817 = vadd.f32 0.0, %v4816
  %v4818 = vpop.f32.mrb[0].mxu0
  %v4819 = vadd.f32 0.0, %v4818
  %v4820 = vpop.f32.mrb[0].mxu0
  %v4821 = vadd.f32 0.0, %v4820
  %v4822 = vpop.f32.mrb[0].mxu0
  %v4823 = vadd.f32 0.0, %v4822
  %4824 = vmatprep.mubr.bf16.mxu0 0
  %4825 = vmatmul.mubr.bf16.gmra.mrb[0].mxu0 %v4311
  %v4826 = vpop.f32.mrb[0].mxu0
  %v4827 = vadd.f32 0.0, %v4826
  %v4828 = vpop.f32.mrb[0].mxu0
  %v4829 = vadd.f32 0.0, %v4828
  %v4830 = vpop.f32.mrb[0].mxu0
  %v4831 = vadd.f32 0.0, %v4830
  %v4832 = vpop.f32.mrb[0].mxu0
  %v4833 = vadd.f32 0.0, %v4832
  %4834 = vmatprep.mubr.bf16.mxu0 0
  %4835 = vmatmul.mubr.bf16.gmra.mrb[0].mxu0 %v4314
  %v4836 = vpop.f32.mrb[0].mxu0
  %v4837 = vadd.f32 0.0, %v4836
  %v4838 = vpop.f32.mrb[0].mxu0
  %v4839 = vadd.f32 0.0, %v4838
  %v4840 = vpop.f32.mrb[0].mxu0
  %v4841 = vadd.f32 0.0, %v4840
  %v4842 = vpop.f32.mrb[0].mxu0
  %v4843 = vadd.f32 0.0, %v4842
  %4844 = vmatprep.mubr.bf16.mxu0 0
  %4845 = vmatmul.mubr.bf16.gmra.mrb[0].mxu0 %v4317
  %v4846 = vpop.f32.mrb[0].mxu0
  %v4847 = vadd.f32 0.0, %v4846
  %v4848 = vpop.f32.mrb[0].mxu0
  %v4849 = vadd.f32 0.0, %v4848
  %v4850 = vpop.f32.mrb[0].mxu0
  %v4851 = vadd.f32 0.0, %v4850
  %v4852 = vpop.f32.mrb[0].mxu0
  %v4853 = vadd.f32 0.0, %v4852
  %4854 = vmatprep.mubr.bf16.mxu0 0
  %4855 = vmatmul.mubr.bf16.gmra.mrb[0].mxu0 %v4724
  %v4856 = vpop.f32.mrb[0].mxu0
  %v4857 = vadd.f32 0.0, %v4856
  %v4858 = vpop.f32.mrb[0].mxu0
  %v4859 = vadd.f32 0.0, %v4858
  %v4860 = vpop.f32.mrb[0].mxu0
  %v4861 = vadd.f32 0.0, %v4860
  %v4862 = vpop.f32.mrb[0].mxu0
  %v4863 = vadd.f32 0.0, %v4862
  %4864 = vdwg.mxu0
  %v4865 = vadd.f32 %v4557, %v4767
  %v4866 = vadd.f32 %v4559, %v4769
  %v4867 = vadd.f32 %v4561, %v4771
  %v4868 = vadd.f32 %v4563, %v4773
  %v4869 = vadd.f32 %v4567, %v4777
  %v4870 = vadd.f32 %v4569, %v4779
  %v4871 = vadd.f32 %v4571, %v4781
  %v4872 = vadd.f32 %v4573, %v4783
  %v4873 = vadd.f32 %v4577, %v4787
  %v4874 = vadd.f32 %v4579, %v4789
  %v4875 = vadd.f32 %v4581, %v4791
  %v4876 = vadd.f32 %v4583, %v4793
  %v4877 = vadd.f32 %v4587, %v4797
  %v4878 = vadd.f32 %v4589, %v4799
  %v4879 = vadd.f32 %v4591, %v4801
  %v4880 = vadd.f32 %v4593, %v4803
  %v4881 = vadd.f32 %v4597, %v4807
  %v4882 = vadd.f32 %v4599, %v4809
  %v4883 = vadd.f32 %v4601, %v4811
  %v4884 = vadd.f32 %v4603, %v4813
  %v4885 = vadd.f32 %v4607, %v4817
  %v4886 = vadd.f32 %v4609, %v4819
  %v4887 = vadd.f32 %v4611, %v4821
  %v4888 = vadd.f32 %v4613, %v4823
  %v4889 = vadd.f32 %v4617, %v4827
  %v4890 = vadd.f32 %v4619, %v4829
  %v4891 = vadd.f32 %v4621, %v4831
  %v4892 = vadd.f32 %v4623, %v4833
  %v4893 = vadd.f32 %v4627, %v4837
  %v4894 = vadd.f32 %v4629, %v4839
  %v4895 = vadd.f32 %v4631, %v4841
  %v4896 = vadd.f32 %v4633, %v4843
  %v4897 = vadd.f32 %v4637, %v4847
  %v4898 = vadd.f32 %v4639, %v4849
  %v4899 = vadd.f32 %v4641, %v4851
  %v4900 = vadd.f32 %v4643, %v4853
  %v4901 = vadd.f32 %v4647, %v4857
  %v4902 = vadd.f32 %v4649, %v4859
  %v4903 = vadd.f32 %v4651, %v4861
  %v4904 = vadd.f32 %v4653, %v4863
  %v4905 = vpack.c.bf16 %v4188, %v4185
  %s4906 = scalar_lea.vmem %s4, 264
  %v4907 = vld [vmem:[%s4906] sm:$0xff]
  %v4908 = vld [vmem:[%s4906 + $0x8] sm:$0xff]
  %v4909 = vld [vmem:[%s4906 + $0x10] sm:$0xff]
  %v4910 = vld [vmem:[%s4906 + $0x18] sm:$0xff]
  %v4911 = vld [vmem:[%s4906 + $0x20] sm:$0xff]
  %v4912 = vld [vmem:[%s4906 + $0x28] sm:$0xff]
  %v4913 = vld [vmem:[%s4906 + $0x30] sm:$0xff]
  %v4914 = vld [vmem:[%s4906 + $0x38] sm:$0xff]
  %v4915 = vld [vmem:[%s4906 + $0x40] sm:$0xff]
  %v4916 = vld [vmem:[%s4906 + $0x48] sm:$0xff]
  %v4917 = vld [vmem:[%s4906 + $0x50] sm:$0xff]
  %v4929 = vunpack.c.l.b16 %v4907
  %v4930 = vunpack.c.h.b16 %v4907
  %v4931 = vunpack.c.l.b16 %v4908
  %v4932 = vunpack.c.h.b16 %v4908
  %v4933 = vunpack.c.l.b16 %v4909
  %v4934 = vunpack.c.h.b16 %v4909
  %v4935 = vunpack.c.l.b16 %v4910
  %v4936 = vunpack.c.h.b16 %v4910
  %v4937 = vunpack.c.l.b16 %v4911
  %v4938 = vunpack.c.h.b16 %v4911
  %v4939 = vunpack.c.l.b16 %v4912
  %v4940 = vunpack.c.h.b16 %v4912
  %v4941 = vunpack.c.l.b16 %v4913
  %v4942 = vunpack.c.h.b16 %v4913
  %v4943 = vunpack.c.l.b16 %v4914
  %v4944 = vunpack.c.h.b16 %v4914
  %v4945 = vunpack.c.l.b16 %v4915
  %v4946 = vunpack.c.h.b16 %v4915
  %v4947 = vunpack.c.l.b16 %v4916
  %v4948 = vunpack.c.h.b16 %v4916
  %v4949 = vunpack.c.l.b16 %v4917
  %v4950 = vunpack.c.h.b16 %v4917
  %v4951 = vpack.c.b16 %v4931, %v4929
  %v4952 = vpack.c.b16 %v4932, %v4930
  %v4953 = vpack.c.b16 %v4935, %v4933
  %v4954 = vpack.c.b16 %v4936, %v4934
  %v4955 = vpack.c.b16 %v4939, %v4937
  %v4956 = vpack.c.b16 %v4940, %v4938
  %v4957 = vpack.c.b16 %v4943, %v4941
  %v4958 = vpack.c.b16 %v4944, %v4942
  %v4959 = vpack.c.b16 %v4947, %v4945
  %v4960 = vpack.c.b16 %v4948, %v4946
  %v4961 = vpack.c.b16 %v4949, %v4949
  %v4962 = vpack.c.b16 %v4950, %v4950
  %v4974 = vsel %vm4288, %v4905, 0
  %v4977 = vsel %vm4050, %v4961, 0
  %v4980 = vsel %vm4050, %v4962, 0
  %4982 = vmatprep.subr.bf16.mxu0 %v4952
  %4983 = vmatpush1.bf16.msra.mxu0 %v4951
  %4984 = vmatprep.subr.bf16.mxu0 %v4954
  %4985 = vmatpush1.bf16.msra.mxu0 %v4953
  %4986 = vmatprep.subr.bf16.mxu0 %v4956
  %4987 = vmatpush1.bf16.msra.mxu0 %v4955
  %4988 = vmatprep.subr.bf16.mxu0 %v4958
  %4989 = vmatpush1.bf16.msra.mxu0 %v4957
  %4990 = vmatprep.subr.bf16.mxu0 %v4960
  %4991 = vmatpush1.bf16.msra.mxu0 %v4959
  %4992 = vmatprep.subr.bf16.mxu0 %v4980
  %4993 = vmatpush1.bf16.msra.mxu0 %v4977
  %4994 = vmatprep.subr.bf16.mxu0 0
  %4995 = vmatpush1.bf16.msra.mxu0 0
  %4996 = vmatprep.subr.bf16.mxu0 0
  %4997 = vmatpush1.bf16.msra.mxu0 0
  %4998 = vmatprep.subr.bf16.mxu0 0
  %4999 = vmatpush1.bf16.msra.mxu0 0
  %5000 = vmatprep.subr.bf16.mxu0 0
  %5001 = vmatpush1.bf16.msra.mxu0 0
  %5002 = vmatprep.subr.bf16.mxu0 0
  %5003 = vmatpush1.bf16.msra.mxu0 0
  %5004 = vmatprep.subr.bf16.mxu0 0
  %5005 = vmatpush1.bf16.msra.mxu0 0
  %5006 = vmatprep.subr.bf16.mxu0 0
  %5007 = vmatpush1.bf16.msra.mxu0 0
  %5008 = vmatprep.subr.bf16.mxu0 0
  %5009 = vmatpush1.bf16.msra.mxu0 0
  %5010 = vmatprep.subr.bf16.mxu0 0
  %5011 = vmatpush1.bf16.msra.mxu0 0
  %5012 = vmatprep.subr.bf16.mxu0 0
  %5013 = vmatpush1.bf16.msra.mxu0 0
  %5014 = vmatprep.mubr.bf16.mxu0 0
  %5015 = vmatmul.mubr.bf16.gmra.mrb[0].mxu0 %v4296
  %v5016 = vpop.f32.mrb[0].mxu0
  %v5017 = vadd.f32 0.0, %v5016
  %v5018 = vpop.f32.mrb[0].mxu0
  %v5019 = vadd.f32 0.0, %v5018
  %v5020 = vpop.f32.mrb[0].mxu0
  %v5021 = vadd.f32 0.0, %v5020
  %v5022 = vpop.f32.mrb[0].mxu0
  %v5023 = vadd.f32 0.0, %v5022
  %5024 = vmatprep.mubr.bf16.mxu0 0
  %5025 = vmatmul.mubr.bf16.gmra.mrb[0].mxu0 %v4299
  %v5026 = vpop.f32.mrb[0].mxu0
  %v5027 = vadd.f32 0.0, %v5026
  %v5028 = vpop.f32.mrb[0].mxu0
  %v5029 = vadd.f32 0.0, %v5028
  %v5030 = vpop.f32.mrb[0].mxu0
  %v5031 = vadd.f32 0.0, %v5030
  %v5032 = vpop.f32.mrb[0].mxu0
  %v5033 = vadd.f32 0.0, %v5032
  %5034 = vmatprep.mubr.bf16.mxu0 0
  %5035 = vmatmul.mubr.bf16.gmra.mrb[0].mxu0 %v4302
  %v5036 = vpop.f32.mrb[0].mxu0
  %v5037 = vadd.f32 0.0, %v5036
  %v5038 = vpop.f32.mrb[0].mxu0
  %v5039 = vadd.f32 0.0, %v5038
  %v5040 = vpop.f32.mrb[0].mxu0
  %v5041 = vadd.f32 0.0, %v5040
  %v5042 = vpop.f32.mrb[0].mxu0
  %v5043 = vadd.f32 0.0, %v5042
  %5044 = vmatprep.mubr.bf16.mxu0 0
  %5045 = vmatmul.mubr.bf16.gmra.mrb[0].mxu0 %v4305
  %v5046 = vpop.f32.mrb[0].mxu0
  %v5047 = vadd.f32 0.0, %v5046
  %v5048 = vpop.f32.mrb[0].mxu0
  %v5049 = vadd.f32 0.0, %v5048
  %v5050 = vpop.f32.mrb[0].mxu0
  %v5051 = vadd.f32 0.0, %v5050
  %v5052 = vpop.f32.mrb[0].mxu0
  %v5053 = vadd.f32 0.0, %v5052
  %5054 = vmatprep.mubr.bf16.mxu0 0
  %5055 = vmatmul.mubr.bf16.gmra.mrb[0].mxu0 %v4308
  %v5056 = vpop.f32.mrb[0].mxu0
  %v5057 = vadd.f32 0.0, %v5056
  %v5058 = vpop.f32.mrb[0].mxu0
  %v5059 = vadd.f32 0.0, %v5058
  %v5060 = vpop.f32.mrb[0].mxu0
  %v5061 = vadd.f32 0.0, %v5060
  %v5062 = vpop.f32.mrb[0].mxu0
  %v5063 = vadd.f32 0.0, %v5062
  %5064 = vmatprep.mubr.bf16.mxu0 0
  %5065 = vmatmul.mubr.bf16.gmra.mrb[0].mxu0 %v4311
  %v5066 = vpop.f32.mrb[0].mxu0
  %v5067 = vadd.f32 0.0, %v5066
  %v5068 = vpop.f32.mrb[0].mxu0
  %v5069 = vadd.f32 0.0, %v5068
  %v5070 = vpop.f32.mrb[0].mxu0
  %v5071 = vadd.f32 0.0, %v5070
  %v5072 = vpop.f32.mrb[0].mxu0
  %v5073 = vadd.f32 0.0, %v5072
  %5074 = vmatprep.mubr.bf16.mxu0 0
  %5075 = vmatmul.mubr.bf16.gmra.mrb[0].mxu0 %v4314
  %v5076 = vpop.f32.mrb[0].mxu0
  %v5077 = vadd.f32 0.0, %v5076
  %v5078 = vpop.f32.mrb[0].mxu0
  %v5079 = vadd.f32 0.0, %v5078
  %v5080 = vpop.f32.mrb[0].mxu0
  %v5081 = vadd.f32 0.0, %v5080
  %v5082 = vpop.f32.mrb[0].mxu0
  %v5083 = vadd.f32 0.0, %v5082
  %5084 = vmatprep.mubr.bf16.mxu0 0
  %5085 = vmatmul.mubr.bf16.gmra.mrb[0].mxu0 %v4317
  %v5086 = vpop.f32.mrb[0].mxu0
  %v5087 = vadd.f32 0.0, %v5086
  %v5088 = vpop.f32.mrb[0].mxu0
  %v5089 = vadd.f32 0.0, %v5088
  %v5090 = vpop.f32.mrb[0].mxu0
  %v5091 = vadd.f32 0.0, %v5090
  %v5092 = vpop.f32.mrb[0].mxu0
  %v5093 = vadd.f32 0.0, %v5092
  %5094 = vmatprep.mubr.bf16.mxu0 0
  %5095 = vmatmul.mubr.bf16.gmra.mrb[0].mxu0 %v4724
  %v5096 = vpop.f32.mrb[0].mxu0
  %v5097 = vadd.f32 0.0, %v5096
  %v5098 = vpop.f32.mrb[0].mxu0
  %v5099 = vadd.f32 0.0, %v5098
  %v5100 = vpop.f32.mrb[0].mxu0
  %v5101 = vadd.f32 0.0, %v5100
  %v5102 = vpop.f32.mrb[0].mxu0
  %v5103 = vadd.f32 0.0, %v5102
  %5104 = vmatprep.mubr.bf16.mxu0 0
  %5105 = vmatmul.mubr.bf16.gmra.mrb[0].mxu0 %v4974
  %v5106 = vpop.f32.mrb[0].mxu0
  %v5107 = vadd.f32 0.0, %v5106
  %v5108 = vpop.f32.mrb[0].mxu0
  %v5109 = vadd.f32 0.0, %v5108
  %v5110 = vpop.f32.mrb[0].mxu0
  %v5111 = vadd.f32 0.0, %v5110
  %v5112 = vpop.f32.mrb[0].mxu0
  %v5113 = vadd.f32 0.0, %v5112
  %5114 = vdwg.mxu0
  %v5115 = vadd.f32 %v4865, %v5017
  %v5116 = vadd.f32 %v4866, %v5019
  %v5117 = vadd.f32 %v4867, %v5021
  %v5118 = vadd.f32 %v4868, %v5023
  %v5119 = vadd.f32 %v4869, %v5027
  %v5120 = vadd.f32 %v4870, %v5029
  %v5121 = vadd.f32 %v4871, %v5031
  %v5122 = vadd.f32 %v4872, %v5033
  %v5123 = vadd.f32 %v4873, %v5037
  %v5124 = vadd.f32 %v4874, %v5039
  %v5125 = vadd.f32 %v4875, %v5041
  %v5126 = vadd.f32 %v4876, %v5043
  %v5127 = vadd.f32 %v4877, %v5047
  %v5128 = vadd.f32 %v4878, %v5049
  %v5129 = vadd.f32 %v4879, %v5051
  %v5130 = vadd.f32 %v4880, %v5053
  %v5131 = vadd.f32 %v4881, %v5057
  %v5132 = vadd.f32 %v4882, %v5059
  %v5133 = vadd.f32 %v4883, %v5061
  %v5134 = vadd.f32 %v4884, %v5063
  %v5135 = vadd.f32 %v4885, %v5067
  %v5136 = vadd.f32 %v4886, %v5069
  %v5137 = vadd.f32 %v4887, %v5071
  %v5138 = vadd.f32 %v4888, %v5073
  %v5139 = vadd.f32 %v4889, %v5077
  %v5140 = vadd.f32 %v4890, %v5079
  %v5141 = vadd.f32 %v4891, %v5081
  %v5142 = vadd.f32 %v4892, %v5083
  %v5143 = vadd.f32 %v4893, %v5087
  %v5144 = vadd.f32 %v4894, %v5089
  %v5145 = vadd.f32 %v4895, %v5091
  %v5146 = vadd.f32 %v4896, %v5093
  %v5147 = vadd.f32 %v4897, %v5097
  %v5148 = vadd.f32 %v4898, %v5099
  %v5149 = vadd.f32 %v4899, %v5101
  %v5150 = vadd.f32 %v4900, %v5103
  %v5151 = vadd.f32 %v4901, %v5107
  %v5152 = vadd.f32 %v4902, %v5109
  %v5153 = vadd.f32 %v4903, %v5111
  %v5154 = vadd.f32 %v4904, %v5113
  %v5155 = vpack.c.bf16 %v4196, %v4193
  %s5156 = scalar_lea.vmem %s4, 352
  %v5157 = vld [vmem:[%s5156] sm:$0xff]
  %v5158 = vld [vmem:[%s5156 + $0x8] sm:$0xff]
  %v5159 = vld [vmem:[%s5156 + $0x10] sm:$0xff]
  %v5160 = vld [vmem:[%s5156 + $0x18] sm:$0xff]
  %v5161 = vld [vmem:[%s5156 + $0x20] sm:$0xff]
  %v5162 = vld [vmem:[%s5156 + $0x28] sm:$0xff]
  %v5163 = vld [vmem:[%s5156 + $0x30] sm:$0xff]
  %v5164 = vld [vmem:[%s5156 + $0x38] sm:$0xff]
  %v5165 = vld [vmem:[%s5156 + $0x40] sm:$0xff]
  %v5166 = vld [vmem:[%s5156 + $0x48] sm:$0xff]
  %v5167 = vld [vmem:[%s5156 + $0x50] sm:$0xff]
  %v5179 = vunpack.c.l.b16 %v5157
  %v5180 = vunpack.c.h.b16 %v5157
  %v5181 = vunpack.c.l.b16 %v5158
  %v5182 = vunpack.c.h.b16 %v5158
  %v5183 = vunpack.c.l.b16 %v5159
  %v5184 = vunpack.c.h.b16 %v5159
  %v5185 = vunpack.c.l.b16 %v5160
  %v5186 = vunpack.c.h.b16 %v5160
  %v5187 = vunpack.c.l.b16 %v5161
  %v5188 = vunpack.c.h.b16 %v5161
  %v5189 = vunpack.c.l.b16 %v5162
  %v5190 = vunpack.c.h.b16 %v5162
  %v5191 = vunpack.c.l.b16 %v5163
  %v5192 = vunpack.c.h.b16 %v5163
  %v5193 = vunpack.c.l.b16 %v5164
  %v5194 = vunpack.c.h.b16 %v5164
  %v5195 = vunpack.c.l.b16 %v5165
  %v5196 = vunpack.c.h.b16 %v5165
  %v5197 = vunpack.c.l.b16 %v5166
  %v5198 = vunpack.c.h.b16 %v5166
  %v5199 = vunpack.c.l.b16 %v5167
  %v5200 = vunpack.c.h.b16 %v5167
  %v5201 = vpack.c.b16 %v5181, %v5179
  %v5202 = vpack.c.b16 %v5182, %v5180
  %v5203 = vpack.c.b16 %v5185, %v5183
  %v5204 = vpack.c.b16 %v5186, %v5184
  %v5205 = vpack.c.b16 %v5189, %v5187
  %v5206 = vpack.c.b16 %v5190, %v5188
  %v5207 = vpack.c.b16 %v5193, %v5191
  %v5208 = vpack.c.b16 %v5194, %v5192
  %v5209 = vpack.c.b16 %v5197, %v5195
  %v5210 = vpack.c.b16 %v5198, %v5196
  %v5211 = vpack.c.b16 %v5199, %v5199
  %v5212 = vpack.c.b16 %v5200, %v5200
  %v5224 = vsel %vm4288, %v5155, 0
  %v5227 = vsel %vm4050, %v5211, 0
  %v5230 = vsel %vm4050, %v5212, 0
  %5232 = vmatprep.subr.bf16.mxu0 %v5202
  %5233 = vmatpush1.bf16.msra.mxu0 %v5201
  %5234 = vmatprep.subr.bf16.mxu0 %v5204
  %5235 = vmatpush1.bf16.msra.mxu0 %v5203
  %5236 = vmatprep.subr.bf16.mxu0 %v5206
  %5237 = vmatpush1.bf16.msra.mxu0 %v5205
  %5238 = vmatprep.subr.bf16.mxu0 %v5208
  %5239 = vmatpush1.bf16.msra.mxu0 %v5207
  %5240 = vmatprep.subr.bf16.mxu0 %v5210
  %5241 = vmatpush1.bf16.msra.mxu0 %v5209
  %5242 = vmatprep.subr.bf16.mxu0 %v5230
  %5243 = vmatpush1.bf16.msra.mxu0 %v5227
  %5244 = vmatprep.subr.bf16.mxu0 0
  %5245 = vmatpush1.bf16.msra.mxu0 0
  %5246 = vmatprep.subr.bf16.mxu0 0
  %5247 = vmatpush1.bf16.msra.mxu0 0
  %5248 = vmatprep.subr.bf16.mxu0 0
  %5249 = vmatpush1.bf16.msra.mxu0 0
  %5250 = vmatprep.subr.bf16.mxu0 0
  %5251 = vmatpush1.bf16.msra.mxu0 0
  %5252 = vmatprep.subr.bf16.mxu0 0
  %5253 = vmatpush1.bf16.msra.mxu0 0
  %5254 = vmatprep.subr.bf16.mxu0 0
  %5255 = vmatpush1.bf16.msra.mxu0 0
  %5256 = vmatprep.subr.bf16.mxu0 0
  %5257 = vmatpush1.bf16.msra.mxu0 0
  %5258 = vmatprep.subr.bf16.mxu0 0
  %5259 = vmatpush1.bf16.msra.mxu0 0
  %5260 = vmatprep.subr.bf16.mxu0 0
  %5261 = vmatpush1.bf16.msra.mxu0 0
  %5262 = vmatprep.subr.bf16.mxu0 0
  %5263 = vmatpush1.bf16.msra.mxu0 0
  %5264 = vmatprep.mubr.bf16.mxu0 0
  %5265 = vmatmul.mubr.bf16.gmra.mrb[0].mxu0 %v4299
  %v5266 = vpop.f32.mrb[0].mxu0
  %v5267 = vadd.f32 0.0, %v5266
  %v5268 = vpop.f32.mrb[0].mxu0
  %v5269 = vadd.f32 0.0, %v5268
  %v5270 = vpop.f32.mrb[0].mxu0
  %v5271 = vadd.f32 0.0, %v5270
  %v5272 = vpop.f32.mrb[0].mxu0
  %v5273 = vadd.f32 0.0, %v5272
  %5274 = vmatprep.mubr.bf16.mxu0 0
  %5275 = vmatmul.mubr.bf16.gmra.mrb[0].mxu0 %v4302
  %v5276 = vpop.f32.mrb[0].mxu0
  %v5277 = vadd.f32 0.0, %v5276
  %v5278 = vpop.f32.mrb[0].mxu0
  %v5279 = vadd.f32 0.0, %v5278
  %v5280 = vpop.f32.mrb[0].mxu0
  %v5281 = vadd.f32 0.0, %v5280
  %v5282 = vpop.f32.mrb[0].mxu0
  %v5283 = vadd.f32 0.0, %v5282
  %5284 = vmatprep.mubr.bf16.mxu0 0
  %5285 = vmatmul.mubr.bf16.gmra.mrb[0].mxu0 %v4305
  %v5286 = vpop.f32.mrb[0].mxu0
  %v5287 = vadd.f32 0.0, %v5286
  %v5288 = vpop.f32.mrb[0].mxu0
  %v5289 = vadd.f32 0.0, %v5288
  %v5290 = vpop.f32.mrb[0].mxu0
  %v5291 = vadd.f32 0.0, %v5290
  %v5292 = vpop.f32.mrb[0].mxu0
  %v5293 = vadd.f32 0.0, %v5292
  %5294 = vmatprep.mubr.bf16.mxu0 0
  %5295 = vmatmul.mubr.bf16.gmra.mrb[0].mxu0 %v4308
  %v5296 = vpop.f32.mrb[0].mxu0
  %v5297 = vadd.f32 0.0, %v5296
  %v5298 = vpop.f32.mrb[0].mxu0
  %v5299 = vadd.f32 0.0, %v5298
  %v5300 = vpop.f32.mrb[0].mxu0
  %v5301 = vadd.f32 0.0, %v5300
  %v5302 = vpop.f32.mrb[0].mxu0
  %v5303 = vadd.f32 0.0, %v5302
  %5304 = vmatprep.mubr.bf16.mxu0 0
  %5305 = vmatmul.mubr.bf16.gmra.mrb[0].mxu0 %v4311
  %v5306 = vpop.f32.mrb[0].mxu0
  %v5307 = vadd.f32 0.0, %v5306
  %v5308 = vpop.f32.mrb[0].mxu0
  %v5309 = vadd.f32 0.0, %v5308
  %v5310 = vpop.f32.mrb[0].mxu0
  %v5311 = vadd.f32 0.0, %v5310
  %v5312 = vpop.f32.mrb[0].mxu0
  %v5313 = vadd.f32 0.0, %v5312
  %5314 = vmatprep.mubr.bf16.mxu0 0
  %5315 = vmatmul.mubr.bf16.gmra.mrb[0].mxu0 %v4314
  %v5316 = vpop.f32.mrb[0].mxu0
  %v5317 = vadd.f32 0.0, %v5316
  %v5318 = vpop.f32.mrb[0].mxu0
  %v5319 = vadd.f32 0.0, %v5318
  %v5320 = vpop.f32.mrb[0].mxu0
  %v5321 = vadd.f32 0.0, %v5320
  %v5322 = vpop.f32.mrb[0].mxu0
  %v5323 = vadd.f32 0.0, %v5322
  %5324 = vmatprep.mubr.bf16.mxu0 0
  %5325 = vmatmul.mubr.bf16.gmra.mrb[0].mxu0 %v4317
  %v5326 = vpop.f32.mrb[0].mxu0
  %v5327 = vadd.f32 0.0, %v5326
  %v5328 = vpop.f32.mrb[0].mxu0
  %v5329 = vadd.f32 0.0, %v5328
  %v5330 = vpop.f32.mrb[0].mxu0
  %v5331 = vadd.f32 0.0, %v5330
  %v5332 = vpop.f32.mrb[0].mxu0
  %v5333 = vadd.f32 0.0, %v5332
  %5334 = vmatprep.mubr.bf16.mxu0 0
  %5335 = vmatmul.mubr.bf16.gmra.mrb[0].mxu0 %v4724
  %v5336 = vpop.f32.mrb[0].mxu0
  %v5337 = vadd.f32 0.0, %v5336
  %v5338 = vpop.f32.mrb[0].mxu0
  %v5339 = vadd.f32 0.0, %v5338
  %v5340 = vpop.f32.mrb[0].mxu0
  %v5341 = vadd.f32 0.0, %v5340
  %v5342 = vpop.f32.mrb[0].mxu0
  %v5343 = vadd.f32 0.0, %v5342
  %5344 = vmatprep.mubr.bf16.mxu0 0
  %5345 = vmatmul.mubr.bf16.gmra.mrb[0].mxu0 %v4974
  %v5346 = vpop.f32.mrb[0].mxu0
  %v5347 = vadd.f32 0.0, %v5346
  %v5348 = vpop.f32.mrb[0].mxu0
  %v5349 = vadd.f32 0.0, %v5348
  %v5350 = vpop.f32.mrb[0].mxu0
  %v5351 = vadd.f32 0.0, %v5350
  %v5352 = vpop.f32.mrb[0].mxu0
  %v5353 = vadd.f32 0.0, %v5352
  %5354 = vmatprep.mubr.bf16.mxu0 0
  %5355 = vmatmul.mubr.bf16.gmra.mrb[0].mxu0 %v5224
  %v5356 = vpop.f32.mrb[0].mxu0
  %v5357 = vadd.f32 0.0, %v5356
  %v5358 = vpop.f32.mrb[0].mxu0
  %v5359 = vadd.f32 0.0, %v5358
  %v5360 = vpop.f32.mrb[0].mxu0
  %v5361 = vadd.f32 0.0, %v5360
  %v5362 = vpop.f32.mrb[0].mxu0
  %v5363 = vadd.f32 0.0, %v5362
  %5364 = vdwg.mxu0
  %v5365 = vadd.f32 %v5115, %v5267
  %v5366 = vadd.f32 %v5116, %v5269
  %v5367 = vadd.f32 %v5117, %v5271
  %v5368 = vadd.f32 %v5118, %v5273
  %v5369 = vadd.f32 %v5119, %v5277
  %v5370 = vadd.f32 %v5120, %v5279
  %v5371 = vadd.f32 %v5121, %v5281
  %v5372 = vadd.f32 %v5122, %v5283
  %v5373 = vadd.f32 %v5123, %v5287
  %v5374 = vadd.f32 %v5124, %v5289
  %v5375 = vadd.f32 %v5125, %v5291
  %v5376 = vadd.f32 %v5126, %v5293
  %v5377 = vadd.f32 %v5127, %v5297
  %v5378 = vadd.f32 %v5128, %v5299
  %v5379 = vadd.f32 %v5129, %v5301
  %v5380 = vadd.f32 %v5130, %v5303
  %v5381 = vadd.f32 %v5131, %v5307
  %v5382 = vadd.f32 %v5132, %v5309
  %v5383 = vadd.f32 %v5133, %v5311
  %v5384 = vadd.f32 %v5134, %v5313
  %v5385 = vadd.f32 %v5135, %v5317
  %v5386 = vadd.f32 %v5136, %v5319
  %v5387 = vadd.f32 %v5137, %v5321
  %v5388 = vadd.f32 %v5138, %v5323
  %v5389 = vadd.f32 %v5139, %v5327
  %v5390 = vadd.f32 %v5140, %v5329
  %v5391 = vadd.f32 %v5141, %v5331
  %v5392 = vadd.f32 %v5142, %v5333
  %v5393 = vadd.f32 %v5143, %v5337
  %v5394 = vadd.f32 %v5144, %v5339
  %v5395 = vadd.f32 %v5145, %v5341
  %v5396 = vadd.f32 %v5146, %v5343
  %v5397 = vadd.f32 %v5147, %v5347
  %v5398 = vadd.f32 %v5148, %v5349
  %v5399 = vadd.f32 %v5149, %v5351
  %v5400 = vadd.f32 %v5150, %v5353
  %v5401 = vadd.f32 %v5151, %v5357
  %v5402 = vadd.f32 %v5152, %v5359
  %v5403 = vadd.f32 %v5153, %v5361
  %v5404 = vadd.f32 %v5154, %v5363
  %v5405 = vld [vmem:[%s5] sm:$0x3]
  %v5407 = vlaneseq
  %v5408 = vshrl.u32 %v5407, 7
  %v5409 = vsub.s32 0, %v5408
  %v5410 = vrot.slane %v5405, %v5409
  %v5411 = vlaneseq
  %v5412 = vshrl.u32 %v5411, 7
  %v5413 = vsub.s32 1, %v5412
  %v5414 = vrot.slane %v5405, %v5413
  %v5417 = vadd.f32 %v5365, %v5410
  %v5418 = vadd.f32 %v5366, %v5414
  %v5419 = vadd.f32 %v5367, %v5410
  %v5420 = vadd.f32 %v5368, %v5414
  %v5421 = vadd.f32 %v5369, %v5410
  %v5422 = vadd.f32 %v5370, %v5414
  %v5423 = vadd.f32 %v5371, %v5410
  %v5424 = vadd.f32 %v5372, %v5414
  %v5425 = vadd.f32 %v5373, %v5410
  %v5426 = vadd.f32 %v5374, %v5414
  %v5427 = vadd.f32 %v5375, %v5410
  %v5428 = vadd.f32 %v5376, %v5414
  %v5429 = vadd.f32 %v5377, %v5410
  %v5430 = vadd.f32 %v5378, %v5414
  %v5431 = vadd.f32 %v5379, %v5410
  %v5432 = vadd.f32 %v5380, %v5414
  %v5433 = vadd.f32 %v5381, %v5410
  %v5434 = vadd.f32 %v5382, %v5414
  %v5435 = vadd.f32 %v5383, %v5410
  %v5436 = vadd.f32 %v5384, %v5414
  %v5437 = vadd.f32 %v5385, %v5410
  %v5438 = vadd.f32 %v5386, %v5414
  %v5439 = vadd.f32 %v5387, %v5410
  %v5440 = vadd.f32 %v5388, %v5414
  %v5441 = vadd.f32 %v5389, %v5410
  %v5442 = vadd.f32 %v5390, %v5414
  %v5443 = vadd.f32 %v5391, %v5410
  %v5444 = vadd.f32 %v5392, %v5414
  %v5445 = vadd.f32 %v5393, %v5410
  %v5446 = vadd.f32 %v5394, %v5414
  %v5447 = vadd.f32 %v5395, %v5410
  %v5448 = vadd.f32 %v5396, %v5414
  %v5449 = vadd.f32 %v5397, %v5410
  %v5450 = vadd.f32 %v5398, %v5414
  %v5451 = vadd.f32 %v5399, %v5410
  %v5452 = vadd.f32 %v5400, %v5414
  %v5453 = vadd.f32 %v5401, %v5410
  %v5454 = vadd.f32 %v5402, %v5414
  %v5455 = vadd.f32 %v5403, %v5410
  %v5456 = vadd.f32 %v5404, %v5414
  %v5457 = vadd.f32 %v5417, %v5421
  %v5458 = vadd.f32 %v5418, %v5422
  %v5459 = vadd.f32 %v5419, %v5423
  %v5460 = vadd.f32 %v5420, %v5424
  %v5461 = vadd.f32 %v5425, %v5429
  %v5462 = vadd.f32 %v5426, %v5430
  %v5463 = vadd.f32 %v5427, %v5431
  %v5464 = vadd.f32 %v5428, %v5432
  %v5465 = vadd.f32 %v5433, %v5437
  %v5466 = vadd.f32 %v5434, %v5438
  %v5467 = vadd.f32 %v5435, %v5439
  %v5468 = vadd.f32 %v5436, %v5440
  %v5469 = vadd.f32 %v5441, %v5445
  %v5470 = vadd.f32 %v5442, %v5446
  %v5471 = vadd.f32 %v5443, %v5447
  %v5472 = vadd.f32 %v5444, %v5448
  %v5473 = vadd.f32 %v5449, %v5453
  %v5474 = vadd.f32 %v5450, %v5454
  %v5475 = vadd.f32 %v5451, %v5455
  %v5476 = vadd.f32 %v5452, %v5456
  %v5477 = vpack.c.bf16 %v5459, %v5457
  %v5478 = vpack.c.bf16 %v5460, %v5458
  %v5479 = vpack.c.bf16 %v5463, %v5461
  %v5480 = vpack.c.bf16 %v5464, %v5462
  %v5481 = vpack.c.bf16 %v5467, %v5465
  %v5482 = vpack.c.bf16 %v5468, %v5466
  %v5483 = vpack.c.bf16 %v5471, %v5469
  %v5484 = vpack.c.bf16 %v5472, %v5470
  %v5485 = vpack.c.bf16 %v5475, %v5473
  %v5486 = vpack.c.bf16 %v5476, %v5474
  %v5487 = vld [vmem:[%s6] sm:$0xf]
  %v5488 = vld [vmem:[%s6 + $0x4] sm:$0xf]
  %v5489 = vld [vmem:[%s6 + $0x8] sm:$0xf]
  %v5490 = vld [vmem:[%s6 + $0xc] sm:$0xf]
  %v5491 = vld [vmem:[%s6 + $0x10] sm:$0xf]
  %v5492 = vld [vmem:[%s6 + $0x14] sm:$0xf]
  %v5493 = vld [vmem:[%s6 + $0x18] sm:$0xf]
  %v5494 = vld [vmem:[%s6 + $0x1c] sm:$0xf]
  %v5495 = vld [vmem:[%s6 + $0x20] sm:$0xf]
  %v5496 = vld [vmem:[%s6 + $0x24] sm:$0xf]
  %v5497 = vld [vmem:[%s6 + $0x28] sm:$0xf]
  %v5498 = vld [vmem:[%s6 + $0x2c] sm:$0xf]
  %v5499 = vld [vmem:[%s6 + $0x30] sm:$0xf]
  %v5500 = vld [vmem:[%s6 + $0x34] sm:$0xf]
  %v5501 = vld [vmem:[%s6 + $0x38] sm:$0xf]
  %v5502 = vld [vmem:[%s6 + $0x3c] sm:$0xf]
  %v5503 = vld [vmem:[%s6 + $0x40] sm:$0xf]
  %v5504 = vld [vmem:[%s6 + $0x44] sm:$0xf]
  %v5505 = vld [vmem:[%s6 + $0x48] sm:$0xf]
  %v5506 = vld [vmem:[%s6 + $0x4c] sm:$0xf]
  %v5527 = vunpack.c.l.b16 %v5487
  %v5528 = vunpack.c.l.b16 %v5488
  %v5529 = vunpack.c.l.b16 %v5489
  %v5530 = vunpack.c.l.b16 %v5490
  %v5531 = vunpack.c.l.b16 %v5491
  %v5532 = vunpack.c.l.b16 %v5492
  %v5533 = vunpack.c.l.b16 %v5493
  %v5534 = vunpack.c.l.b16 %v5494
  %v5535 = vunpack.c.l.b16 %v5495
  %v5536 = vunpack.c.l.b16 %v5496
  %v5537 = vunpack.c.l.b16 %v5497
  %v5538 = vunpack.c.l.b16 %v5498
  %v5539 = vunpack.c.l.b16 %v5499
  %v5540 = vunpack.c.l.b16 %v5500
  %v5541 = vunpack.c.l.b16 %v5501
  %v5542 = vunpack.c.l.b16 %v5502
  %v5543 = vunpack.c.l.b16 %v5503
  %v5544 = vunpack.c.l.b16 %v5504
  %v5545 = vunpack.c.l.b16 %v5505
  %v5546 = vunpack.c.l.b16 %v5506
  %v5547 = vpack.c.b16 %v5528, %v5527
  %v5548 = vpack.c.b16 %v5530, %v5529
  %v5549 = vpack.c.b16 %v5532, %v5531
  %v5550 = vpack.c.b16 %v5534, %v5533
  %v5551 = vpack.c.b16 %v5536, %v5535
  %v5552 = vpack.c.b16 %v5538, %v5537
  %v5553 = vpack.c.b16 %v5540, %v5539
  %v5554 = vpack.c.b16 %v5542, %v5541
  %v5555 = vpack.c.b16 %v5544, %v5543
  %v5556 = vpack.c.b16 %v5546, %v5545
  %vm5567 = vcmask 261120
  %v5569 = vsel %vm5567, %v5478, 0
  %v5572 = vsel %vm5567, %v5480, 0
  %v5575 = vsel %vm5567, %v5482, 0
  %v5578 = vsel %vm5567, %v5484, 0
  %v5581 = vsel %vm5567, %v5486, 0
  %5583 = vmatprep.subr.bf16.mxu0 0
  %5584 = vmatpush1.bf16.msra.mxu0 %v5547
  %5585 = vmatprep.subr.bf16.mxu0 0
  %5586 = vmatpush1.bf16.msra.mxu0 %v5548
  %5587 = vmatprep.subr.bf16.mxu0 0
  %5588 = vmatpush1.bf16.msra.mxu0 %v5549
  %5589 = vmatprep.subr.bf16.mxu0 0
  %5590 = vmatpush1.bf16.msra.mxu0 %v5550
  %5591 = vmatprep.subr.bf16.mxu0 0
  %5592 = vmatpush1.bf16.msra.mxu0 %v5551
  %5593 = vmatprep.subr.bf16.mxu0 0
  %5594 = vmatpush1.bf16.msra.mxu0 %v5552
  %5595 = vmatprep.subr.bf16.mxu0 0
  %5596 = vmatpush1.bf16.msra.mxu0 %v5553
  %5597 = vmatprep.subr.bf16.mxu0 0
  %5598 = vmatpush1.bf16.msra.mxu0 %v5554
  %5599 = vmatprep.subr.bf16.mxu0 0
  %5600 = vmatpush1.bf16.msra.mxu0 %v5555
  %5601 = vmatprep.subr.bf16.mxu0 0
  %5602 = vmatpush1.bf16.msra.mxu0 %v5556
  %5603 = vmatprep.subr.bf16.mxu0 0
  %5604 = vmatpush1.bf16.msra.mxu0 0
  %5605 = vmatprep.subr.bf16.mxu0 0
  %5606 = vmatpush1.bf16.msra.mxu0 0
  %5607 = vmatprep.subr.bf16.mxu0 0
  %5608 = vmatpush1.bf16.msra.mxu0 0
  %5609 = vmatprep.subr.bf16.mxu0 0
  %5610 = vmatpush1.bf16.msra.mxu0 0
  %5611 = vmatprep.subr.bf16.mxu0 0
  %5612 = vmatpush1.bf16.msra.mxu0 0
  %5613 = vmatprep.subr.bf16.mxu0 0
  %5614 = vmatpush1.bf16.msra.mxu0 0
  %5615 = vmatprep.mubr.bf16.mxu0 %v5569
  %5616 = vmatmul.mubr.bf16.gmra.mrb[0].mxu0 %v5477
  %v5617 = vpop.f32.mrb[0].mxu0
  %v5618 = vadd.f32 0.0, %v5617
  %v5619 = vpop.f32.mrb[0].mxu0
  %v5620 = vpop.f32.mrb[0].mxu0
  %v5621 = vadd.f32 0.0, %v5620
  %v5622 = vpop.f32.mrb[0].mxu0
  %5623 = vmatprep.mubr.bf16.mxu0 %v5572
  %5624 = vmatmul.mubr.bf16.gmra.mrb[0].mxu0 %v5479
  %v5625 = vpop.f32.mrb[0].mxu0
  %v5626 = vadd.f32 0.0, %v5625
  %v5627 = vpop.f32.mrb[0].mxu0
  %v5628 = vpop.f32.mrb[0].mxu0
  %v5629 = vadd.f32 0.0, %v5628
  %v5630 = vpop.f32.mrb[0].mxu0
  %5631 = vmatprep.mubr.bf16.mxu0 %v5575
  %5632 = vmatmul.mubr.bf16.gmra.mrb[0].mxu0 %v5481
  %v5633 = vpop.f32.mrb[0].mxu0
  %v5634 = vadd.f32 0.0, %v5633
  %v5635 = vpop.f32.mrb[0].mxu0
  %v5636 = vpop.f32.mrb[0].mxu0
  %v5637 = vadd.f32 0.0, %v5636
  %v5638 = vpop.f32.mrb[0].mxu0
  %5639 = vmatprep.mubr.bf16.mxu0 %v5578
  %5640 = vmatmul.mubr.bf16.gmra.mrb[0].mxu0 %v5483
  %v5641 = vpop.f32.mrb[0].mxu0
  %v5642 = vadd.f32 0.0, %v5641
  %v5643 = vpop.f32.mrb[0].mxu0
  %v5644 = vpop.f32.mrb[0].mxu0
  %v5645 = vadd.f32 0.0, %v5644
  %v5646 = vpop.f32.mrb[0].mxu0
  %5647 = vmatprep.mubr.bf16.mxu0 %v5581
  %5648 = vmatmul.mubr.bf16.gmra.mrb[0].mxu0 %v5485
  %v5649 = vpop.f32.mrb[0].mxu0
  %v5650 = vadd.f32 0.0, %v5649
  %v5651 = vpop.f32.mrb[0].mxu0
  %v5652 = vpop.f32.mrb[0].mxu0
  %v5653 = vadd.f32 0.0, %v5652
  %v5654 = vpop.f32.mrb[0].mxu0
  %5655 = vdwg.mxu0
  %v5656 = vld [vmem:[%s8] sm:$0x1]
  %v5658 = vlaneseq
  %v5659 = vshrl.u32 %v5658, 7
  %v5660 = vsub.s32 0, %v5659
  %v5661 = vrot.slane %v5656, %v5660
  %v5663 = vadd.f32 %v5661, 0.0
  %v5664 = vpack.c.bf16 %v5621, %v5618
  %v5665 = vld [vmem:[%s7] sm:$0xf]
  %v5666 = vld [vmem:[%s7 + $0x4] sm:$0xf]
  %v5667 = vld [vmem:[%s7 + $0x8] sm:$0xf]
  %v5668 = vld [vmem:[%s7 + $0xc] sm:$0xf]
  %v5669 = vld [vmem:[%s7 + $0x10] sm:$0xf]
  %v5670 = vld [vmem:[%s7 + $0x14] sm:$0xf]
  %v5671 = vld [vmem:[%s7 + $0x18] sm:$0xf]
  %v5672 = vld [vmem:[%s7 + $0x1c] sm:$0xf]
  %v5673 = vld [vmem:[%s7 + $0x20] sm:$0xf]
  %v5674 = vld [vmem:[%s7 + $0x24] sm:$0xf]
  %v5685 = vunpack.c.l.b16 %v5665
  %v5686 = vunpack.c.l.b16 %v5666
  %v5687 = vunpack.c.l.b16 %v5667
  %v5688 = vunpack.c.l.b16 %v5668
  %v5689 = vunpack.c.l.b16 %v5669
  %v5690 = vunpack.c.l.b16 %v5670
  %v5691 = vunpack.c.l.b16 %v5671
  %v5692 = vunpack.c.l.b16 %v5672
  %v5693 = vunpack.c.l.b16 %v5673
  %v5694 = vunpack.c.l.b16 %v5674
  %v5695 = vpack.c.b16 %v5686, %v5685
  %v5696 = vpack.c.b16 %v5688, %v5687
  %v5697 = vpack.c.b16 %v5690, %v5689
  %v5698 = vpack.c.b16 %v5692, %v5691
  %v5699 = vpack.c.b16 %v5694, %v5693
  %vm5705 = vcmask 654336
  %v5707 = vsel %vm5705, %v5664, 0
  %5709 = vmatprep.subr.bf16.mxu0 0
  %5710 = vmatpush1.bf16.msra.mxu0 %v5695
  %5711 = vmatprep.subr.bf16.mxu0 0
  %5712 = vmatpush1.bf16.msra.mxu0 %v5696
  %5713 = vmatprep.subr.bf16.mxu0 0
  %5714 = vmatpush1.bf16.msra.mxu0 %v5697
  %5715 = vmatprep.subr.bf16.mxu0 0
  %5716 = vmatpush1.bf16.msra.mxu0 %v5698
  %5717 = vmatprep.subr.bf16.mxu0 0
  %5718 = vmatpush1.bf16.msra.mxu0 %v5699
  %5719 = vmatprep.subr.bf16.mxu0 0
  %5720 = vmatpush1.bf16.msra.mxu0 0
  %5721 = vmatprep.subr.bf16.mxu0 0
  %5722 = vmatpush1.bf16.msra.mxu0 0
  %5723 = vmatprep.subr.bf16.mxu0 0
  %5724 = vmatpush1.bf16.msra.mxu0 0
  %5725 = vmatprep.subr.bf16.mxu0 0
  %5726 = vmatpush1.bf16.msra.mxu0 0
  %5727 = vmatprep.subr.bf16.mxu0 0
  %5728 = vmatpush1.bf16.msra.mxu0 0
  %5729 = vmatprep.subr.bf16.mxu0 0
  %5730 = vmatpush1.bf16.msra.mxu0 0
  %5731 = vmatprep.subr.bf16.mxu0 0
  %5732 = vmatpush1.bf16.msra.mxu0 0
  %5733 = vmatprep.subr.bf16.mxu0 0
  %5734 = vmatpush1.bf16.msra.mxu0 0
  %5735 = vmatprep.subr.bf16.mxu0 0
  %5736 = vmatpush1.bf16.msra.mxu0 0
  %5737 = vmatprep.subr.bf16.mxu0 0
  %5738 = vmatpush1.bf16.msra.mxu0 0
  %5739 = vmatprep.subr.bf16.mxu0 0
  %5740 = vmatpush1.bf16.msra.mxu0 0
  %5741 = vmatprep.mubr.bf16.mxu0 0
  %5742 = vmatmul.mubr.bf16.gmra.mrb[0].mxu0 %v5707
  %v5743 = vpop.f32.mrb[0].mxu0
  %v5744 = vadd.f32 0.0, %v5743
  %v5745 = vpop.f32.mrb[0].mxu0
  %v5746 = vpop.f32.mrb[0].mxu0
  %v5747 = vadd.f32 0.0, %v5746
  %v5748 = vpop.f32.mrb[0].mxu0
  %5749 = vdwg.mxu0
  %v5750 = vadd.f32 %v5663, %v5744
  %v5751 = vadd.f32 %v5663, %v5747
  %v5752 = vpack.c.bf16 %v5629, %v5626
  %s5753 = scalar_lea.vmem %s7, 40
  %v5754 = vld [vmem:[%s5753] sm:$0xf]
  %v5755 = vld [vmem:[%s5753 + $0x4] sm:$0xf]
  %v5756 = vld [vmem:[%s5753 + $0x8] sm:$0xf]
  %v5757 = vld [vmem:[%s5753 + $0xc] sm:$0xf]
  %v5758 = vld [vmem:[%s5753 + $0x10] sm:$0xf]
  %v5759 = vld [vmem:[%s5753 + $0x14] sm:$0xf]
  %v5760 = vld [vmem:[%s5753 + $0x18] sm:$0xf]
  %v5761 = vld [vmem:[%s5753 + $0x1c] sm:$0xf]
  %v5762 = vld [vmem:[%s5753 + $0x20] sm:$0xf]
  %v5763 = vld [vmem:[%s5753 + $0x24] sm:$0xf]
  %v5774 = vunpack.c.l.b16 %v5754
  %v5775 = vunpack.c.l.b16 %v5755
  %v5776 = vunpack.c.l.b16 %v5756
  %v5777 = vunpack.c.l.b16 %v5757
  %v5778 = vunpack.c.l.b16 %v5758
  %v5779 = vunpack.c.l.b16 %v5759
  %v5780 = vunpack.c.l.b16 %v5760
  %v5781 = vunpack.c.l.b16 %v5761
  %v5782 = vunpack.c.l.b16 %v5762
  %v5783 = vunpack.c.l.b16 %v5763
  %v5784 = vpack.c.b16 %v5775, %v5774
  %v5785 = vpack.c.b16 %v5777, %v5776
  %v5786 = vpack.c.b16 %v5779, %v5778
  %v5787 = vpack.c.b16 %v5781, %v5780
  %v5788 = vpack.c.b16 %v5783, %v5782
  %v5795 = vsel %vm5705, %v5752, 0
  %5797 = vmatprep.subr.bf16.mxu0 0
  %5798 = vmatpush1.bf16.msra.mxu0 %v5784
  %5799 = vmatprep.subr.bf16.mxu0 0
  %5800 = vmatpush1.bf16.msra.mxu0 %v5785
  %5801 = vmatprep.subr.bf16.mxu0 0
  %5802 = vmatpush1.bf16.msra.mxu0 %v5786
  %5803 = vmatprep.subr.bf16.mxu0 0
  %5804 = vmatpush1.bf16.msra.mxu0 %v5787
  %5805 = vmatprep.subr.bf16.mxu0 0
  %5806 = vmatpush1.bf16.msra.mxu0 %v5788
  %5807 = vmatprep.subr.bf16.mxu0 0
  %5808 = vmatpush1.bf16.msra.mxu0 0
  %5809 = vmatprep.subr.bf16.mxu0 0
  %5810 = vmatpush1.bf16.msra.mxu0 0
  %5811 = vmatprep.subr.bf16.mxu0 0
  %5812 = vmatpush1.bf16.msra.mxu0 0
  %5813 = vmatprep.subr.bf16.mxu0 0
  %5814 = vmatpush1.bf16.msra.mxu0 0
  %5815 = vmatprep.subr.bf16.mxu0 0
  %5816 = vmatpush1.bf16.msra.mxu0 0
  %5817 = vmatprep.subr.bf16.mxu0 0
  %5818 = vmatpush1.bf16.msra.mxu0 0
  %5819 = vmatprep.subr.bf16.mxu0 0
  %5820 = vmatpush1.bf16.msra.mxu0 0
  %5821 = vmatprep.subr.bf16.mxu0 0
  %5822 = vmatpush1.bf16.msra.mxu0 0
  %5823 = vmatprep.subr.bf16.mxu0 0
  %5824 = vmatpush1.bf16.msra.mxu0 0
  %5825 = vmatprep.subr.bf16.mxu0 0
  %5826 = vmatpush1.bf16.msra.mxu0 0
  %5827 = vmatprep.subr.bf16.mxu0 0
  %5828 = vmatpush1.bf16.msra.mxu0 0
  %5829 = vmatprep.mubr.bf16.mxu0 0
  %5830 = vmatmul.mubr.bf16.gmra.mrb[0].mxu0 %v5795
  %v5831 = vpop.f32.mrb[0].mxu0
  %v5832 = vadd.f32 0.0, %v5831
  %v5833 = vpop.f32.mrb[0].mxu0
  %v5834 = vpop.f32.mrb[0].mxu0
  %v5835 = vadd.f32 0.0, %v5834
  %v5836 = vpop.f32.mrb[0].mxu0
  %5837 = vdwg.mxu0
  %v5838 = vadd.f32 %v5750, %v5832
  %v5839 = vadd.f32 %v5751, %v5835
  %v5840 = vpack.c.bf16 %v5637, %v5634
  %s5841 = scalar_lea.vmem %s7, 80
  %v5842 = vld [vmem:[%s5841] sm:$0xf]
  %v5843 = vld [vmem:[%s5841 + $0x4] sm:$0xf]
  %v5844 = vld [vmem:[%s5841 + $0x8] sm:$0xf]
  %v5845 = vld [vmem:[%s5841 + $0xc] sm:$0xf]
  %v5846 = vld [vmem:[%s5841 + $0x10] sm:$0xf]
  %v5847 = vld [vmem:[%s5841 + $0x14] sm:$0xf]
  %v5848 = vld [vmem:[%s5841 + $0x18] sm:$0xf]
  %v5849 = vld [vmem:[%s5841 + $0x1c] sm:$0xf]
  %v5850 = vld [vmem:[%s5841 + $0x20] sm:$0xf]
  %v5851 = vld [vmem:[%s5841 + $0x24] sm:$0xf]
  %v5862 = vunpack.c.l.b16 %v5842
  %v5863 = vunpack.c.l.b16 %v5843
  %v5864 = vunpack.c.l.b16 %v5844
  %v5865 = vunpack.c.l.b16 %v5845
  %v5866 = vunpack.c.l.b16 %v5846
  %v5867 = vunpack.c.l.b16 %v5847
  %v5868 = vunpack.c.l.b16 %v5848
  %v5869 = vunpack.c.l.b16 %v5849
  %v5870 = vunpack.c.l.b16 %v5850
  %v5871 = vunpack.c.l.b16 %v5851
  %v5872 = vpack.c.b16 %v5863, %v5862
  %v5873 = vpack.c.b16 %v5865, %v5864
  %v5874 = vpack.c.b16 %v5867, %v5866
  %v5875 = vpack.c.b16 %v5869, %v5868
  %v5876 = vpack.c.b16 %v5871, %v5870
  %v5883 = vsel %vm5705, %v5840, 0
  %5885 = vmatprep.subr.bf16.mxu0 0
  %5886 = vmatpush1.bf16.msra.mxu0 %v5872
  %5887 = vmatprep.subr.bf16.mxu0 0
  %5888 = vmatpush1.bf16.msra.mxu0 %v5873
  %5889 = vmatprep.subr.bf16.mxu0 0
  %5890 = vmatpush1.bf16.msra.mxu0 %v5874
  %5891 = vmatprep.subr.bf16.mxu0 0
  %5892 = vmatpush1.bf16.msra.mxu0 %v5875
  %5893 = vmatprep.subr.bf16.mxu0 0
  %5894 = vmatpush1.bf16.msra.mxu0 %v5876
  %5895 = vmatprep.subr.bf16.mxu0 0
  %5896 = vmatpush1.bf16.msra.mxu0 0
  %5897 = vmatprep.subr.bf16.mxu0 0
  %5898 = vmatpush1.bf16.msra.mxu0 0
  %5899 = vmatprep.subr.bf16.mxu0 0
  %5900 = vmatpush1.bf16.msra.mxu0 0
  %5901 = vmatprep.subr.bf16.mxu0 0
  %5902 = vmatpush1.bf16.msra.mxu0 0
  %5903 = vmatprep.subr.bf16.mxu0 0
  %5904 = vmatpush1.bf16.msra.mxu0 0
  %5905 = vmatprep.subr.bf16.mxu0 0
  %5906 = vmatpush1.bf16.msra.mxu0 0
  %5907 = vmatprep.subr.bf16.mxu0 0
  %5908 = vmatpush1.bf16.msra.mxu0 0
  %5909 = vmatprep.subr.bf16.mxu0 0
  %5910 = vmatpush1.bf16.msra.mxu0 0
  %5911 = vmatprep.subr.bf16.mxu0 0
  %5912 = vmatpush1.bf16.msra.mxu0 0
  %5913 = vmatprep.subr.bf16.mxu0 0
  %5914 = vmatpush1.bf16.msra.mxu0 0
  %5915 = vmatprep.subr.bf16.mxu0 0
  %5916 = vmatpush1.bf16.msra.mxu0 0
  %5917 = vmatprep.mubr.bf16.mxu0 0
  %5918 = vmatmul.mubr.bf16.gmra.mrb[0].mxu0 %v5883
  %v5919 = vpop.f32.mrb[0].mxu0
  %v5920 = vadd.f32 0.0, %v5919
  %v5921 = vpop.f32.mrb[0].mxu0
  %v5922 = vpop.f32.mrb[0].mxu0
  %v5923 = vadd.f32 0.0, %v5922
  %v5924 = vpop.f32.mrb[0].mxu0
  %5925 = vdwg.mxu0
  %v5926 = vadd.f32 %v5838, %v5920
  %v5927 = vadd.f32 %v5839, %v5923
  %v5928 = vpack.c.bf16 %v5645, %v5642
  %s5929 = scalar_lea.vmem %s7, 120
  %v5930 = vld [vmem:[%s5929] sm:$0xf]
  %v5931 = vld [vmem:[%s5929 + $0x4] sm:$0xf]
  %v5932 = vld [vmem:[%s5929 + $0x8] sm:$0xf]
  %v5933 = vld [vmem:[%s5929 + $0xc] sm:$0xf]
  %v5934 = vld [vmem:[%s5929 + $0x10] sm:$0xf]
  %v5935 = vld [vmem:[%s5929 + $0x14] sm:$0xf]
  %v5936 = vld [vmem:[%s5929 + $0x18] sm:$0xf]
  %v5937 = vld [vmem:[%s5929 + $0x1c] sm:$0xf]
  %v5938 = vld [vmem:[%s5929 + $0x20] sm:$0xf]
  %v5939 = vld [vmem:[%s5929 + $0x24] sm:$0xf]
  %v5950 = vunpack.c.l.b16 %v5930
  %v5951 = vunpack.c.l.b16 %v5931
  %v5952 = vunpack.c.l.b16 %v5932
  %v5953 = vunpack.c.l.b16 %v5933
  %v5954 = vunpack.c.l.b16 %v5934
  %v5955 = vunpack.c.l.b16 %v5935
  %v5956 = vunpack.c.l.b16 %v5936
  %v5957 = vunpack.c.l.b16 %v5937
  %v5958 = vunpack.c.l.b16 %v5938
  %v5959 = vunpack.c.l.b16 %v5939
  %v5960 = vpack.c.b16 %v5951, %v5950
  %v5961 = vpack.c.b16 %v5953, %v5952
  %v5962 = vpack.c.b16 %v5955, %v5954
  %v5963 = vpack.c.b16 %v5957, %v5956
  %v5964 = vpack.c.b16 %v5959, %v5958
  %v5971 = vsel %vm5705, %v5928, 0
  %5973 = vmatprep.subr.bf16.mxu0 0
  %5974 = vmatpush1.bf16.msra.mxu0 %v5960
  %5975 = vmatprep.subr.bf16.mxu0 0
  %5976 = vmatpush1.bf16.msra.mxu0 %v5961
  %5977 = vmatprep.subr.bf16.mxu0 0
  %5978 = vmatpush1.bf16.msra.mxu0 %v5962
  %5979 = vmatprep.subr.bf16.mxu0 0
  %5980 = vmatpush1.bf16.msra.mxu0 %v5963
  %5981 = vmatprep.subr.bf16.mxu0 0
  %5982 = vmatpush1.bf16.msra.mxu0 %v5964
  %5983 = vmatprep.subr.bf16.mxu0 0
  %5984 = vmatpush1.bf16.msra.mxu0 0
  %5985 = vmatprep.subr.bf16.mxu0 0
  %5986 = vmatpush1.bf16.msra.mxu0 0
  %5987 = vmatprep.subr.bf16.mxu0 0
  %5988 = vmatpush1.bf16.msra.mxu0 0
  %5989 = vmatprep.subr.bf16.mxu0 0
  %5990 = vmatpush1.bf16.msra.mxu0 0
  %5991 = vmatprep.subr.bf16.mxu0 0
  %5992 = vmatpush1.bf16.msra.mxu0 0
  %5993 = vmatprep.subr.bf16.mxu0 0
  %5994 = vmatpush1.bf16.msra.mxu0 0
  %5995 = vmatprep.subr.bf16.mxu0 0
  %5996 = vmatpush1.bf16.msra.mxu0 0
  %5997 = vmatprep.subr.bf16.mxu0 0
  %5998 = vmatpush1.bf16.msra.mxu0 0
  %5999 = vmatprep.subr.bf16.mxu0 0
  %6000 = vmatpush1.bf16.msra.mxu0 0
  %6001 = vmatprep.subr.bf16.mxu0 0
  %6002 = vmatpush1.bf16.msra.mxu0 0
  %6003 = vmatprep.subr.bf16.mxu0 0
  %6004 = vmatpush1.bf16.msra.mxu0 0
  %6005 = vmatprep.mubr.bf16.mxu0 0
  %6006 = vmatmul.mubr.bf16.gmra.mrb[0].mxu0 %v5971
  %v6007 = vpop.f32.mrb[0].mxu0
  %v6008 = vadd.f32 0.0, %v6007
  %v6009 = vpop.f32.mrb[0].mxu0
  %v6010 = vpop.f32.mrb[0].mxu0
  %v6011 = vadd.f32 0.0, %v6010
  %v6012 = vpop.f32.mrb[0].mxu0
  %6013 = vdwg.mxu0
  %v6014 = vadd.f32 %v5926, %v6008
  %v6015 = vadd.f32 %v5927, %v6011
  %v6016 = vpack.c.bf16 %v5653, %v5650
  %s6017 = scalar_lea.vmem %s7, 160
  %v6018 = vld [vmem:[%s6017] sm:$0xf]
  %v6019 = vld [vmem:[%s6017 + $0x4] sm:$0xf]
  %v6020 = vld [vmem:[%s6017 + $0x8] sm:$0xf]
  %v6021 = vld [vmem:[%s6017 + $0xc] sm:$0xf]
  %v6022 = vld [vmem:[%s6017 + $0x10] sm:$0xf]
  %v6023 = vld [vmem:[%s6017 + $0x14] sm:$0xf]
  %v6024 = vld [vmem:[%s6017 + $0x18] sm:$0xf]
  %v6025 = vld [vmem:[%s6017 + $0x1c] sm:$0xf]
  %v6026 = vld [vmem:[%s6017 + $0x20] sm:$0xf]
  %v6027 = vld [vmem:[%s6017 + $0x24] sm:$0xf]
  %v6038 = vunpack.c.l.b16 %v6018
  %v6039 = vunpack.c.l.b16 %v6019
  %v6040 = vunpack.c.l.b16 %v6020
  %v6041 = vunpack.c.l.b16 %v6021
  %v6042 = vunpack.c.l.b16 %v6022
  %v6043 = vunpack.c.l.b16 %v6023
  %v6044 = vunpack.c.l.b16 %v6024
  %v6045 = vunpack.c.l.b16 %v6025
  %v6046 = vunpack.c.l.b16 %v6026
  %v6047 = vunpack.c.l.b16 %v6027
  %v6048 = vpack.c.b16 %v6039, %v6038
  %v6049 = vpack.c.b16 %v6041, %v6040
  %v6050 = vpack.c.b16 %v6043, %v6042
  %v6051 = vpack.c.b16 %v6045, %v6044
  %v6052 = vpack.c.b16 %v6047, %v6046
  %v6059 = vsel %vm5705, %v6016, 0
  %6061 = vmatprep.subr.bf16.mxu0 0
  %6062 = vmatpush1.bf16.msra.mxu0 %v6048
  %6063 = vmatprep.subr.bf16.mxu0 0
  %6064 = vmatpush1.bf16.msra.mxu0 %v6049
  %6065 = vmatprep.subr.bf16.mxu0 0
  %6066 = vmatpush1.bf16.msra.mxu0 %v6050
  %6067 = vmatprep.subr.bf16.mxu0 0
  %6068 = vmatpush1.bf16.msra.mxu0 %v6051
  %6069 = vmatprep.subr.bf16.mxu0 0
  %6070 = vmatpush1.bf16.msra.mxu0 %v6052
  %6071 = vmatprep.subr.bf16.mxu0 0
  %6072 = vmatpush1.bf16.msra.mxu0 0
  %6073 = vmatprep.subr.bf16.mxu0 0
  %6074 = vmatpush1.bf16.msra.mxu0 0
  %6075 = vmatprep.subr.bf16.mxu0 0
  %6076 = vmatpush1.bf16.msra.mxu0 0
  %6077 = vmatprep.subr.bf16.mxu0 0
  %6078 = vmatpush1.bf16.msra.mxu0 0
  %6079 = vmatprep.subr.bf16.mxu0 0
  %6080 = vmatpush1.bf16.msra.mxu0 0
  %6081 = vmatprep.subr.bf16.mxu0 0
  %6082 = vmatpush1.bf16.msra.mxu0 0
  %6083 = vmatprep.subr.bf16.mxu0 0
  %6084 = vmatpush1.bf16.msra.mxu0 0
  %6085 = vmatprep.subr.bf16.mxu0 0
  %6086 = vmatpush1.bf16.msra.mxu0 0
  %6087 = vmatprep.subr.bf16.mxu0 0
  %6088 = vmatpush1.bf16.msra.mxu0 0
  %6089 = vmatprep.subr.bf16.mxu0 0
  %6090 = vmatpush1.bf16.msra.mxu0 0
  %6091 = vmatprep.subr.bf16.mxu0 0
  %6092 = vmatpush1.bf16.msra.mxu0 0
  %6093 = vmatprep.mubr.bf16.mxu0 0
  %6094 = vmatmul.mubr.bf16.gmra.mrb[0].mxu0 %v6059
  %v6095 = vpop.f32.mrb[0].mxu0
  %v6096 = vadd.f32 0.0, %v6095
  %v6097 = vpop.f32.mrb[0].mxu0
  %v6098 = vpop.f32.mrb[0].mxu0
  %v6099 = vadd.f32 0.0, %v6098
  %v6100 = vpop.f32.mrb[0].mxu0
  %6101 = vdwg.mxu0
  %v6102 = vadd.f32 %v6014, %v6096
  %v6103 = vadd.f32 %v6015, %v6099
  %v6104 = vmax.f32 %v6102, 0.0
  %v6105 = vmax.f32 %v6103, 0.0
  %v6106 = vpack.c.bf16 %v6105, %v6104
  %v6107 = vld [vmem:[%s9] sm:$0xf]
  %v6108 = vld [vmem:[%s9 + $0x4] sm:$0xf]
  %v6109 = vld [vmem:[%s9 + $0x8] sm:$0xf]
  %v6110 = vld [vmem:[%s9 + $0xc] sm:$0xf]
  %v6111 = vld [vmem:[%s9 + $0x10] sm:$0xf]
  %v6112 = vld [vmem:[%s9 + $0x14] sm:$0xf]
  %v6113 = vld [vmem:[%s9 + $0x18] sm:$0xf]
  %v6114 = vld [vmem:[%s9 + $0x1c] sm:$0xf]
  %v6115 = vld [vmem:[%s9 + $0x20] sm:$0xf]
  %v6116 = vld [vmem:[%s9 + $0x24] sm:$0xf]
  %v6117 = vld [vmem:[%s9 + $0x28] sm:$0xf]
  %v6118 = vld [vmem:[%s9 + $0x2c] sm:$0xf]
  %v6119 = vld [vmem:[%s9 + $0x30] sm:$0xf]
  %v6120 = vld [vmem:[%s9 + $0x34] sm:$0xf]
  %v6121 = vld [vmem:[%s9 + $0x38] sm:$0xf]
  %v6122 = vld [vmem:[%s10] sm:$0x1]
  %v6124 = vlaneseq
  %v6125 = vshrl.u32 %v6124, 7
  %v6126 = vsub.s32 0, %v6125
  %v6127 = vrot.slane %v6122, %v6126
  %v6144 = vunpack.c.l.b16 %v6107
  %v6145 = vunpack.c.l.b16 %v6108
  %v6146 = vunpack.c.l.b16 %v6109
  %v6147 = vunpack.c.l.b16 %v6110
  %v6148 = vunpack.c.l.b16 %v6111
  %v6149 = vunpack.c.l.b16 %v6112
  %v6150 = vunpack.c.l.b16 %v6113
  %v6151 = vunpack.c.l.b16 %v6114
  %v6152 = vunpack.c.l.b16 %v6115
  %v6153 = vunpack.c.l.b16 %v6116
  %v6154 = vunpack.c.l.b16 %v6117
  %v6155 = vunpack.c.l.b16 %v6118
  %v6156 = vunpack.c.l.b16 %v6119
  %v6157 = vunpack.c.l.b16 %v6120
  %v6158 = vunpack.c.l.b16 %v6121
  %v6159 = vpack.c.b16 %v6145, %v6144
  %v6160 = vpack.c.b16 %v6147, %v6146
  %v6161 = vpack.c.b16 %v6149, %v6148
  %v6162 = vpack.c.b16 %v6151, %v6150
  %v6163 = vpack.c.b16 %v6153, %v6152
  %v6164 = vpack.c.b16 %v6155, %v6154
  %v6165 = vpack.c.b16 %v6157, %v6156
  %v6166 = vpack.c.b16 %v6158, %v6158
  %vm6174 = vcmask 982016
  %v6176 = vsel %vm6174, %v6106, 0
  %v6179 = vsel %vm4050, %v6166, 0
  %6181 = vmatprep.subr.bf16.mxu0 0
  %6182 = vmatpush1.bf16.msra.mxu0 %v6159
  %6183 = vmatprep.subr.bf16.mxu0 0
  %6184 = vmatpush1.bf16.msra.mxu0 %v6160
  %6185 = vmatprep.subr.bf16.mxu0 0
  %6186 = vmatpush1.bf16.msra.mxu0 %v6161
  %6187 = vmatprep.subr.bf16.mxu0 0
  %6188 = vmatpush1.bf16.msra.mxu0 %v6162
  %6189 = vmatprep.subr.bf16.mxu0 0
  %6190 = vmatpush1.bf16.msra.mxu0 %v6163
  %6191 = vmatprep.subr.bf16.mxu0 0
  %6192 = vmatpush1.bf16.msra.mxu0 %v6164
  %6193 = vmatprep.subr.bf16.mxu0 0
  %6194 = vmatpush1.bf16.msra.mxu0 %v6165
  %6195 = vmatprep.subr.bf16.mxu0 0
  %6196 = vmatpush1.bf16.msra.mxu0 %v6179
  %6197 = vmatprep.subr.bf16.mxu0 0
  %6198 = vmatpush1.bf16.msra.mxu0 0
  %6199 = vmatprep.subr.bf16.mxu0 0
  %6200 = vmatpush1.bf16.msra.mxu0 0
  %6201 = vmatprep.subr.bf16.mxu0 0
  %6202 = vmatpush1.bf16.msra.mxu0 0
  %6203 = vmatprep.subr.bf16.mxu0 0
  %6204 = vmatpush1.bf16.msra.mxu0 0
  %6205 = vmatprep.subr.bf16.mxu0 0
  %6206 = vmatpush1.bf16.msra.mxu0 0
  %6207 = vmatprep.subr.bf16.mxu0 0
  %6208 = vmatpush1.bf16.msra.mxu0 0
  %6209 = vmatprep.subr.bf16.mxu0 0
  %6210 = vmatpush1.bf16.msra.mxu0 0
  %6211 = vmatprep.subr.bf16.mxu0 0
  %6212 = vmatpush1.bf16.msra.mxu0 0
  %6213 = vmatprep.mubr.bf16.mxu0 0
  %6214 = vmatmul.mubr.bf16.gmra.mrb[0].mxu0 %v6176
  %v6215 = vpop.f32.mrb[0].mxu0
  %v6216 = vadd.f32 %v6127, %v6215
  %v6217 = vpop.f32.mrb[0].mxu0
  %v6218 = vpop.f32.mrb[0].mxu0
  %v6219 = vadd.f32 %v6127, %v6218
  %v6220 = vpop.f32.mrb[0].mxu0
  %6221 = vdwg.mxu0
  %v6222 = vmax.f32 %v6216, 0.0
  %v6223 = vmax.f32 %v6219, 0.0
  %v6224 = vpack.c.bf16 %v6223, %v6222
  %v6225 = vld [vmem:[%s11] sm:$0xf]
  %v6226 = vld [vmem:[%s11 + $0x4] sm:$0xf]
  %v6227 = vld [vmem:[%s11 + $0x8] sm:$0xf]
  %v6228 = vld [vmem:[%s11 + $0xc] sm:$0xf]
  %v6229 = vld [vmem:[%s11 + $0x10] sm:$0xf]
  %v6230 = vld [vmem:[%s11 + $0x14] sm:$0xf]
  %v6231 = vld [vmem:[%s11 + $0x18] sm:$0xf]
  %v6232 = vld [vmem:[%s11 + $0x1c] sm:$0xf]
  %v6233 = vld [vmem:[%s11 + $0x20] sm:$0xf]
  %v6234 = vld [vmem:[%s11 + $0x24] sm:$0xf]
  %v6235 = vld [vmem:[%s11 + $0x28] sm:$0xf]
  %v6236 = vld [vmem:[%s12] sm:$0x1]
  %v6238 = vlaneseq
  %v6239 = vshrl.u32 %v6238, 7
  %v6240 = vsub.s32 0, %v6239
  %v6241 = vrot.slane %v6236, %v6240
  %v6254 = vunpack.c.l.b16 %v6225
  %v6255 = vunpack.c.l.b16 %v6226
  %v6256 = vunpack.c.l.b16 %v6227
  %v6257 = vunpack.c.l.b16 %v6228
  %v6258 = vunpack.c.l.b16 %v6229
  %v6259 = vunpack.c.l.b16 %v6230
  %v6260 = vunpack.c.l.b16 %v6231
  %v6261 = vunpack.c.l.b16 %v6232
  %v6262 = vunpack.c.l.b16 %v6233
  %v6263 = vunpack.c.l.b16 %v6234
  %v6264 = vunpack.c.l.b16 %v6235
  %v6265 = vpack.c.b16 %v6255, %v6254
  %v6266 = vpack.c.b16 %v6257, %v6256
  %v6267 = vpack.c.b16 %v6259, %v6258
  %v6268 = vpack.c.b16 %v6261, %v6260
  %v6269 = vpack.c.b16 %v6263, %v6262
  %v6270 = vpack.c.b16 %v6264, %v6264
  %v6277 = vsel %vm4288, %v6224, 0
  %v6280 = vsel %vm4050, %v6270, 0
  %6282 = vmatprep.subr.bf16.mxu0 0
  %6283 = vmatpush1.bf16.msra.mxu0 %v6265
  %6284 = vmatprep.subr.bf16.mxu0 0
  %6285 = vmatpush1.bf16.msra.mxu0 %v6266
  %6286 = vmatprep.subr.bf16.mxu0 0
  %6287 = vmatpush1.bf16.msra.mxu0 %v6267
  %6288 = vmatprep.subr.bf16.mxu0 0
  %6289 = vmatpush1.bf16.msra.mxu0 %v6268
  %6290 = vmatprep.subr.bf16.mxu0 0
  %6291 = vmatpush1.bf16.msra.mxu0 %v6269
  %6292 = vmatprep.subr.bf16.mxu0 0
  %6293 = vmatpush1.bf16.msra.mxu0 %v6280
  %6294 = vmatprep.subr.bf16.mxu0 0
  %6295 = vmatpush1.bf16.msra.mxu0 0
  %6296 = vmatprep.subr.bf16.mxu0 0
  %6297 = vmatpush1.bf16.msra.mxu0 0
  %6298 = vmatprep.subr.bf16.mxu0 0
  %6299 = vmatpush1.bf16.msra.mxu0 0
  %6300 = vmatprep.subr.bf16.mxu0 0
  %6301 = vmatpush1.bf16.msra.mxu0 0
  %6302 = vmatprep.subr.bf16.mxu0 0
  %6303 = vmatpush1.bf16.msra.mxu0 0
  %6304 = vmatprep.subr.bf16.mxu0 0
  %6305 = vmatpush1.bf16.msra.mxu0 0
  %6306 = vmatprep.subr.bf16.mxu0 0
  %6307 = vmatpush1.bf16.msra.mxu0 0
  %6308 = vmatprep.subr.bf16.mxu0 0
  %6309 = vmatpush1.bf16.msra.mxu0 0
  %6310 = vmatprep.subr.bf16.mxu0 0
  %6311 = vmatpush1.bf16.msra.mxu0 0
  %6312 = vmatprep.subr.bf16.mxu0 0
  %6313 = vmatpush1.bf16.msra.mxu0 0
  %6314 = vmatprep.mubr.bf16.mxu0 0
  %6315 = vmatmul.mubr.bf16.gmra.mrb[0].mxu0 %v6277
  %v6316 = vpop.f32.mrb[0].mxu0
  %v6317 = vadd.f32 %v6241, %v6316
  %v6318 = vpop.f32.mrb[0].mxu0
  %v6319 = vpop.f32.mrb[0].mxu0
  %v6320 = vadd.f32 %v6241, %v6319
  %v6321 = vpop.f32.mrb[0].mxu0
  %6322 = vdwg.mxu0
  %6323 = vst [vmem:[%s13] sm:$0xff] %v6317
  %6324 = vst [vmem:[%s13 + $0x8] sm:$0xff] %v6320
  // Predicated region
  $region54: #{lenet5_forward.1} parent=0 // pred_check
    _
  $region55: #{lenet5_forward.1} parent=0 // pred_check_branch
    %6326 = sbr.rel (0) target = $region57
  $region56: #{lenet5_forward.1} parent=0 // pred_region
    _
  $region57: #{lenet5_forward.1} parent=0 // pred_fallthru
    _
  // Predicated region
  $region58: #{lenet5_forward.1} parent=0 // pred_check
    _
  $region59: #{lenet5_forward.1} parent=0 // pred_check_branch
    %6328 = sbr.rel (0) target = $region61
  $region60: #{lenet5_forward.1} parent=0 // pred_region
    _
  $region61: #{lenet5_forward.1} parent=0 // pred_fallthru
    _

</llo_original>
